<compile_context>
chip_gen: v5e
topology: v5e:2x2
jax: 0.10.0
libtpu: 0.0.40
codegen_flags: <defaults>
</compile_context>

<pallas_src>
import functools

import jax
import jax.numpy as jnp
from jax.experimental import pallas as pl
from jax.experimental.pallas import tpu as pltpu

NUM_BRANCHES = 3  # googlenet + resnet50 + resnet9 logits, summed


def _fused_heads_kernel(x_ref, wft_ref, wc_ref, b_ref, out_ref, pooled_acc,
                        *, channels, inv_hw):
    """Fused 3-branch heads, gridded over pixel tiles (reduction axis).

    x_ref     : [B, C, hw_tile] f32  NCHW slab (channels on sublanes, pixels lane-dense)
    wft_ref   : [3F, C]         f32  concatenated per-branch 1x1 projections, transposed
    wc_ref    : [3F, Kp]        f32  row-stacked classifier weights
    b_ref     : [1, Kp]         f32  sum of the 3 classifier biases (zero-padded to Kp)
    out_ref   : [B, Kp]         f32  x1 + x2 + x3 logits (lane-dense; sliced to K outside)
    pooled_acc: [B, 3F]         f32  VMEM scratch, pooled-feature accumulator
    """
    t = pl.program_id(0)

    @pl.when(t == 0)
    def _init():
        pooled_acc[...] = jnp.zeros_like(pooled_acc)

    x_t = x_ref[...]      # [B, C, hw_tile] f32
    wft = wft_ref[...]    # [3F, C]         f32

    # Branch "backbones": 1x1 projection as an unrolled VPU broadcast-MAC over
    # the tiny channel dim (C <= 8), computed transposed so the long pixel
    # axis stays lane-dense.  f32 accumulate (v5e has no bf16 VALU).
    feat_t = wft[None, :, 0:1] * x_t[:, 0:1, :]            # [B, 3F, hw_tile]
    for c in range(1, channels):                           # C is a small compile-time const
        feat_t = feat_t + wft[None, :, c:c + 1] * x_t[:, c:c + 1, :]
    feat_t = jnp.maximum(feat_t, 0.0)                      # ReLU

    # Partial global-average pool: one lane-axis reduce per tile, accumulated
    # across the pixel grid axis.  (The [B,3F] relayout is ~3 vregs; negligible.)
    pooled_acc[...] += jnp.sum(feat_t, axis=2)

    @pl.when(t == pl.num_programs(0) - 1)
    def _finalize():
        pooled = pooled_acc[...] * inv_hw                  # mean over H*W pixels
        # Classifier heads: the 3-branch sum is realized by the row-stacked
        # weight; single MXU dot per output block, lane-dense [B, Kp] store.
        out_ref[...] = (
            jnp.dot(pooled, wc_ref[...], preferred_element_type=jnp.float32)
            + b_ref[...]
        )


def googlenet_model_forward(x_nchw, w_feat, w_cls, b_cls):
    """x_nchw: [B, C, H, W] f32; w_feat: [3, C, F]; w_cls: [3, F, K]; b_cls: [3, K].

    Returns summed logits [B, K] (x1 + x2 + x3).
    """
    B, C, H, W = x_nchw.shape
    HW = H * W
    nb, _, F = w_feat.shape
    K = w_cls.shape[-1]
    Kp = max(128, ((K + 127) // 128) * 128)     # lane-dense output store

    # --- layout plumbing / branch collapse (plain JAX glue, no extra HBM pass)
    # NCHW -> [B, C, HW] is a pure contiguous reshape (no transpose, no cast).
    x_r = x_nchw.reshape(B, C, HW)
    # [3, C, F] -> [3F, C]: branch-major feature rows, tiny channel dim minor.
    wft = jnp.transpose(w_feat, (0, 2, 1)).reshape(nb * F, C).astype(jnp.float32)
    # [3, F, K] -> [3F, Kp]: row-stacked classifier weights, classes padded to lanes.
    wc = jnp.pad(w_cls.reshape(nb * F, K).astype(jnp.float32),
                 ((0, 0), (0, Kp - K)))
    # Pre-summed branch biases.
    b_sum = jnp.pad(b_cls.astype(jnp.float32).sum(axis=0)[None, :],
                    ((0, 0), (0, Kp - K)))

    # Pixel-tile size.  TODO(synk): at real backbone sizes pick ~512-1024
    # pixels per tile (v6e/v5e) or size for 64 MiB VMEM on v7x; 128 here just
    # exercises the multi-step reduction at these toy shapes.
    hw_tile = 128 if HW % 128 == 0 else HW
    n_t = HW // hw_tile

    kernel = functools.partial(_fused_heads_kernel, channels=C, inv_hw=1.0 / HW)

    out = pl.pallas_call(
        kernel,
        out_shape=jax.ShapeDtypeStruct((B, Kp), jnp.float32),
        grid_spec=pltpu.PrefetchScalarGridSpec(
            num_scalar_prefetch=0,
            grid=(n_t,),
            in_specs=[
                pl.BlockSpec((B, C, hw_tile), lambda t: (0, 0, t)),   # x slab
                pl.BlockSpec((nb * F, C), lambda t: (0, 0)),          # wft (resident)
                pl.BlockSpec((nb * F, Kp), lambda t: (0, 0)),         # wc  (resident)
                pl.BlockSpec((1, Kp), lambda t: (0, 0)),              # bias
            ],
            out_specs=pl.BlockSpec((B, Kp), lambda t: (0, 0)),
            scratch_shapes=[pltpu.VMEM((B, nb * F), jnp.float32)],
        ),
        compiler_params=pltpu.CompilerParams(
            dimension_semantics=("arbitrary",),       # pixel axis is a reduction
            vmem_limit_bytes=32 * 1024 * 1024,
        ),
    )(x_r, wft, wc, b_sum)

    return out[:, :K]


def _reference(x_nchw, w_feat, w_cls, b_cls):
    """Plain-JAX f32 reference for the collapsed three-branch forward."""
    B, C, H, W = x_nchw.shape
    xp = jnp.transpose(x_nchw, (0, 2, 3, 1)).reshape(B, H * W, C).astype(jnp.float32)
    out = jnp.zeros((B, w_cls.shape[-1]), jnp.float32)
    for i in range(w_feat.shape[0]):
        feat = jnp.maximum(
            jnp.einsum("bpc,cf->bpf", xp, w_feat[i].astype(jnp.float32),
                       precision=jax.lax.Precision.HIGHEST),
            0.0,
        )
        pooled = feat.mean(axis=1)
        out = out + jnp.einsum("bf,fk->bk", pooled, w_cls[i].astype(jnp.float32),
                               precision=jax.lax.Precision.HIGHEST) + b_cls[i]
    return out


if __name__ == "__main__":
    # small shapes consistent with the module's forward (image classifier)
    B, C, H, W = 2, 4, 16, 16
    NUM_FTRS = 128     # stand-in for inception's fc.in_features (2048)
    NUM_CLASSES = 10

    key = jax.random.PRNGKey(0)
    kx, kf, kc, kb = jax.random.split(key, 4)
    x = jax.random.normal(kx, (B, C, H, W), jnp.float32)
    # deterministic synthetic parameters (3 branches)
    w_feat = jax.random.normal(kf, (NUM_BRANCHES, C, NUM_FTRS), jnp.float32) * 0.1
    w_cls = jax.random.normal(kc, (NUM_BRANCHES, NUM_FTRS, NUM_CLASSES), jnp.float32) * 0.1
    b_cls = jax.random.normal(kb, (NUM_BRANCHES, NUM_CLASSES), jnp.float32) * 0.1

    out = jax.block_until_ready(googlenet_model_forward(x, w_feat, w_cls, b_cls))
    ref = jax.block_until_ready(_reference(x, w_feat, w_cls, b_cls))

    assert out.shape == (B, NUM_CLASSES)
    # tolerance covers MXU f32 pass behavior on the classifier dot
    assert jnp.allclose(out, ref, atol=1e-2, rtol=1e-2), (out, ref)
    print("KERNEL_OK")
</pallas_src>

<mosaic_0001>
module attributes {stable_mosaic.version = 11 : i64} {
  func.func @_fused_heads_kernel(%arg0: i32, %arg1: memref<2x4x128xf32, #tpu.memory_space<vmem>>, %arg2: memref<384x4xf32, #tpu.memory_space<vmem>>, %arg3: memref<384x128xf32, #tpu.memory_space<vmem>>, %arg4: memref<1x128xf32, #tpu.memory_space<vmem>>, %arg5: memref<2x128xf32, #tpu.memory_space<vmem>>, %arg6: memref<2x384xf32, #tpu.memory_space<vmem>>) attributes {dimension_semantics = [#tpu.dimension_semantics<arbitrary>], iteration_bounds = array<i64: 2>, scalar_prefetch = 0 : i64, scratch_operands = 1 : i64, tpu.core_type = #tpu.core_type<tc>, window_params = [{transform_indices = @transform_0, window_bounds = array<i64: 2, 4, 128>}, {pipeline_mode = #tpu.pipeline_mode<synchronous>, transform_indices = @transform_1, window_bounds = array<i64: 384, 4>}, {pipeline_mode = #tpu.pipeline_mode<synchronous>, transform_indices = @transform_2, window_bounds = array<i64: 384, 128>}, {pipeline_mode = #tpu.pipeline_mode<synchronous>, transform_indices = @transform_3, window_bounds = array<i64: 1, 128>}, {pipeline_mode = #tpu.pipeline_mode<synchronous>, transform_indices = @transform_4, window_bounds = array<i64: 2, 128>}]} {
    %c0_i32 = arith.constant 0 : i32
    %0 = arith.cmpi eq, %arg0, %c0_i32 : i32
    %1 = arith.extui %0 : i1 to i32
    %c0_i32_0 = arith.constant 0 : i32
    %2 = arith.cmpi ne, %1, %c0_i32_0 : i32
    scf.if %2 {
      %cst_11 = arith.constant 0.000000e+00 : f32
      %41 = vector.broadcast %cst_11 : f32 to vector<2x384xf32>
      %c0_12 = arith.constant 0 : index
      %c0_13 = arith.constant 0 : index
      %42 = vector.load %arg6[%c0_12, %c0_13] : memref<2x384xf32, #tpu.memory_space<vmem>>, vector<2x384xf32>
      tpu.vector_store %arg6[%c0_12, %c0_13], %41 {strides = array<i32>} : memref<2x384xf32, #tpu.memory_space<vmem>>, vector<2x384xf32>,
    } else {
    }
    %c0 = arith.constant 0 : index
    %c0_1 = arith.constant 0 : index
    %c0_2 = arith.constant 0 : index
    %3 = vector.load %arg1[%c0, %c0_1, %c0_2] : memref<2x4x128xf32, #tpu.memory_space<vmem>>, vector<2x4x128xf32>
    %c0_3 = arith.constant 0 : index
    %c0_4 = arith.constant 0 : index
    %4 = vector.load %arg2[%c0_3, %c0_4] : memref<384x4xf32, #tpu.memory_space<vmem>>, vector<384x4xf32>
    %5 = vector.extract_strided_slice %4 {offsets = [0, 0], sizes = [384, 1], strides = [1, 1]} : vector<384x4xf32> to vector<384x1xf32>
    %6 = vector.shape_cast %5 : vector<384x1xf32> to vector<1x384x1xf32>
    %7 = vector.extract_strided_slice %3 {offsets = [0, 0, 0], sizes = [2, 1, 128], strides = [1, 1, 1]} : vector<2x4x128xf32> to vector<2x1x128xf32>
    %8 = vector.broadcast %6 : vector<1x384x1xf32> to vector<2x384x128xf32>
    %9 = vector.broadcast %7 : vector<2x1x128xf32> to vector<2x384x128xf32>
    %10 = arith.mulf %8, %9 : vector<2x384x128xf32>
    %11 = vector.extract_strided_slice %4 {offsets = [0, 1], sizes = [384, 1], strides = [1, 1]} : vector<384x4xf32> to vector<384x1xf32>
    %12 = vector.shape_cast %11 : vector<384x1xf32> to vector<1x384x1xf32>
    %13 = vector.extract_strided_slice %3 {offsets = [0, 1, 0], sizes = [2, 1, 128], strides = [1, 1, 1]} : vector<2x4x128xf32> to vector<2x1x128xf32>
    %14 = vector.broadcast %12 : vector<1x384x1xf32> to vector<2x384x128xf32>
    %15 = vector.broadcast %13 : vector<2x1x128xf32> to vector<2x384x128xf32>
    %16 = arith.mulf %14, %15 : vector<2x384x128xf32>
    %17 = arith.addf %10, %16 : vector<2x384x128xf32>
    %18 = vector.extract_strided_slice %4 {offsets = [0, 2], sizes = [384, 1], strides = [1, 1]} : vector<384x4xf32> to vector<384x1xf32>
    %19 = vector.shape_cast %18 : vector<384x1xf32> to vector<1x384x1xf32>
    %20 = vector.extract_strided_slice %3 {offsets = [0, 2, 0], sizes = [2, 1, 128], strides = [1, 1, 1]} : vector<2x4x128xf32> to vector<2x1x128xf32>
    %21 = vector.broadcast %19 : vector<1x384x1xf32> to vector<2x384x128xf32>
    %22 = vector.broadcast %20 : vector<2x1x128xf32> to vector<2x384x128xf32>
    %23 = arith.mulf %21, %22 : vector<2x384x128xf32>
    %24 = arith.addf %17, %23 : vector<2x384x128xf32>
    %25 = vector.extract_strided_slice %4 {offsets = [0, 3], sizes = [384, 1], strides = [1, 1]} : vector<384x4xf32> to vector<384x1xf32>
    %26 = vector.shape_cast %25 : vector<384x1xf32> to vector<1x384x1xf32>
    %27 = vector.extract_strided_slice %3 {offsets = [0, 3, 0], sizes = [2, 1, 128], strides = [1, 1, 1]} : vector<2x4x128xf32> to vector<2x1x128xf32>
    %28 = vector.broadcast %26 : vector<1x384x1xf32> to vector<2x384x128xf32>
    %29 = vector.broadcast %27 : vector<2x1x128xf32> to vector<2x384x128xf32>
    %30 = arith.mulf %28, %29 : vector<2x384x128xf32>
    %31 = arith.addf %24, %30 : vector<2x384x128xf32>
    %cst = arith.constant 0.000000e+00 : f32
    %32 = vector.broadcast %cst : f32 to vector<2x384x128xf32>
    %33 = arith.maximumf %31, %32 : vector<2x384x128xf32>
    %c0_5 = arith.constant 0 : index
    %c0_6 = arith.constant 0 : index
    %34 = vector.load %arg6[%c0_5, %c0_6] : memref<2x384xf32, #tpu.memory_space<vmem>>, vector<2x384xf32>
    %cst_7 = arith.constant dense<0.000000e+00> : vector<2x384xf32>
    %35 = vector.multi_reduction <add>, %33, %cst_7 [2] : vector<2x384x128xf32> to vector<2x384xf32>
    %36 = arith.addf %34, %35 : vector<2x384xf32>
    %c0_8 = arith.constant 0 : index
    %c0_9 = arith.constant 0 : index
    %37 = vector.load %arg6[%c0_8, %c0_9] : memref<2x384xf32, #tpu.memory_space<vmem>>, vector<2x384xf32>
    tpu.vector_store %arg6[%c0_8, %c0_9], %36 {strides = array<i32>} : memref<2x384xf32, #tpu.memory_space<vmem>>, vector<2x384xf32>,
    %c1_i32 = arith.constant 1 : i32
    %38 = arith.cmpi eq, %arg0, %c1_i32 : i32
    %39 = arith.extui %38 : i1 to i32
    %c0_i32_10 = arith.constant 0 : i32
    %40 = arith.cmpi ne, %39, %c0_i32_10 : i32
    scf.if %40 {
      %c0_11 = arith.constant 0 : index
      %c0_12 = arith.constant 0 : index
      %41 = vector.load %arg6[%c0_11, %c0_12] : memref<2x384xf32, #tpu.memory_space<vmem>>, vector<2x384xf32>
      %cst_13 = arith.constant 3.906250e-03 : f32
      %42 = vector.broadcast %cst_13 : f32 to vector<2x384xf32>
      %43 = arith.mulf %41, %42 : vector<2x384xf32>
      %c0_14 = arith.constant 0 : index
      %c0_15 = arith.constant 0 : index
      %44 = vector.load %arg3[%c0_14, %c0_15] : memref<384x128xf32, #tpu.memory_space<vmem>>, vector<384x128xf32>
      %cst_16 = arith.constant dense<0.000000e+00> : vector<2x128xf32>
      %45 = tpu.matmul %43, %44, %cst_16 {dimension_numbers = #tpu.dot_dimension_numbers<[1], [0], [0], [1], [0, 0, 1, 1], [], []>} : vector<2x384xf32>, vector<384x128xf32>, vector<2x128xf32> -> vector<2x128xf32>
      %c0_17 = arith.constant 0 : index
      %c0_18 = arith.constant 0 : index
      %46 = vector.load %arg4[%c0_17, %c0_18] : memref<1x128xf32, #tpu.memory_space<vmem>>, vector<1x128xf32>
      %47 = vector.broadcast %46 : vector<1x128xf32> to vector<2x128xf32>
      %48 = arith.addf %45, %47 : vector<2x128xf32>
      %c0_19 = arith.constant 0 : index
      %c0_20 = arith.constant 0 : index
      %49 = vector.load %arg5[%c0_19, %c0_20] : memref<2x128xf32, #tpu.memory_space<vmem>>, vector<2x128xf32>
      tpu.vector_store %arg5[%c0_19, %c0_20], %48 {strides = array<i32>} : memref<2x128xf32, #tpu.memory_space<vmem>>, vector<2x128xf32>,
    } else {
    }
    return
  }
  func.func @transform_0(%arg0: i32) -> (i32, i32, i32) {
    %c0_i32 = arith.constant 0 : i32
    %c0_i32_0 = arith.constant 0 : i32
    %c0_i32_1 = arith.constant 0 : i32
    return %c0_i32, %c0_i32_0, %arg0 : i32, i32, i32
  }
  func.func @transform_1(%arg0: i32) -> (i32, i32) {
    %c0_i32 = arith.constant 0 : i32
    %c0_i32_0 = arith.constant 0 : i32
    %c0_i32_1 = arith.constant 0 : i32
    return %c0_i32, %c0_i32_0 : i32, i32
  }
  func.func @transform_2(%arg0: i32) -> (i32, i32) {
    %c0_i32 = arith.constant 0 : i32
    %c0_i32_0 = arith.constant 0 : i32
    %c0_i32_1 = arith.constant 0 : i32
    return %c0_i32, %c0_i32_0 : i32, i32
  }
  func.func @transform_3(%arg0: i32) -> (i32, i32) {
    %c0_i32 = arith.constant 0 : i32
    %c0_i32_0 = arith.constant 0 : i32
    %c0_i32_1 = arith.constant 0 : i32
    return %c0_i32, %c0_i32_0 : i32, i32
  }
  func.func @transform_4(%arg0: i32) -> (i32, i32) {
    %c0_i32 = arith.constant 0 : i32
    %c0_i32_0 = arith.constant 0 : i32
    %c0_i32_1 = arith.constant 0 : i32
    return %c0_i32, %c0_i32_0 : i32, i32
  }
}

</mosaic_0001>

<llo_original>
// kernel: tpu_custom_call.1
$region0: #{tpu_custom_call.1}
  #allocation0 [shape = 'u32[]', space=smem, size = 0x4, offset = 0x4, fixed_abs, tag = 'smem constant byte address 0x4 - core index']
  #allocation1 [shape = 'u32[72,128]{1,0:T(1,128)}', space=vmem, size = 0x9000, scoped, tag = 'internal scratch']
  #allocation2 [shape = 'f32[2,384]{1,0:T(2,128)}', space=vmem, size = 0xc00, scoped, tag = 'scratch operand']
  %s0 = inlined_call_operand.hbm [shape: f32[2,4,256], index: 0, kind: input, shape index: {}]
  %s1 = inlined_call_operand.vmem [shape: f32[384,4], index: 1, kind: input, shape index: {}]
  %s2 = inlined_call_operand.vmem [shape: f32[384,128], index: 2, kind: input, shape index: {}]
  %s3 = inlined_call_operand.vmem [shape: f32[1,128], index: 3, kind: input, shape index: {}]
  %s4 = inlined_call_operand.hbm [shape: f32[2,128], index: 4, kind: output, shape index: {}]
  %s5 = sld [smem:[#allocation0]]
  $region61: #{tpu_custom_call.1} parent=0
    _
  %s7 = ssub.s32 1, %s5
  %s8 = scalar_select 0, %s7, %s5
  $region1: #{tpu_custom_call.1} parent=0
    #allocation3 [shape = 'u8[8192]{0}', space=vmem, size = 0x2000, scoped, tag = 'input window, operand 0']
    #allocation4 [shape = 's32[2]{0}', space=sflag, size = 0x8, scoped, tag = 'scoped memory for tpu_custom_call.1']
    #allocation5 [shape = 's32[2]{0}', space=sflag, size = 0x8, scoped, tag = 'scoped memory for tpu_custom_call.1']
    #allocation6 [shape = 'u8[1024]{0}', space=vmem, size = 0x400, scoped, tag = 'output window, operand 0, single buffered']
    %9 = vsyncpa [#allocation4], 0
    %s10 = scalar_lea.sflag [#allocation4], 1
    %11 = vsyncpa %s10, 0
    %12 = vsyncpa [#allocation5], 0
    loop: start=0, step=1, limit=4
    $region2: #{tpu_custom_call.1} parent=1 // loop_pre_header
      _
    $region3: #{tpu_custom_call.1} parent=1 // loop_header
      %s14 = sphi 0, %s18
      %p15 = scmp.ge.s32.totalorder %s14, 4
      %s24 = sphi 0, %s26
      %s27 = sphi 0, %s24
      %s28 = sphi 0, %s27
      %s44 = sphi 0, %s28
      %s48 = sphi 0, %s48
      %s50 = sphi 0, %s48
      %s51 = sphi 0, %s50
      %s65 = sphi 0, %s51
      %s69 = sphi 0, %s69
      %s71 = sphi 0, %s69
      %s72 = sphi 0, %s71
      %s86 = sphi 0, %s72
      %s90 = sphi 0, %s90
      %s92 = sphi 0, %s90
      %s93 = sphi 0, %s92
      %s107 = sphi 0, %s93
      %s111 = sphi 0, %s111
      %s113 = sphi 0, %s111
      %s114 = sphi 0, %s113
      %s128 = sphi 0, %s114
    $region4: #{tpu_custom_call.1} parent=1 // loop_header_branch
      %17 = sbr.rel (%p15) target = $region8
    $region5: #{tpu_custom_call.1} parent=1 // loop_body
      %s19 = ssub.s32 %s14, 1
      %s20 = ssub.s32 %s14, 2
      %s21 = sadd.s32 %s14, 1
      %s22 = ssub.s32 %s14, %s21
      %p23 = scmp.eq.s32.totalorder %s22, 0
      %s25 = sadd.s32 %s24, 1
      %s26 = scalar_select %p23, %s24, %s25
      %p29 = pneg %p23
      %p30 = scmp.eq.s32.totalorder %s14, 1
      %p31 = por %p29, %p30
      %p32 = scmp.ne.s32.totalorder %s24, %s27
      %p33 = scmp.eq.s32.totalorder %s14, 0
      %p34 = por %p32, %p33
      %p35 = scmp.ne.s32.totalorder %s24, %s27
      %p36 = scmp.eq.s32.totalorder %s19, 1
      %p37 = por %p35, %p36
      %p38 = scmp.ne.s32.totalorder %s27, %s28
      %p39 = scmp.eq.s32.totalorder %s19, 0
      %p40 = por %p38, %p39
      %p41 = scmp.ne.s32.totalorder %s27, %s28
      %p42 = scmp.eq.s32.totalorder %s20, 1
      %p43 = por %p41, %p42
      %p45 = scmp.ne.s32.totalorder %s28, %s44
      %p46 = scmp.eq.s32.totalorder %s20, 0
      %p47 = por %p45, %p46
      %s49 = sadd.s32 %s48, 1
      %p52 = scmp.eq.s32.totalorder %s14, 1
      %p53 = scmp.ne.s32.totalorder %s48, %s50
      %p54 = scmp.eq.s32.totalorder %s14, 0
      %p55 = por %p53, %p54
      %p56 = scmp.ne.s32.totalorder %s48, %s50
      %p57 = scmp.eq.s32.totalorder %s19, 1
      %p58 = por %p56, %p57
      %p59 = scmp.ne.s32.totalorder %s50, %s51
      %p60 = scmp.eq.s32.totalorder %s19, 0
      %p61 = por %p59, %p60
      %p62 = scmp.ne.s32.totalorder %s50, %s51
      %p63 = scmp.eq.s32.totalorder %s20, 1
      %p64 = por %p62, %p63
      %p66 = scmp.ne.s32.totalorder %s51, %s65
      %p67 = scmp.eq.s32.totalorder %s20, 0
      %p68 = por %p66, %p67
      %s70 = sadd.s32 %s69, 1
      %p73 = scmp.eq.s32.totalorder %s14, 1
      %p74 = scmp.ne.s32.totalorder %s69, %s71
      %p75 = scmp.eq.s32.totalorder %s14, 0
      %p76 = por %p74, %p75
      %p77 = scmp.ne.s32.totalorder %s69, %s71
      %p78 = scmp.eq.s32.totalorder %s19, 1
      %p79 = por %p77, %p78
      %p80 = scmp.ne.s32.totalorder %s71, %s72
      %p81 = scmp.eq.s32.totalorder %s19, 0
      %p82 = por %p80, %p81
      %p83 = scmp.ne.s32.totalorder %s71, %s72
      %p84 = scmp.eq.s32.totalorder %s20, 1
      %p85 = por %p83, %p84
      %p87 = scmp.ne.s32.totalorder %s72, %s86
      %p88 = scmp.eq.s32.totalorder %s20, 0
      %p89 = por %p87, %p88
      %s91 = sadd.s32 %s90, 1
      %p94 = scmp.eq.s32.totalorder %s14, 1
      %p95 = scmp.ne.s32.totalorder %s90, %s92
      %p96 = scmp.eq.s32.totalorder %s14, 0
      %p97 = por %p95, %p96
      %p98 = scmp.ne.s32.totalorder %s90, %s92
      %p99 = scmp.eq.s32.totalorder %s19, 1
      %p100 = por %p98, %p99
      %p101 = scmp.ne.s32.totalorder %s92, %s93
      %p102 = scmp.eq.s32.totalorder %s19, 0
      %p103 = por %p101, %p102
      %p104 = scmp.ne.s32.totalorder %s92, %s93
      %p105 = scmp.eq.s32.totalorder %s20, 1
      %p106 = por %p104, %p105
      %p108 = scmp.ne.s32.totalorder %s93, %s107
      %p109 = scmp.eq.s32.totalorder %s20, 0
      %p110 = por %p108, %p109
      %s112 = sadd.s32 %s111, 1
      %p115 = scmp.eq.s32.totalorder %s14, 1
      %p116 = scmp.ne.s32.totalorder %s111, %s113
      %p117 = scmp.eq.s32.totalorder %s14, 0
      %p118 = por %p116, %p117
      %p119 = scmp.ne.s32.totalorder %s111, %s113
      %p120 = scmp.eq.s32.totalorder %s19, 1
      %p121 = por %p119, %p120
      %p122 = scmp.ne.s32.totalorder %s113, %s114
      %p123 = scmp.eq.s32.totalorder %s19, 0
      %p124 = por %p122, %p123
      %p125 = scmp.ne.s32.totalorder %s113, %s114
      %p126 = scmp.eq.s32.totalorder %s20, 1
      %p127 = por %p125, %p126
      %p129 = scmp.ne.s32.totalorder %s114, %s128
      %p130 = scmp.eq.s32.totalorder %s20, 0
      %p131 = por %p129, %p130
      %p132 = scmp.le.s32.totalorder 1, %s14
      %p133 = scmp.lt.s32.totalorder %s14, 3
      %p134 = pnand %p132, %p133
      %p135 = pneg %p134
      // Predicated region
      $region9: #{tpu_custom_call.1} parent=5 // pred_check
        _
      $region10: #{tpu_custom_call.1} parent=5 // pred_check_branch
        %137 = sbr.rel (%p134) target = $region12
      $region11: #{tpu_custom_call.1} parent=5 // pred_region
        %s138 = ssub.s32 %s14, 1
        // Predicated region
        $region13: #{tpu_custom_call.1} parent=11 // pred_check
          %p139 = pneg %p61
        $region14: #{tpu_custom_call.1} parent=11 // pred_check_branch
          %141 = sbr.rel (%p139) target = $region16
        $region15: #{tpu_custom_call.1} parent=11 // pred_region
          _
        $region16: #{tpu_custom_call.1} parent=11 // pred_fallthru
          _
        // Predicated region
        $region17: #{tpu_custom_call.1} parent=11 // pred_check
          %p142 = pneg %p82
        $region18: #{tpu_custom_call.1} parent=11 // pred_check_branch
          %144 = sbr.rel (%p142) target = $region20
        $region19: #{tpu_custom_call.1} parent=11 // pred_region
          _
        $region20: #{tpu_custom_call.1} parent=11 // pred_fallthru
          _
        // Predicated region
        $region21: #{tpu_custom_call.1} parent=11 // pred_check
          %p145 = pneg %p103
        $region22: #{tpu_custom_call.1} parent=11 // pred_check_branch
          %147 = sbr.rel (%p145) target = $region24
        $region23: #{tpu_custom_call.1} parent=11 // pred_region
          _
        $region24: #{tpu_custom_call.1} parent=11 // pred_fallthru
          _
      $region12: #{tpu_custom_call.1} parent=5 // pred_fallthru
        _
      %p148 = scmp.lt.s32.totalorder %s14, 2
      // Predicated region
      $region25: #{tpu_custom_call.1} parent=5 // pred_check
        %p149 = pneg %p148
      $region26: #{tpu_custom_call.1} parent=5 // pred_check_branch
        %151 = sbr.rel (%p149) target = $region28
      $region27: #{tpu_custom_call.1} parent=5 // pred_region
        // Predicated region
        $region29: #{tpu_custom_call.1} parent=27 // pred_check
          %p152 = pneg %p34
        $region30: #{tpu_custom_call.1} parent=27 // pred_check_branch
          %154 = sbr.rel (%p152) target = $region32
        $region31: #{tpu_custom_call.1} parent=27 // pred_region
          %s155 = sand.u32 %s24, 1
          %s156 = scalar_lea.sflag [#allocation4], %s155
          %s157 = sand.u32 %s24, 1
          %s158 = smul.addr %s157, 8
          %s159 = scalar_lea.vmem [#allocation3], %s158
          %161 = vsyncadd %s156, 0
          %s162 = smul.addr %s14, 4
          %s163 = scalar_lea.hbm %s0, %s162
          %s164 = sshll.u32 %s163, 4
          %s165 = int_to_ptr.hbm [resolvable:$true] %s164
          %s166 = sshll.u32 %s159, 4
          %s167 = int_to_ptr.vmem [resolvable:$true] %s166
          %172 = dma.hbm_to_vmem [thread:$0]  %s165, 128, %s167, %s156, 128, 64, 4
        $region32: #{tpu_custom_call.1} parent=27 // pred_fallthru
          _
      $region28: #{tpu_custom_call.1} parent=5 // pred_fallthru
        _
      %p173 = scmp.le.s32.totalorder 1, %s14
      %p174 = scmp.lt.s32.totalorder %s14, 3
      %p175 = pnand %p173, %p174
      %p176 = pneg %p175
      // Predicated region
      $region33: #{tpu_custom_call.1} parent=5 // pred_check
        _
      $region34: #{tpu_custom_call.1} parent=5 // pred_check_branch
        %178 = sbr.rel (%p175) target = $region36
      $region35: #{tpu_custom_call.1} parent=5 // pred_region
        %s179 = ssub.s32 %s14, 1
        %s180 = sand.u32 %s27, 1
        %s181 = scalar_lea.sflag [#allocation4], %s180
        %s182 = sand.u32 %s27, 1
        %s183 = smul.addr %s182, 8
        %s184 = scalar_lea.vmem [#allocation3], %s183
        // Predicated region
        $region37: #{tpu_custom_call.1} parent=35 // pred_check
          %p185 = pneg %p40
        $region38: #{tpu_custom_call.1} parent=35 // pred_check_branch
          %187 = sbr.rel (%p185) target = $region40
        $region39: #{tpu_custom_call.1} parent=35 // pred_region
          %189 = dma.done %s181, 128
        $region40: #{tpu_custom_call.1} parent=35 // pred_fallthru
          _
        %s190 = sand.u32 %s27, 1
        %s191 = scalar_lea.sflag [#allocation4], %s190
        %s192 = sand.u32 %s27, 1
        %s193 = smul.addr %s192, 8
        %s194 = scalar_lea.vmem [#allocation3], %s193
        %p195 = pneg %p40
        %p196 = pneg %p37
        %p197 = pneg %p61
        %p198 = pneg %p58
        %p199 = pneg %p82
        %p200 = pneg %p79
        %p201 = pneg %p103
        %p202 = pneg %p100
        %p203 = pneg %p124
        %p204 = pneg %p121
        %p205 = scmp.eq.s32.totalorder %s19, 0
        // Predicated region
        $region41: #{tpu_custom_call.1} parent=35 // pred_check
          %p206 = pneg %p205
        $region42: #{tpu_custom_call.1} parent=35 // pred_check_branch
          %208 = sbr.rel (%p206) target = $region44
        $region43: #{tpu_custom_call.1} parent=35 // pred_region
          %209 = vst [vmem:[#allocation2] sm:$0x3f] 0.0
        $region44: #{tpu_custom_call.1} parent=35 // pred_fallthru
          _
        %v210 = vld [vmem:[%s184] sm:$0xf]
        %v211 = vld [vmem:[%s184 + $0x4] sm:$0xf]
        %v212 = vld [vmem:[%s1] sm:$0xff]
        %v213 = vld [vmem:[%s1 + $0x8] sm:$0xff]
        %v214 = vld [vmem:[%s1 + $0x10] sm:$0xff]
        %v215 = vld [vmem:[%s1 + $0x18] sm:$0xff]
        %v216 = vld [vmem:[%s1 + $0x20] sm:$0xff]
        %v217 = vld [vmem:[%s1 + $0x28] sm:$0xff]
        %v218 = vld [vmem:[%s1 + $0x30] sm:$0xff]
        %v219 = vld [vmem:[%s1 + $0x38] sm:$0xff]
        %v220 = vld [vmem:[%s1 + $0x40] sm:$0xff]
        %v221 = vld [vmem:[%s1 + $0x48] sm:$0xff]
        %v222 = vld [vmem:[%s1 + $0x50] sm:$0xff]
        %v223 = vld [vmem:[%s1 + $0x58] sm:$0xff]
        %v224 = vld [vmem:[%s1 + $0x60] sm:$0xff]
        %v225 = vld [vmem:[%s1 + $0x68] sm:$0xff]
        %v226 = vld [vmem:[%s1 + $0x70] sm:$0xff]
        %v227 = vld [vmem:[%s1 + $0x78] sm:$0xff]
        %v228 = vld [vmem:[%s1 + $0x80] sm:$0xff]
        %v229 = vld [vmem:[%s1 + $0x88] sm:$0xff]
        %v230 = vld [vmem:[%s1 + $0x90] sm:$0xff]
        %v231 = vld [vmem:[%s1 + $0x98] sm:$0xff]
        %v232 = vld [vmem:[%s1 + $0xa0] sm:$0xff]
        %v233 = vld [vmem:[%s1 + $0xa8] sm:$0xff]
        %v234 = vld [vmem:[%s1 + $0xb0] sm:$0xff]
        %v235 = vld [vmem:[%s1 + $0xb8] sm:$0xff]
        %v236 = vld [vmem:[%s1 + $0xc0] sm:$0xff]
        %v237 = vld [vmem:[%s1 + $0xc8] sm:$0xff]
        %v238 = vld [vmem:[%s1 + $0xd0] sm:$0xff]
        %v239 = vld [vmem:[%s1 + $0xd8] sm:$0xff]
        %v240 = vld [vmem:[%s1 + $0xe0] sm:$0xff]
        %v241 = vld [vmem:[%s1 + $0xe8] sm:$0xff]
        %v242 = vld [vmem:[%s1 + $0xf0] sm:$0xff]
        %v243 = vld [vmem:[%s1 + $0xf8] sm:$0xff]
        %v244 = vld [vmem:[%s1 + $0x100] sm:$0xff]
        %v245 = vld [vmem:[%s1 + $0x108] sm:$0xff]
        %v246 = vld [vmem:[%s1 + $0x110] sm:$0xff]
        %v247 = vld [vmem:[%s1 + $0x118] sm:$0xff]
        %v248 = vld [vmem:[%s1 + $0x120] sm:$0xff]
        %v249 = vld [vmem:[%s1 + $0x128] sm:$0xff]
        %v250 = vld [vmem:[%s1 + $0x130] sm:$0xff]
        %v251 = vld [vmem:[%s1 + $0x138] sm:$0xff]
        %v252 = vld [vmem:[%s1 + $0x140] sm:$0xff]
        %v253 = vld [vmem:[%s1 + $0x148] sm:$0xff]
        %v254 = vld [vmem:[%s1 + $0x150] sm:$0xff]
        %v255 = vld [vmem:[%s1 + $0x158] sm:$0xff]
        %v256 = vld [vmem:[%s1 + $0x160] sm:$0xff]
        %v257 = vld [vmem:[%s1 + $0x168] sm:$0xff]
        %v258 = vld [vmem:[%s1 + $0x170] sm:$0xff]
        %v259 = vld [vmem:[%s1 + $0x178] sm:$0xff]
        %261 = vset.pattern.permute.xlu0 0
        %262 = vperm.xlu0 %261, %v212
        %v263 = vpop.permute.xlu0 %262
        %266 = vset.pattern.permute.xlu0 0
        %267 = vperm.xlu0 %266, %v213
        %v268 = vpop.permute.xlu0 %267
        %271 = vset.pattern.permute.xlu0 0
        %272 = vperm.xlu0 %271, %v214
        %v273 = vpop.permute.xlu0 %272
        %276 = vset.pattern.permute.xlu0 0
        %277 = vperm.xlu0 %276, %v215
        %v278 = vpop.permute.xlu0 %277
        %281 = vset.pattern.permute.xlu0 0
        %282 = vperm.xlu0 %281, %v216
        %v283 = vpop.permute.xlu0 %282
        %286 = vset.pattern.permute.xlu0 0
        %287 = vperm.xlu0 %286, %v217
        %v288 = vpop.permute.xlu0 %287
        %291 = vset.pattern.permute.xlu0 0
        %292 = vperm.xlu0 %291, %v218
        %v293 = vpop.permute.xlu0 %292
        %296 = vset.pattern.permute.xlu0 0
        %297 = vperm.xlu0 %296, %v219
        %v298 = vpop.permute.xlu0 %297
        %301 = vset.pattern.permute.xlu0 0
        %302 = vperm.xlu0 %301, %v220
        %v303 = vpop.permute.xlu0 %302
        %306 = vset.pattern.permute.xlu0 0
        %307 = vperm.xlu0 %306, %v221
        %v308 = vpop.permute.xlu0 %307
        %311 = vset.pattern.permute.xlu0 0
        %312 = vperm.xlu0 %311, %v222
        %v313 = vpop.permute.xlu0 %312
        %316 = vset.pattern.permute.xlu0 0
        %317 = vperm.xlu0 %316, %v223
        %v318 = vpop.permute.xlu0 %317
        %321 = vset.pattern.permute.xlu0 0
        %322 = vperm.xlu0 %321, %v224
        %v323 = vpop.permute.xlu0 %322
        %326 = vset.pattern.permute.xlu0 0
        %327 = vperm.xlu0 %326, %v225
        %v328 = vpop.permute.xlu0 %327
        %331 = vset.pattern.permute.xlu0 0
        %332 = vperm.xlu0 %331, %v226
        %v333 = vpop.permute.xlu0 %332
        %336 = vset.pattern.permute.xlu0 0
        %337 = vperm.xlu0 %336, %v227
        %v338 = vpop.permute.xlu0 %337
        %341 = vset.pattern.permute.xlu0 0
        %342 = vperm.xlu0 %341, %v228
        %v343 = vpop.permute.xlu0 %342
        %346 = vset.pattern.permute.xlu0 0
        %347 = vperm.xlu0 %346, %v229
        %v348 = vpop.permute.xlu0 %347
        %351 = vset.pattern.permute.xlu0 0
        %352 = vperm.xlu0 %351, %v230
        %v353 = vpop.permute.xlu0 %352
        %356 = vset.pattern.permute.xlu0 0
        %357 = vperm.xlu0 %356, %v231
        %v358 = vpop.permute.xlu0 %357
        %361 = vset.pattern.permute.xlu0 0
        %362 = vperm.xlu0 %361, %v232
        %v363 = vpop.permute.xlu0 %362
        %366 = vset.pattern.permute.xlu0 0
        %367 = vperm.xlu0 %366, %v233
        %v368 = vpop.permute.xlu0 %367
        %371 = vset.pattern.permute.xlu0 0
        %372 = vperm.xlu0 %371, %v234
        %v373 = vpop.permute.xlu0 %372
        %376 = vset.pattern.permute.xlu0 0
        %377 = vperm.xlu0 %376, %v235
        %v378 = vpop.permute.xlu0 %377
        %381 = vset.pattern.permute.xlu0 0
        %382 = vperm.xlu0 %381, %v236
        %v383 = vpop.permute.xlu0 %382
        %386 = vset.pattern.permute.xlu0 0
        %387 = vperm.xlu0 %386, %v237
        %v388 = vpop.permute.xlu0 %387
        %391 = vset.pattern.permute.xlu0 0
        %392 = vperm.xlu0 %391, %v238
        %v393 = vpop.permute.xlu0 %392
        %396 = vset.pattern.permute.xlu0 0
        %397 = vperm.xlu0 %396, %v239
        %v398 = vpop.permute.xlu0 %397
        %401 = vset.pattern.permute.xlu0 0
        %402 = vperm.xlu0 %401, %v240
        %v403 = vpop.permute.xlu0 %402
        %406 = vset.pattern.permute.xlu0 0
        %407 = vperm.xlu0 %406, %v241
        %v408 = vpop.permute.xlu0 %407
        %411 = vset.pattern.permute.xlu0 0
        %412 = vperm.xlu0 %411, %v242
        %v413 = vpop.permute.xlu0 %412
        %416 = vset.pattern.permute.xlu0 0
        %417 = vperm.xlu0 %416, %v243
        %v418 = vpop.permute.xlu0 %417
        %421 = vset.pattern.permute.xlu0 0
        %422 = vperm.xlu0 %421, %v244
        %v423 = vpop.permute.xlu0 %422
        %426 = vset.pattern.permute.xlu0 0
        %427 = vperm.xlu0 %426, %v245
        %v428 = vpop.permute.xlu0 %427
        %431 = vset.pattern.permute.xlu0 0
        %432 = vperm.xlu0 %431, %v246
        %v433 = vpop.permute.xlu0 %432
        %436 = vset.pattern.permute.xlu0 0
        %437 = vperm.xlu0 %436, %v247
        %v438 = vpop.permute.xlu0 %437
        %441 = vset.pattern.permute.xlu0 0
        %442 = vperm.xlu0 %441, %v248
        %v443 = vpop.permute.xlu0 %442
        %446 = vset.pattern.permute.xlu0 0
        %447 = vperm.xlu0 %446, %v249
        %v448 = vpop.permute.xlu0 %447
        %451 = vset.pattern.permute.xlu0 0
        %452 = vperm.xlu0 %451, %v250
        %v453 = vpop.permute.xlu0 %452
        %456 = vset.pattern.permute.xlu0 0
        %457 = vperm.xlu0 %456, %v251
        %v458 = vpop.permute.xlu0 %457
        %461 = vset.pattern.permute.xlu0 0
        %462 = vperm.xlu0 %461, %v252
        %v463 = vpop.permute.xlu0 %462
        %466 = vset.pattern.permute.xlu0 0
        %467 = vperm.xlu0 %466, %v253
        %v468 = vpop.permute.xlu0 %467
        %471 = vset.pattern.permute.xlu0 0
        %472 = vperm.xlu0 %471, %v254
        %v473 = vpop.permute.xlu0 %472
        %476 = vset.pattern.permute.xlu0 0
        %477 = vperm.xlu0 %476, %v255
        %v478 = vpop.permute.xlu0 %477
        %481 = vset.pattern.permute.xlu0 0
        %482 = vperm.xlu0 %481, %v256
        %v483 = vpop.permute.xlu0 %482
        %486 = vset.pattern.permute.xlu0 0
        %487 = vperm.xlu0 %486, %v257
        %v488 = vpop.permute.xlu0 %487
        %491 = vset.pattern.permute.xlu0 0
        %492 = vperm.xlu0 %491, %v258
        %v493 = vpop.permute.xlu0 %492
        %496 = vset.pattern.permute.xlu0 0
        %497 = vperm.xlu0 %496, %v259
        %v498 = vpop.permute.xlu0 %497
        %v500 = vperm.slane %v210, 0
        %v501 = vperm.slane %v211, 0
        %v502 = vmul.f32 %v263, %v500
        %v503 = vmul.f32 %v268, %v500
        %v504 = vmul.f32 %v273, %v500
        %v505 = vmul.f32 %v278, %v500
        %v506 = vmul.f32 %v283, %v500
        %v507 = vmul.f32 %v288, %v500
        %v508 = vmul.f32 %v293, %v500
        %v509 = vmul.f32 %v298, %v500
        %v510 = vmul.f32 %v303, %v500
        %v511 = vmul.f32 %v308, %v500
        %v512 = vmul.f32 %v313, %v500
        %v513 = vmul.f32 %v318, %v500
        %v514 = vmul.f32 %v323, %v500
        %v515 = vmul.f32 %v328, %v500
        %v516 = vmul.f32 %v333, %v500
        %v517 = vmul.f32 %v338, %v500
        %v518 = vmul.f32 %v343, %v500
        %v519 = vmul.f32 %v348, %v500
        %v520 = vmul.f32 %v353, %v500
        %v521 = vmul.f32 %v358, %v500
        %v522 = vmul.f32 %v363, %v500
        %v523 = vmul.f32 %v368, %v500
        %v524 = vmul.f32 %v373, %v500
        %v525 = vmul.f32 %v378, %v500
        %v526 = vmul.f32 %v383, %v500
        %v527 = vmul.f32 %v388, %v500
        %v528 = vmul.f32 %v393, %v500
        %v529 = vmul.f32 %v398, %v500
        %v530 = vmul.f32 %v403, %v500
        %v531 = vmul.f32 %v408, %v500
        %v532 = vmul.f32 %v413, %v500
        %v533 = vmul.f32 %v418, %v500
        %v534 = vmul.f32 %v423, %v500
        %v535 = vmul.f32 %v428, %v500
        %v536 = vmul.f32 %v433, %v500
        %v537 = vmul.f32 %v438, %v500
        %v538 = vmul.f32 %v443, %v500
        %v539 = vmul.f32 %v448, %v500
        %v540 = vmul.f32 %v453, %v500
        %v541 = vmul.f32 %v458, %v500
        %v542 = vmul.f32 %v463, %v500
        %v543 = vmul.f32 %v468, %v500
        %v544 = vmul.f32 %v473, %v500
        %v545 = vmul.f32 %v478, %v500
        %v546 = vmul.f32 %v483, %v500
        %v547 = vmul.f32 %v488, %v500
        %v548 = vmul.f32 %v493, %v500
        %v549 = vmul.f32 %v498, %v500
        %v550 = vmul.f32 %v263, %v501
        %v551 = vmul.f32 %v268, %v501
        %v552 = vmul.f32 %v273, %v501
        %v553 = vmul.f32 %v278, %v501
        %v554 = vmul.f32 %v283, %v501
        %v555 = vmul.f32 %v288, %v501
        %v556 = vmul.f32 %v293, %v501
        %v557 = vmul.f32 %v298, %v501
        %v558 = vmul.f32 %v303, %v501
        %v559 = vmul.f32 %v308, %v501
        %v560 = vmul.f32 %v313, %v501
        %v561 = vmul.f32 %v318, %v501
        %v562 = vmul.f32 %v323, %v501
        %v563 = vmul.f32 %v328, %v501
        %v564 = vmul.f32 %v333, %v501
        %v565 = vmul.f32 %v338, %v501
        %v566 = vmul.f32 %v343, %v501
        %v567 = vmul.f32 %v348, %v501
        %v568 = vmul.f32 %v353, %v501
        %v569 = vmul.f32 %v358, %v501
        %v570 = vmul.f32 %v363, %v501
        %v571 = vmul.f32 %v368, %v501
        %v572 = vmul.f32 %v373, %v501
        %v573 = vmul.f32 %v378, %v501
        %v574 = vmul.f32 %v383, %v501
        %v575 = vmul.f32 %v388, %v501
        %v576 = vmul.f32 %v393, %v501
        %v577 = vmul.f32 %v398, %v501
        %v578 = vmul.f32 %v403, %v501
        %v579 = vmul.f32 %v408, %v501
        %v580 = vmul.f32 %v413, %v501
        %v581 = vmul.f32 %v418, %v501
        %v582 = vmul.f32 %v423, %v501
        %v583 = vmul.f32 %v428, %v501
        %v584 = vmul.f32 %v433, %v501
        %v585 = vmul.f32 %v438, %v501
        %v586 = vmul.f32 %v443, %v501
        %v587 = vmul.f32 %v448, %v501
        %v588 = vmul.f32 %v453, %v501
        %v589 = vmul.f32 %v458, %v501
        %v590 = vmul.f32 %v463, %v501
        %v591 = vmul.f32 %v468, %v501
        %v592 = vmul.f32 %v473, %v501
        %v593 = vmul.f32 %v478, %v501
        %v594 = vmul.f32 %v483, %v501
        %v595 = vmul.f32 %v488, %v501
        %v596 = vmul.f32 %v493, %v501
        %v597 = vmul.f32 %v498, %v501
        %598 = vset.pattern.permute.xlu0 1
        %599 = vperm.xlu0 %598, %v212
        %v600 = vpop.permute.xlu0 %599
        %602 = vset.pattern.permute.xlu0 1
        %603 = vperm.xlu0 %602, %v213
        %v604 = vpop.permute.xlu0 %603
        %606 = vset.pattern.permute.xlu0 1
        %607 = vperm.xlu0 %606, %v214
        %v608 = vpop.permute.xlu0 %607
        %610 = vset.pattern.permute.xlu0 1
        %611 = vperm.xlu0 %610, %v215
        %v612 = vpop.permute.xlu0 %611
        %614 = vset.pattern.permute.xlu0 1
        %615 = vperm.xlu0 %614, %v216
        %v616 = vpop.permute.xlu0 %615
        %618 = vset.pattern.permute.xlu0 1
        %619 = vperm.xlu0 %618, %v217
        %v620 = vpop.permute.xlu0 %619
        %622 = vset.pattern.permute.xlu0 1
        %623 = vperm.xlu0 %622, %v218
        %v624 = vpop.permute.xlu0 %623
        %626 = vset.pattern.permute.xlu0 1
        %627 = vperm.xlu0 %626, %v219
        %v628 = vpop.permute.xlu0 %627
        %630 = vset.pattern.permute.xlu0 1
        %631 = vperm.xlu0 %630, %v220
        %v632 = vpop.permute.xlu0 %631
        %634 = vset.pattern.permute.xlu0 1
        %635 = vperm.xlu0 %634, %v221
        %v636 = vpop.permute.xlu0 %635
        %638 = vset.pattern.permute.xlu0 1
        %639 = vperm.xlu0 %638, %v222
        %v640 = vpop.permute.xlu0 %639
        %642 = vset.pattern.permute.xlu0 1
        %643 = vperm.xlu0 %642, %v223
        %v644 = vpop.permute.xlu0 %643
        %646 = vset.pattern.permute.xlu0 1
        %647 = vperm.xlu0 %646, %v224
        %v648 = vpop.permute.xlu0 %647
        %650 = vset.pattern.permute.xlu0 1
        %651 = vperm.xlu0 %650, %v225
        %v652 = vpop.permute.xlu0 %651
        %654 = vset.pattern.permute.xlu0 1
        %655 = vperm.xlu0 %654, %v226
        %v656 = vpop.permute.xlu0 %655
        %658 = vset.pattern.permute.xlu0 1
        %659 = vperm.xlu0 %658, %v227
        %v660 = vpop.permute.xlu0 %659
        %662 = vset.pattern.permute.xlu0 1
        %663 = vperm.xlu0 %662, %v228
        %v664 = vpop.permute.xlu0 %663
        %666 = vset.pattern.permute.xlu0 1
        %667 = vperm.xlu0 %666, %v229
        %v668 = vpop.permute.xlu0 %667
        %670 = vset.pattern.permute.xlu0 1
        %671 = vperm.xlu0 %670, %v230
        %v672 = vpop.permute.xlu0 %671
        %674 = vset.pattern.permute.xlu0 1
        %675 = vperm.xlu0 %674, %v231
        %v676 = vpop.permute.xlu0 %675
        %678 = vset.pattern.permute.xlu0 1
        %679 = vperm.xlu0 %678, %v232
        %v680 = vpop.permute.xlu0 %679
        %682 = vset.pattern.permute.xlu0 1
        %683 = vperm.xlu0 %682, %v233
        %v684 = vpop.permute.xlu0 %683
        %686 = vset.pattern.permute.xlu0 1
        %687 = vperm.xlu0 %686, %v234
        %v688 = vpop.permute.xlu0 %687
        %690 = vset.pattern.permute.xlu0 1
        %691 = vperm.xlu0 %690, %v235
        %v692 = vpop.permute.xlu0 %691
        %694 = vset.pattern.permute.xlu0 1
        %695 = vperm.xlu0 %694, %v236
        %v696 = vpop.permute.xlu0 %695
        %698 = vset.pattern.permute.xlu0 1
        %699 = vperm.xlu0 %698, %v237
        %v700 = vpop.permute.xlu0 %699
        %702 = vset.pattern.permute.xlu0 1
        %703 = vperm.xlu0 %702, %v238
        %v704 = vpop.permute.xlu0 %703
        %706 = vset.pattern.permute.xlu0 1
        %707 = vperm.xlu0 %706, %v239
        %v708 = vpop.permute.xlu0 %707
        %710 = vset.pattern.permute.xlu0 1
        %711 = vperm.xlu0 %710, %v240
        %v712 = vpop.permute.xlu0 %711
        %714 = vset.pattern.permute.xlu0 1
        %715 = vperm.xlu0 %714, %v241
        %v716 = vpop.permute.xlu0 %715
        %718 = vset.pattern.permute.xlu0 1
        %719 = vperm.xlu0 %718, %v242
        %v720 = vpop.permute.xlu0 %719
        %722 = vset.pattern.permute.xlu0 1
        %723 = vperm.xlu0 %722, %v243
        %v724 = vpop.permute.xlu0 %723
        %726 = vset.pattern.permute.xlu0 1
        %727 = vperm.xlu0 %726, %v244
        %v728 = vpop.permute.xlu0 %727
        %730 = vset.pattern.permute.xlu0 1
        %731 = vperm.xlu0 %730, %v245
        %v732 = vpop.permute.xlu0 %731
        %734 = vset.pattern.permute.xlu0 1
        %735 = vperm.xlu0 %734, %v246
        %v736 = vpop.permute.xlu0 %735
        %738 = vset.pattern.permute.xlu0 1
        %739 = vperm.xlu0 %738, %v247
        %v740 = vpop.permute.xlu0 %739
        %742 = vset.pattern.permute.xlu0 1
        %743 = vperm.xlu0 %742, %v248
        %v744 = vpop.permute.xlu0 %743
        %746 = vset.pattern.permute.xlu0 1
        %747 = vperm.xlu0 %746, %v249
        %v748 = vpop.permute.xlu0 %747
        %750 = vset.pattern.permute.xlu0 1
        %751 = vperm.xlu0 %750, %v250
        %v752 = vpop.permute.xlu0 %751
        %754 = vset.pattern.permute.xlu0 1
        %755 = vperm.xlu0 %754, %v251
        %v756 = vpop.permute.xlu0 %755
        %758 = vset.pattern.permute.xlu0 1
        %759 = vperm.xlu0 %758, %v252
        %v760 = vpop.permute.xlu0 %759
        %762 = vset.pattern.permute.xlu0 1
        %763 = vperm.xlu0 %762, %v253
        %v764 = vpop.permute.xlu0 %763
        %766 = vset.pattern.permute.xlu0 1
        %767 = vperm.xlu0 %766, %v254
        %v768 = vpop.permute.xlu0 %767
        %770 = vset.pattern.permute.xlu0 1
        %771 = vperm.xlu0 %770, %v255
        %v772 = vpop.permute.xlu0 %771
        %774 = vset.pattern.permute.xlu0 1
        %775 = vperm.xlu0 %774, %v256
        %v776 = vpop.permute.xlu0 %775
        %778 = vset.pattern.permute.xlu0 1
        %779 = vperm.xlu0 %778, %v257
        %v780 = vpop.permute.xlu0 %779
        %782 = vset.pattern.permute.xlu0 1
        %783 = vperm.xlu0 %782, %v258
        %v784 = vpop.permute.xlu0 %783
        %786 = vset.pattern.permute.xlu0 1
        %787 = vperm.xlu0 %786, %v259
        %v788 = vpop.permute.xlu0 %787
        %v790 = vperm.slane %v210, 1
        %v791 = vperm.slane %v211, 1
        %v792 = vmul.f32 %v600, %v790
        %v793 = vmul.f32 %v604, %v790
        %v794 = vmul.f32 %v608, %v790
        %v795 = vmul.f32 %v612, %v790
        %v796 = vmul.f32 %v616, %v790
        %v797 = vmul.f32 %v620, %v790
        %v798 = vmul.f32 %v624, %v790
        %v799 = vmul.f32 %v628, %v790
        %v800 = vmul.f32 %v632, %v790
        %v801 = vmul.f32 %v636, %v790
        %v802 = vmul.f32 %v640, %v790
        %v803 = vmul.f32 %v644, %v790
        %v804 = vmul.f32 %v648, %v790
        %v805 = vmul.f32 %v652, %v790
        %v806 = vmul.f32 %v656, %v790
        %v807 = vmul.f32 %v660, %v790
        %v808 = vmul.f32 %v664, %v790
        %v809 = vmul.f32 %v668, %v790
        %v810 = vmul.f32 %v672, %v790
        %v811 = vmul.f32 %v676, %v790
        %v812 = vmul.f32 %v680, %v790
        %v813 = vmul.f32 %v684, %v790
        %v814 = vmul.f32 %v688, %v790
        %v815 = vmul.f32 %v692, %v790
        %v816 = vmul.f32 %v696, %v790
        %v817 = vmul.f32 %v700, %v790
        %v818 = vmul.f32 %v704, %v790
        %v819 = vmul.f32 %v708, %v790
        %v820 = vmul.f32 %v712, %v790
        %v821 = vmul.f32 %v716, %v790
        %v822 = vmul.f32 %v720, %v790
        %v823 = vmul.f32 %v724, %v790
        %v824 = vmul.f32 %v728, %v790
        %v825 = vmul.f32 %v732, %v790
        %v826 = vmul.f32 %v736, %v790
        %v827 = vmul.f32 %v740, %v790
        %v828 = vmul.f32 %v744, %v790
        %v829 = vmul.f32 %v748, %v790
        %v830 = vmul.f32 %v752, %v790
        %v831 = vmul.f32 %v756, %v790
        %v832 = vmul.f32 %v760, %v790
        %v833 = vmul.f32 %v764, %v790
        %v834 = vmul.f32 %v768, %v790
        %v835 = vmul.f32 %v772, %v790
        %v836 = vmul.f32 %v776, %v790
        %v837 = vmul.f32 %v780, %v790
        %v838 = vmul.f32 %v784, %v790
        %v839 = vmul.f32 %v788, %v790
        %v840 = vmul.f32 %v600, %v791
        %v841 = vmul.f32 %v604, %v791
        %v842 = vmul.f32 %v608, %v791
        %v843 = vmul.f32 %v612, %v791
        %v844 = vmul.f32 %v616, %v791
        %v845 = vmul.f32 %v620, %v791
        %v846 = vmul.f32 %v624, %v791
        %v847 = vmul.f32 %v628, %v791
        %v848 = vmul.f32 %v632, %v791
        %v849 = vmul.f32 %v636, %v791
        %v850 = vmul.f32 %v640, %v791
        %v851 = vmul.f32 %v644, %v791
        %v852 = vmul.f32 %v648, %v791
        %v853 = vmul.f32 %v652, %v791
        %v854 = vmul.f32 %v656, %v791
        %v855 = vmul.f32 %v660, %v791
        %v856 = vmul.f32 %v664, %v791
        %v857 = vmul.f32 %v668, %v791
        %v858 = vmul.f32 %v672, %v791
        %v859 = vmul.f32 %v676, %v791
        %v860 = vmul.f32 %v680, %v791
        %v861 = vmul.f32 %v684, %v791
        %v862 = vmul.f32 %v688, %v791
        %v863 = vmul.f32 %v692, %v791
        %v864 = vmul.f32 %v696, %v791
        %v865 = vmul.f32 %v700, %v791
        %v866 = vmul.f32 %v704, %v791
        %v867 = vmul.f32 %v708, %v791
        %v868 = vmul.f32 %v712, %v791
        %v869 = vmul.f32 %v716, %v791
        %v870 = vmul.f32 %v720, %v791
        %v871 = vmul.f32 %v724, %v791
        %v872 = vmul.f32 %v728, %v791
        %v873 = vmul.f32 %v732, %v791
        %v874 = vmul.f32 %v736, %v791
        %v875 = vmul.f32 %v740, %v791
        %v876 = vmul.f32 %v744, %v791
        %v877 = vmul.f32 %v748, %v791
        %v878 = vmul.f32 %v752, %v791
        %v879 = vmul.f32 %v756, %v791
        %v880 = vmul.f32 %v760, %v791
        %v881 = vmul.f32 %v764, %v791
        %v882 = vmul.f32 %v768, %v791
        %v883 = vmul.f32 %v772, %v791
        %v884 = vmul.f32 %v776, %v791
        %v885 = vmul.f32 %v780, %v791
        %v886 = vmul.f32 %v784, %v791
        %v887 = vmul.f32 %v788, %v791
        %v888 = vadd.f32 %v502, %v792
        %v889 = vadd.f32 %v503, %v793
        %v890 = vadd.f32 %v504, %v794
        %v891 = vadd.f32 %v505, %v795
        %v892 = vadd.f32 %v506, %v796
        %v893 = vadd.f32 %v507, %v797
        %v894 = vadd.f32 %v508, %v798
        %v895 = vadd.f32 %v509, %v799
        %v896 = vadd.f32 %v510, %v800
        %v897 = vadd.f32 %v511, %v801
        %v898 = vadd.f32 %v512, %v802
        %v899 = vadd.f32 %v513, %v803
        %v900 = vadd.f32 %v514, %v804
        %v901 = vadd.f32 %v515, %v805
        %v902 = vadd.f32 %v516, %v806
        %v903 = vadd.f32 %v517, %v807
        %v904 = vadd.f32 %v518, %v808
        %v905 = vadd.f32 %v519, %v809
        %v906 = vadd.f32 %v520, %v810
        %v907 = vadd.f32 %v521, %v811
        %v908 = vadd.f32 %v522, %v812
        %v909 = vadd.f32 %v523, %v813
        %v910 = vadd.f32 %v524, %v814
        %v911 = vadd.f32 %v525, %v815
        %v912 = vadd.f32 %v526, %v816
        %v913 = vadd.f32 %v527, %v817
        %v914 = vadd.f32 %v528, %v818
        %v915 = vadd.f32 %v529, %v819
        %v916 = vadd.f32 %v530, %v820
        %v917 = vadd.f32 %v531, %v821
        %v918 = vadd.f32 %v532, %v822
        %v919 = vadd.f32 %v533, %v823
        %v920 = vadd.f32 %v534, %v824
        %v921 = vadd.f32 %v535, %v825
        %v922 = vadd.f32 %v536, %v826
        %v923 = vadd.f32 %v537, %v827
        %v924 = vadd.f32 %v538, %v828
        %v925 = vadd.f32 %v539, %v829
        %v926 = vadd.f32 %v540, %v830
        %v927 = vadd.f32 %v541, %v831
        %v928 = vadd.f32 %v542, %v832
        %v929 = vadd.f32 %v543, %v833
        %v930 = vadd.f32 %v544, %v834
        %v931 = vadd.f32 %v545, %v835
        %v932 = vadd.f32 %v546, %v836
        %v933 = vadd.f32 %v547, %v837
        %v934 = vadd.f32 %v548, %v838
        %v935 = vadd.f32 %v549, %v839
        %v936 = vadd.f32 %v550, %v840
        %v937 = vadd.f32 %v551, %v841
        %v938 = vadd.f32 %v552, %v842
        %v939 = vadd.f32 %v553, %v843
        %v940 = vadd.f32 %v554, %v844
        %v941 = vadd.f32 %v555, %v845
        %v942 = vadd.f32 %v556, %v846
        %v943 = vadd.f32 %v557, %v847
        %v944 = vadd.f32 %v558, %v848
        %v945 = vadd.f32 %v559, %v849
        %v946 = vadd.f32 %v560, %v850
        %v947 = vadd.f32 %v561, %v851
        %v948 = vadd.f32 %v562, %v852
        %v949 = vadd.f32 %v563, %v853
        %v950 = vadd.f32 %v564, %v854
        %v951 = vadd.f32 %v565, %v855
        %v952 = vadd.f32 %v566, %v856
        %v953 = vadd.f32 %v567, %v857
        %v954 = vadd.f32 %v568, %v858
        %v955 = vadd.f32 %v569, %v859
        %v956 = vadd.f32 %v570, %v860
        %v957 = vadd.f32 %v571, %v861
        %v958 = vadd.f32 %v572, %v862
        %v959 = vadd.f32 %v573, %v863
        %v960 = vadd.f32 %v574, %v864
        %v961 = vadd.f32 %v575, %v865
        %v962 = vadd.f32 %v576, %v866
        %v963 = vadd.f32 %v577, %v867
        %v964 = vadd.f32 %v578, %v868
        %v965 = vadd.f32 %v579, %v869
        %v966 = vadd.f32 %v580, %v870
        %v967 = vadd.f32 %v581, %v871
        %v968 = vadd.f32 %v582, %v872
        %v969 = vadd.f32 %v583, %v873
        %v970 = vadd.f32 %v584, %v874
        %v971 = vadd.f32 %v585, %v875
        %v972 = vadd.f32 %v586, %v876
        %v973 = vadd.f32 %v587, %v877
        %v974 = vadd.f32 %v588, %v878
        %v975 = vadd.f32 %v589, %v879
        %v976 = vadd.f32 %v590, %v880
        %v977 = vadd.f32 %v591, %v881
        %v978 = vadd.f32 %v592, %v882
        %v979 = vadd.f32 %v593, %v883
        %v980 = vadd.f32 %v594, %v884
        %v981 = vadd.f32 %v595, %v885
        %v982 = vadd.f32 %v596, %v886
        %v983 = vadd.f32 %v597, %v887
        %984 = vset.pattern.permute.xlu0 2
        %985 = vperm.xlu0 %984, %v212
        %v986 = vpop.permute.xlu0 %985
        %988 = vset.pattern.permute.xlu0 2
        %989 = vperm.xlu0 %988, %v213
        %v990 = vpop.permute.xlu0 %989
        %992 = vset.pattern.permute.xlu0 2
        %993 = vperm.xlu0 %992, %v214
        %v994 = vpop.permute.xlu0 %993
        %996 = vset.pattern.permute.xlu0 2
        %997 = vperm.xlu0 %996, %v215
        %v998 = vpop.permute.xlu0 %997
        %1000 = vset.pattern.permute.xlu0 2
        %1001 = vperm.xlu0 %1000, %v216
        %v1002 = vpop.permute.xlu0 %1001
        %1004 = vset.pattern.permute.xlu0 2
        %1005 = vperm.xlu0 %1004, %v217
        %v1006 = vpop.permute.xlu0 %1005
        %1008 = vset.pattern.permute.xlu0 2
        %1009 = vperm.xlu0 %1008, %v218
        %v1010 = vpop.permute.xlu0 %1009
        %1012 = vset.pattern.permute.xlu0 2
        %1013 = vperm.xlu0 %1012, %v219
        %v1014 = vpop.permute.xlu0 %1013
        %1016 = vset.pattern.permute.xlu0 2
        %1017 = vperm.xlu0 %1016, %v220
        %v1018 = vpop.permute.xlu0 %1017
        %1020 = vset.pattern.permute.xlu0 2
        %1021 = vperm.xlu0 %1020, %v221
        %v1022 = vpop.permute.xlu0 %1021
        %1024 = vset.pattern.permute.xlu0 2
        %1025 = vperm.xlu0 %1024, %v222
        %v1026 = vpop.permute.xlu0 %1025
        %1028 = vset.pattern.permute.xlu0 2
        %1029 = vperm.xlu0 %1028, %v223
        %v1030 = vpop.permute.xlu0 %1029
        %1032 = vset.pattern.permute.xlu0 2
        %1033 = vperm.xlu0 %1032, %v224
        %v1034 = vpop.permute.xlu0 %1033
        %1036 = vset.pattern.permute.xlu0 2
        %1037 = vperm.xlu0 %1036, %v225
        %v1038 = vpop.permute.xlu0 %1037
        %1040 = vset.pattern.permute.xlu0 2
        %1041 = vperm.xlu0 %1040, %v226
        %v1042 = vpop.permute.xlu0 %1041
        %1044 = vset.pattern.permute.xlu0 2
        %1045 = vperm.xlu0 %1044, %v227
        %v1046 = vpop.permute.xlu0 %1045
        %1048 = vset.pattern.permute.xlu0 2
        %1049 = vperm.xlu0 %1048, %v228
        %v1050 = vpop.permute.xlu0 %1049
        %1052 = vset.pattern.permute.xlu0 2
        %1053 = vperm.xlu0 %1052, %v229
        %v1054 = vpop.permute.xlu0 %1053
        %1056 = vset.pattern.permute.xlu0 2
        %1057 = vperm.xlu0 %1056, %v230
        %v1058 = vpop.permute.xlu0 %1057
        %1060 = vset.pattern.permute.xlu0 2
        %1061 = vperm.xlu0 %1060, %v231
        %v1062 = vpop.permute.xlu0 %1061
        %1064 = vset.pattern.permute.xlu0 2
        %1065 = vperm.xlu0 %1064, %v232
        %v1066 = vpop.permute.xlu0 %1065
        %1068 = vset.pattern.permute.xlu0 2
        %1069 = vperm.xlu0 %1068, %v233
        %v1070 = vpop.permute.xlu0 %1069
        %1072 = vset.pattern.permute.xlu0 2
        %1073 = vperm.xlu0 %1072, %v234
        %v1074 = vpop.permute.xlu0 %1073
        %1076 = vset.pattern.permute.xlu0 2
        %1077 = vperm.xlu0 %1076, %v235
        %v1078 = vpop.permute.xlu0 %1077
        %1080 = vset.pattern.permute.xlu0 2
        %1081 = vperm.xlu0 %1080, %v236
        %v1082 = vpop.permute.xlu0 %1081
        %1084 = vset.pattern.permute.xlu0 2
        %1085 = vperm.xlu0 %1084, %v237
        %v1086 = vpop.permute.xlu0 %1085
        %1088 = vset.pattern.permute.xlu0 2
        %1089 = vperm.xlu0 %1088, %v238
        %v1090 = vpop.permute.xlu0 %1089
        %1092 = vset.pattern.permute.xlu0 2
        %1093 = vperm.xlu0 %1092, %v239
        %v1094 = vpop.permute.xlu0 %1093
        %1096 = vset.pattern.permute.xlu0 2
        %1097 = vperm.xlu0 %1096, %v240
        %v1098 = vpop.permute.xlu0 %1097
        %1100 = vset.pattern.permute.xlu0 2
        %1101 = vperm.xlu0 %1100, %v241
        %v1102 = vpop.permute.xlu0 %1101
        %1104 = vset.pattern.permute.xlu0 2
        %1105 = vperm.xlu0 %1104, %v242
        %v1106 = vpop.permute.xlu0 %1105
        %1108 = vset.pattern.permute.xlu0 2
        %1109 = vperm.xlu0 %1108, %v243
        %v1110 = vpop.permute.xlu0 %1109
        %1112 = vset.pattern.permute.xlu0 2
        %1113 = vperm.xlu0 %1112, %v244
        %v1114 = vpop.permute.xlu0 %1113
        %1116 = vset.pattern.permute.xlu0 2
        %1117 = vperm.xlu0 %1116, %v245
        %v1118 = vpop.permute.xlu0 %1117
        %1120 = vset.pattern.permute.xlu0 2
        %1121 = vperm.xlu0 %1120, %v246
        %v1122 = vpop.permute.xlu0 %1121
        %1124 = vset.pattern.permute.xlu0 2
        %1125 = vperm.xlu0 %1124, %v247
        %v1126 = vpop.permute.xlu0 %1125
        %1128 = vset.pattern.permute.xlu0 2
        %1129 = vperm.xlu0 %1128, %v248
        %v1130 = vpop.permute.xlu0 %1129
        %1132 = vset.pattern.permute.xlu0 2
        %1133 = vperm.xlu0 %1132, %v249
        %v1134 = vpop.permute.xlu0 %1133
        %1136 = vset.pattern.permute.xlu0 2
        %1137 = vperm.xlu0 %1136, %v250
        %v1138 = vpop.permute.xlu0 %1137
        %1140 = vset.pattern.permute.xlu0 2
        %1141 = vperm.xlu0 %1140, %v251
        %v1142 = vpop.permute.xlu0 %1141
        %1144 = vset.pattern.permute.xlu0 2
        %1145 = vperm.xlu0 %1144, %v252
        %v1146 = vpop.permute.xlu0 %1145
        %1148 = vset.pattern.permute.xlu0 2
        %1149 = vperm.xlu0 %1148, %v253
        %v1150 = vpop.permute.xlu0 %1149
        %1152 = vset.pattern.permute.xlu0 2
        %1153 = vperm.xlu0 %1152, %v254
        %v1154 = vpop.permute.xlu0 %1153
        %1156 = vset.pattern.permute.xlu0 2
        %1157 = vperm.xlu0 %1156, %v255
        %v1158 = vpop.permute.xlu0 %1157
        %1160 = vset.pattern.permute.xlu0 2
        %1161 = vperm.xlu0 %1160, %v256
        %v1162 = vpop.permute.xlu0 %1161
        %1164 = vset.pattern.permute.xlu0 2
        %1165 = vperm.xlu0 %1164, %v257
        %v1166 = vpop.permute.xlu0 %1165
        %1168 = vset.pattern.permute.xlu0 2
        %1169 = vperm.xlu0 %1168, %v258
        %v1170 = vpop.permute.xlu0 %1169
        %1172 = vset.pattern.permute.xlu0 2
        %1173 = vperm.xlu0 %1172, %v259
        %v1174 = vpop.permute.xlu0 %1173
        %v1176 = vperm.slane %v210, 2
        %v1177 = vperm.slane %v211, 2
        %v1178 = vmul.f32 %v986, %v1176
        %v1179 = vmul.f32 %v990, %v1176
        %v1180 = vmul.f32 %v994, %v1176
        %v1181 = vmul.f32 %v998, %v1176
        %v1182 = vmul.f32 %v1002, %v1176
        %v1183 = vmul.f32 %v1006, %v1176
        %v1184 = vmul.f32 %v1010, %v1176
        %v1185 = vmul.f32 %v1014, %v1176
        %v1186 = vmul.f32 %v1018, %v1176
        %v1187 = vmul.f32 %v1022, %v1176
        %v1188 = vmul.f32 %v1026, %v1176
        %v1189 = vmul.f32 %v1030, %v1176
        %v1190 = vmul.f32 %v1034, %v1176
        %v1191 = vmul.f32 %v1038, %v1176
        %v1192 = vmul.f32 %v1042, %v1176
        %v1193 = vmul.f32 %v1046, %v1176
        %v1194 = vmul.f32 %v1050, %v1176
        %v1195 = vmul.f32 %v1054, %v1176
        %v1196 = vmul.f32 %v1058, %v1176
        %v1197 = vmul.f32 %v1062, %v1176
        %v1198 = vmul.f32 %v1066, %v1176
        %v1199 = vmul.f32 %v1070, %v1176
        %v1200 = vmul.f32 %v1074, %v1176
        %v1201 = vmul.f32 %v1078, %v1176
        %v1202 = vmul.f32 %v1082, %v1176
        %v1203 = vmul.f32 %v1086, %v1176
        %v1204 = vmul.f32 %v1090, %v1176
        %v1205 = vmul.f32 %v1094, %v1176
        %v1206 = vmul.f32 %v1098, %v1176
        %v1207 = vmul.f32 %v1102, %v1176
        %v1208 = vmul.f32 %v1106, %v1176
        %v1209 = vmul.f32 %v1110, %v1176
        %v1210 = vmul.f32 %v1114, %v1176
        %v1211 = vmul.f32 %v1118, %v1176
        %v1212 = vmul.f32 %v1122, %v1176
        %v1213 = vmul.f32 %v1126, %v1176
        %v1214 = vmul.f32 %v1130, %v1176
        %v1215 = vmul.f32 %v1134, %v1176
        %v1216 = vmul.f32 %v1138, %v1176
        %v1217 = vmul.f32 %v1142, %v1176
        %v1218 = vmul.f32 %v1146, %v1176
        %v1219 = vmul.f32 %v1150, %v1176
        %v1220 = vmul.f32 %v1154, %v1176
        %v1221 = vmul.f32 %v1158, %v1176
        %v1222 = vmul.f32 %v1162, %v1176
        %v1223 = vmul.f32 %v1166, %v1176
        %v1224 = vmul.f32 %v1170, %v1176
        %v1225 = vmul.f32 %v1174, %v1176
        %v1226 = vmul.f32 %v986, %v1177
        %v1227 = vmul.f32 %v990, %v1177
        %v1228 = vmul.f32 %v994, %v1177
        %v1229 = vmul.f32 %v998, %v1177
        %v1230 = vmul.f32 %v1002, %v1177
        %v1231 = vmul.f32 %v1006, %v1177
        %v1232 = vmul.f32 %v1010, %v1177
        %v1233 = vmul.f32 %v1014, %v1177
        %v1234 = vmul.f32 %v1018, %v1177
        %v1235 = vmul.f32 %v1022, %v1177
        %v1236 = vmul.f32 %v1026, %v1177
        %v1237 = vmul.f32 %v1030, %v1177
        %v1238 = vmul.f32 %v1034, %v1177
        %v1239 = vmul.f32 %v1038, %v1177
        %v1240 = vmul.f32 %v1042, %v1177
        %v1241 = vmul.f32 %v1046, %v1177
        %v1242 = vmul.f32 %v1050, %v1177
        %v1243 = vmul.f32 %v1054, %v1177
        %v1244 = vmul.f32 %v1058, %v1177
        %v1245 = vmul.f32 %v1062, %v1177
        %v1246 = vmul.f32 %v1066, %v1177
        %v1247 = vmul.f32 %v1070, %v1177
        %v1248 = vmul.f32 %v1074, %v1177
        %v1249 = vmul.f32 %v1078, %v1177
        %v1250 = vmul.f32 %v1082, %v1177
        %v1251 = vmul.f32 %v1086, %v1177
        %v1252 = vmul.f32 %v1090, %v1177
        %v1253 = vmul.f32 %v1094, %v1177
        %v1254 = vmul.f32 %v1098, %v1177
        %v1255 = vmul.f32 %v1102, %v1177
        %v1256 = vmul.f32 %v1106, %v1177
        %v1257 = vmul.f32 %v1110, %v1177
        %v1258 = vmul.f32 %v1114, %v1177
        %v1259 = vmul.f32 %v1118, %v1177
        %v1260 = vmul.f32 %v1122, %v1177
        %v1261 = vmul.f32 %v1126, %v1177
        %v1262 = vmul.f32 %v1130, %v1177
        %v1263 = vmul.f32 %v1134, %v1177
        %v1264 = vmul.f32 %v1138, %v1177
        %v1265 = vmul.f32 %v1142, %v1177
        %v1266 = vmul.f32 %v1146, %v1177
        %v1267 = vmul.f32 %v1150, %v1177
        %v1268 = vmul.f32 %v1154, %v1177
        %v1269 = vmul.f32 %v1158, %v1177
        %v1270 = vmul.f32 %v1162, %v1177
        %v1271 = vmul.f32 %v1166, %v1177
        %v1272 = vmul.f32 %v1170, %v1177
        %v1273 = vmul.f32 %v1174, %v1177
        %v1274 = vadd.f32 %v888, %v1178
        %v1275 = vadd.f32 %v889, %v1179
        %v1276 = vadd.f32 %v890, %v1180
        %v1277 = vadd.f32 %v891, %v1181
        %v1278 = vadd.f32 %v892, %v1182
        %v1279 = vadd.f32 %v893, %v1183
        %v1280 = vadd.f32 %v894, %v1184
        %v1281 = vadd.f32 %v895, %v1185
        %v1282 = vadd.f32 %v896, %v1186
        %v1283 = vadd.f32 %v897, %v1187
        %v1284 = vadd.f32 %v898, %v1188
        %v1285 = vadd.f32 %v899, %v1189
        %v1286 = vadd.f32 %v900, %v1190
        %v1287 = vadd.f32 %v901, %v1191
        %v1288 = vadd.f32 %v902, %v1192
        %v1289 = vadd.f32 %v903, %v1193
        %v1290 = vadd.f32 %v904, %v1194
        %v1291 = vadd.f32 %v905, %v1195
        %v1292 = vadd.f32 %v906, %v1196
        %v1293 = vadd.f32 %v907, %v1197
        %v1294 = vadd.f32 %v908, %v1198
        %v1295 = vadd.f32 %v909, %v1199
        %v1296 = vadd.f32 %v910, %v1200
        %v1297 = vadd.f32 %v911, %v1201
        %v1298 = vadd.f32 %v912, %v1202
        %v1299 = vadd.f32 %v913, %v1203
        %v1300 = vadd.f32 %v914, %v1204
        %v1301 = vadd.f32 %v915, %v1205
        %v1302 = vadd.f32 %v916, %v1206
        %v1303 = vadd.f32 %v917, %v1207
        %v1304 = vadd.f32 %v918, %v1208
        %v1305 = vadd.f32 %v919, %v1209
        %v1306 = vadd.f32 %v920, %v1210
        %v1307 = vadd.f32 %v921, %v1211
        %v1308 = vadd.f32 %v922, %v1212
        %v1309 = vadd.f32 %v923, %v1213
        %v1310 = vadd.f32 %v924, %v1214
        %v1311 = vadd.f32 %v925, %v1215
        %v1312 = vadd.f32 %v926, %v1216
        %v1313 = vadd.f32 %v927, %v1217
        %v1314 = vadd.f32 %v928, %v1218
        %v1315 = vadd.f32 %v929, %v1219
        %v1316 = vadd.f32 %v930, %v1220
        %v1317 = vadd.f32 %v931, %v1221
        %v1318 = vadd.f32 %v932, %v1222
        %v1319 = vadd.f32 %v933, %v1223
        %v1320 = vadd.f32 %v934, %v1224
        %v1321 = vadd.f32 %v935, %v1225
        %v1322 = vadd.f32 %v936, %v1226
        %v1323 = vadd.f32 %v937, %v1227
        %v1324 = vadd.f32 %v938, %v1228
        %v1325 = vadd.f32 %v939, %v1229
        %v1326 = vadd.f32 %v940, %v1230
        %v1327 = vadd.f32 %v941, %v1231
        %v1328 = vadd.f32 %v942, %v1232
        %v1329 = vadd.f32 %v943, %v1233
        %v1330 = vadd.f32 %v944, %v1234
        %v1331 = vadd.f32 %v945, %v1235
        %v1332 = vadd.f32 %v946, %v1236
        %v1333 = vadd.f32 %v947, %v1237
        %v1334 = vadd.f32 %v948, %v1238
        %v1335 = vadd.f32 %v949, %v1239
        %v1336 = vadd.f32 %v950, %v1240
        %v1337 = vadd.f32 %v951, %v1241
        %v1338 = vadd.f32 %v952, %v1242
        %v1339 = vadd.f32 %v953, %v1243
        %v1340 = vadd.f32 %v954, %v1244
        %v1341 = vadd.f32 %v955, %v1245
        %v1342 = vadd.f32 %v956, %v1246
        %v1343 = vadd.f32 %v957, %v1247
        %v1344 = vadd.f32 %v958, %v1248
        %v1345 = vadd.f32 %v959, %v1249
        %v1346 = vadd.f32 %v960, %v1250
        %v1347 = vadd.f32 %v961, %v1251
        %v1348 = vadd.f32 %v962, %v1252
        %v1349 = vadd.f32 %v963, %v1253
        %v1350 = vadd.f32 %v964, %v1254
        %v1351 = vadd.f32 %v965, %v1255
        %v1352 = vadd.f32 %v966, %v1256
        %v1353 = vadd.f32 %v967, %v1257
        %v1354 = vadd.f32 %v968, %v1258
        %v1355 = vadd.f32 %v969, %v1259
        %v1356 = vadd.f32 %v970, %v1260
        %v1357 = vadd.f32 %v971, %v1261
        %v1358 = vadd.f32 %v972, %v1262
        %v1359 = vadd.f32 %v973, %v1263
        %v1360 = vadd.f32 %v974, %v1264
        %v1361 = vadd.f32 %v975, %v1265
        %v1362 = vadd.f32 %v976, %v1266
        %v1363 = vadd.f32 %v977, %v1267
        %v1364 = vadd.f32 %v978, %v1268
        %v1365 = vadd.f32 %v979, %v1269
        %v1366 = vadd.f32 %v980, %v1270
        %v1367 = vadd.f32 %v981, %v1271
        %v1368 = vadd.f32 %v982, %v1272
        %v1369 = vadd.f32 %v983, %v1273
        %1370 = vset.pattern.permute.xlu0 3
        %1371 = vperm.xlu0 %1370, %v212
        %v1372 = vpop.permute.xlu0 %1371
        %1374 = vset.pattern.permute.xlu0 3
        %1375 = vperm.xlu0 %1374, %v213
        %v1376 = vpop.permute.xlu0 %1375
        %1378 = vset.pattern.permute.xlu0 3
        %1379 = vperm.xlu0 %1378, %v214
        %v1380 = vpop.permute.xlu0 %1379
        %1382 = vset.pattern.permute.xlu0 3
        %1383 = vperm.xlu0 %1382, %v215
        %v1384 = vpop.permute.xlu0 %1383
        %1386 = vset.pattern.permute.xlu0 3
        %1387 = vperm.xlu0 %1386, %v216
        %v1388 = vpop.permute.xlu0 %1387
        %1390 = vset.pattern.permute.xlu0 3
        %1391 = vperm.xlu0 %1390, %v217
        %v1392 = vpop.permute.xlu0 %1391
        %1394 = vset.pattern.permute.xlu0 3
        %1395 = vperm.xlu0 %1394, %v218
        %v1396 = vpop.permute.xlu0 %1395
        %1398 = vset.pattern.permute.xlu0 3
        %1399 = vperm.xlu0 %1398, %v219
        %v1400 = vpop.permute.xlu0 %1399
        %1402 = vset.pattern.permute.xlu0 3
        %1403 = vperm.xlu0 %1402, %v220
        %v1404 = vpop.permute.xlu0 %1403
        %1406 = vset.pattern.permute.xlu0 3
        %1407 = vperm.xlu0 %1406, %v221
        %v1408 = vpop.permute.xlu0 %1407
        %1410 = vset.pattern.permute.xlu0 3
        %1411 = vperm.xlu0 %1410, %v222
        %v1412 = vpop.permute.xlu0 %1411
        %1414 = vset.pattern.permute.xlu0 3
        %1415 = vperm.xlu0 %1414, %v223
        %v1416 = vpop.permute.xlu0 %1415
        %1418 = vset.pattern.permute.xlu0 3
        %1419 = vperm.xlu0 %1418, %v224
        %v1420 = vpop.permute.xlu0 %1419
        %1422 = vset.pattern.permute.xlu0 3
        %1423 = vperm.xlu0 %1422, %v225
        %v1424 = vpop.permute.xlu0 %1423
        %1426 = vset.pattern.permute.xlu0 3
        %1427 = vperm.xlu0 %1426, %v226
        %v1428 = vpop.permute.xlu0 %1427
        %1430 = vset.pattern.permute.xlu0 3
        %1431 = vperm.xlu0 %1430, %v227
        %v1432 = vpop.permute.xlu0 %1431
        %1434 = vset.pattern.permute.xlu0 3
        %1435 = vperm.xlu0 %1434, %v228
        %v1436 = vpop.permute.xlu0 %1435
        %1438 = vset.pattern.permute.xlu0 3
        %1439 = vperm.xlu0 %1438, %v229
        %v1440 = vpop.permute.xlu0 %1439
        %1442 = vset.pattern.permute.xlu0 3
        %1443 = vperm.xlu0 %1442, %v230
        %v1444 = vpop.permute.xlu0 %1443
        %1446 = vset.pattern.permute.xlu0 3
        %1447 = vperm.xlu0 %1446, %v231
        %v1448 = vpop.permute.xlu0 %1447
        %1450 = vset.pattern.permute.xlu0 3
        %1451 = vperm.xlu0 %1450, %v232
        %v1452 = vpop.permute.xlu0 %1451
        %1454 = vset.pattern.permute.xlu0 3
        %1455 = vperm.xlu0 %1454, %v233
        %v1456 = vpop.permute.xlu0 %1455
        %1458 = vset.pattern.permute.xlu0 3
        %1459 = vperm.xlu0 %1458, %v234
        %v1460 = vpop.permute.xlu0 %1459
        %1462 = vset.pattern.permute.xlu0 3
        %1463 = vperm.xlu0 %1462, %v235
        %v1464 = vpop.permute.xlu0 %1463
        %1466 = vset.pattern.permute.xlu0 3
        %1467 = vperm.xlu0 %1466, %v236
        %v1468 = vpop.permute.xlu0 %1467
        %1470 = vset.pattern.permute.xlu0 3
        %1471 = vperm.xlu0 %1470, %v237
        %v1472 = vpop.permute.xlu0 %1471
        %1474 = vset.pattern.permute.xlu0 3
        %1475 = vperm.xlu0 %1474, %v238
        %v1476 = vpop.permute.xlu0 %1475
        %1478 = vset.pattern.permute.xlu0 3
        %1479 = vperm.xlu0 %1478, %v239
        %v1480 = vpop.permute.xlu0 %1479
        %1482 = vset.pattern.permute.xlu0 3
        %1483 = vperm.xlu0 %1482, %v240
        %v1484 = vpop.permute.xlu0 %1483
        %1486 = vset.pattern.permute.xlu0 3
        %1487 = vperm.xlu0 %1486, %v241
        %v1488 = vpop.permute.xlu0 %1487
        %1490 = vset.pattern.permute.xlu0 3
        %1491 = vperm.xlu0 %1490, %v242
        %v1492 = vpop.permute.xlu0 %1491
        %1494 = vset.pattern.permute.xlu0 3
        %1495 = vperm.xlu0 %1494, %v243
        %v1496 = vpop.permute.xlu0 %1495
        %1498 = vset.pattern.permute.xlu0 3
        %1499 = vperm.xlu0 %1498, %v244
        %v1500 = vpop.permute.xlu0 %1499
        %1502 = vset.pattern.permute.xlu0 3
        %1503 = vperm.xlu0 %1502, %v245
        %v1504 = vpop.permute.xlu0 %1503
        %1506 = vset.pattern.permute.xlu0 3
        %1507 = vperm.xlu0 %1506, %v246
        %v1508 = vpop.permute.xlu0 %1507
        %1510 = vset.pattern.permute.xlu0 3
        %1511 = vperm.xlu0 %1510, %v247
        %v1512 = vpop.permute.xlu0 %1511
        %1514 = vset.pattern.permute.xlu0 3
        %1515 = vperm.xlu0 %1514, %v248
        %v1516 = vpop.permute.xlu0 %1515
        %1518 = vset.pattern.permute.xlu0 3
        %1519 = vperm.xlu0 %1518, %v249
        %v1520 = vpop.permute.xlu0 %1519
        %1522 = vset.pattern.permute.xlu0 3
        %1523 = vperm.xlu0 %1522, %v250
        %v1524 = vpop.permute.xlu0 %1523
        %1526 = vset.pattern.permute.xlu0 3
        %1527 = vperm.xlu0 %1526, %v251
        %v1528 = vpop.permute.xlu0 %1527
        %1530 = vset.pattern.permute.xlu0 3
        %1531 = vperm.xlu0 %1530, %v252
        %v1532 = vpop.permute.xlu0 %1531
        %1534 = vset.pattern.permute.xlu0 3
        %1535 = vperm.xlu0 %1534, %v253
        %v1536 = vpop.permute.xlu0 %1535
        %1538 = vset.pattern.permute.xlu0 3
        %1539 = vperm.xlu0 %1538, %v254
        %v1540 = vpop.permute.xlu0 %1539
        %1542 = vset.pattern.permute.xlu0 3
        %1543 = vperm.xlu0 %1542, %v255
        %v1544 = vpop.permute.xlu0 %1543
        %1546 = vset.pattern.permute.xlu0 3
        %1547 = vperm.xlu0 %1546, %v256
        %v1548 = vpop.permute.xlu0 %1547
        %1550 = vset.pattern.permute.xlu0 3
        %1551 = vperm.xlu0 %1550, %v257
        %v1552 = vpop.permute.xlu0 %1551
        %1554 = vset.pattern.permute.xlu0 3
        %1555 = vperm.xlu0 %1554, %v258
        %v1556 = vpop.permute.xlu0 %1555
        %1558 = vset.pattern.permute.xlu0 3
        %1559 = vperm.xlu0 %1558, %v259
        %v1560 = vpop.permute.xlu0 %1559
        %v1562 = vperm.slane %v210, 3
        %v1563 = vperm.slane %v211, 3
        %v1564 = vmul.f32 %v1372, %v1562
        %v1565 = vmul.f32 %v1376, %v1562
        %v1566 = vmul.f32 %v1380, %v1562
        %v1567 = vmul.f32 %v1384, %v1562
        %v1568 = vmul.f32 %v1388, %v1562
        %v1569 = vmul.f32 %v1392, %v1562
        %v1570 = vmul.f32 %v1396, %v1562
        %v1571 = vmul.f32 %v1400, %v1562
        %v1572 = vmul.f32 %v1404, %v1562
        %v1573 = vmul.f32 %v1408, %v1562
        %v1574 = vmul.f32 %v1412, %v1562
        %v1575 = vmul.f32 %v1416, %v1562
        %v1576 = vmul.f32 %v1420, %v1562
        %v1577 = vmul.f32 %v1424, %v1562
        %v1578 = vmul.f32 %v1428, %v1562
        %v1579 = vmul.f32 %v1432, %v1562
        %v1580 = vmul.f32 %v1436, %v1562
        %v1581 = vmul.f32 %v1440, %v1562
        %v1582 = vmul.f32 %v1444, %v1562
        %v1583 = vmul.f32 %v1448, %v1562
        %v1584 = vmul.f32 %v1452, %v1562
        %v1585 = vmul.f32 %v1456, %v1562
        %v1586 = vmul.f32 %v1460, %v1562
        %v1587 = vmul.f32 %v1464, %v1562
        %v1588 = vmul.f32 %v1468, %v1562
        %v1589 = vmul.f32 %v1472, %v1562
        %v1590 = vmul.f32 %v1476, %v1562
        %v1591 = vmul.f32 %v1480, %v1562
        %v1592 = vmul.f32 %v1484, %v1562
        %v1593 = vmul.f32 %v1488, %v1562
        %v1594 = vmul.f32 %v1492, %v1562
        %v1595 = vmul.f32 %v1496, %v1562
        %v1596 = vmul.f32 %v1500, %v1562
        %v1597 = vmul.f32 %v1504, %v1562
        %v1598 = vmul.f32 %v1508, %v1562
        %v1599 = vmul.f32 %v1512, %v1562
        %v1600 = vmul.f32 %v1516, %v1562
        %v1601 = vmul.f32 %v1520, %v1562
        %v1602 = vmul.f32 %v1524, %v1562
        %v1603 = vmul.f32 %v1528, %v1562
        %v1604 = vmul.f32 %v1532, %v1562
        %v1605 = vmul.f32 %v1536, %v1562
        %v1606 = vmul.f32 %v1540, %v1562
        %v1607 = vmul.f32 %v1544, %v1562
        %v1608 = vmul.f32 %v1548, %v1562
        %v1609 = vmul.f32 %v1552, %v1562
        %v1610 = vmul.f32 %v1556, %v1562
        %v1611 = vmul.f32 %v1560, %v1562
        %v1612 = vmul.f32 %v1372, %v1563
        %v1613 = vmul.f32 %v1376, %v1563
        %v1614 = vmul.f32 %v1380, %v1563
        %v1615 = vmul.f32 %v1384, %v1563
        %v1616 = vmul.f32 %v1388, %v1563
        %v1617 = vmul.f32 %v1392, %v1563
        %v1618 = vmul.f32 %v1396, %v1563
        %v1619 = vmul.f32 %v1400, %v1563
        %v1620 = vmul.f32 %v1404, %v1563
        %v1621 = vmul.f32 %v1408, %v1563
        %v1622 = vmul.f32 %v1412, %v1563
        %v1623 = vmul.f32 %v1416, %v1563
        %v1624 = vmul.f32 %v1420, %v1563
        %v1625 = vmul.f32 %v1424, %v1563
        %v1626 = vmul.f32 %v1428, %v1563
        %v1627 = vmul.f32 %v1432, %v1563
        %v1628 = vmul.f32 %v1436, %v1563
        %v1629 = vmul.f32 %v1440, %v1563
        %v1630 = vmul.f32 %v1444, %v1563
        %v1631 = vmul.f32 %v1448, %v1563
        %v1632 = vmul.f32 %v1452, %v1563
        %v1633 = vmul.f32 %v1456, %v1563
        %v1634 = vmul.f32 %v1460, %v1563
        %v1635 = vmul.f32 %v1464, %v1563
        %v1636 = vmul.f32 %v1468, %v1563
        %v1637 = vmul.f32 %v1472, %v1563
        %v1638 = vmul.f32 %v1476, %v1563
        %v1639 = vmul.f32 %v1480, %v1563
        %v1640 = vmul.f32 %v1484, %v1563
        %v1641 = vmul.f32 %v1488, %v1563
        %v1642 = vmul.f32 %v1492, %v1563
        %v1643 = vmul.f32 %v1496, %v1563
        %v1644 = vmul.f32 %v1500, %v1563
        %v1645 = vmul.f32 %v1504, %v1563
        %v1646 = vmul.f32 %v1508, %v1563
        %v1647 = vmul.f32 %v1512, %v1563
        %v1648 = vmul.f32 %v1516, %v1563
        %v1649 = vmul.f32 %v1520, %v1563
        %v1650 = vmul.f32 %v1524, %v1563
        %v1651 = vmul.f32 %v1528, %v1563
        %v1652 = vmul.f32 %v1532, %v1563
        %v1653 = vmul.f32 %v1536, %v1563
        %v1654 = vmul.f32 %v1540, %v1563
        %v1655 = vmul.f32 %v1544, %v1563
        %v1656 = vmul.f32 %v1548, %v1563
        %v1657 = vmul.f32 %v1552, %v1563
        %v1658 = vmul.f32 %v1556, %v1563
        %v1659 = vmul.f32 %v1560, %v1563
        %v1660 = vadd.f32 %v1274, %v1564
        %v1661 = vadd.f32 %v1275, %v1565
        %v1662 = vadd.f32 %v1276, %v1566
        %v1663 = vadd.f32 %v1277, %v1567
        %v1664 = vadd.f32 %v1278, %v1568
        %v1665 = vadd.f32 %v1279, %v1569
        %v1666 = vadd.f32 %v1280, %v1570
        %v1667 = vadd.f32 %v1281, %v1571
        %v1668 = vadd.f32 %v1282, %v1572
        %v1669 = vadd.f32 %v1283, %v1573
        %v1670 = vadd.f32 %v1284, %v1574
        %v1671 = vadd.f32 %v1285, %v1575
        %v1672 = vadd.f32 %v1286, %v1576
        %v1673 = vadd.f32 %v1287, %v1577
        %v1674 = vadd.f32 %v1288, %v1578
        %v1675 = vadd.f32 %v1289, %v1579
        %v1676 = vadd.f32 %v1290, %v1580
        %v1677 = vadd.f32 %v1291, %v1581
        %v1678 = vadd.f32 %v1292, %v1582
        %v1679 = vadd.f32 %v1293, %v1583
        %v1680 = vadd.f32 %v1294, %v1584
        %v1681 = vadd.f32 %v1295, %v1585
        %v1682 = vadd.f32 %v1296, %v1586
        %v1683 = vadd.f32 %v1297, %v1587
        %v1684 = vadd.f32 %v1298, %v1588
        %v1685 = vadd.f32 %v1299, %v1589
        %v1686 = vadd.f32 %v1300, %v1590
        %v1687 = vadd.f32 %v1301, %v1591
        %v1688 = vadd.f32 %v1302, %v1592
        %v1689 = vadd.f32 %v1303, %v1593
        %v1690 = vadd.f32 %v1304, %v1594
        %v1691 = vadd.f32 %v1305, %v1595
        %v1692 = vadd.f32 %v1306, %v1596
        %v1693 = vadd.f32 %v1307, %v1597
        %v1694 = vadd.f32 %v1308, %v1598
        %v1695 = vadd.f32 %v1309, %v1599
        %v1696 = vadd.f32 %v1310, %v1600
        %v1697 = vadd.f32 %v1311, %v1601
        %v1698 = vadd.f32 %v1312, %v1602
        %v1699 = vadd.f32 %v1313, %v1603
        %v1700 = vadd.f32 %v1314, %v1604
        %v1701 = vadd.f32 %v1315, %v1605
        %v1702 = vadd.f32 %v1316, %v1606
        %v1703 = vadd.f32 %v1317, %v1607
        %v1704 = vadd.f32 %v1318, %v1608
        %v1705 = vadd.f32 %v1319, %v1609
        %v1706 = vadd.f32 %v1320, %v1610
        %v1707 = vadd.f32 %v1321, %v1611
        %v1708 = vadd.f32 %v1322, %v1612
        %v1709 = vadd.f32 %v1323, %v1613
        %v1710 = vadd.f32 %v1324, %v1614
        %v1711 = vadd.f32 %v1325, %v1615
        %v1712 = vadd.f32 %v1326, %v1616
        %v1713 = vadd.f32 %v1327, %v1617
        %v1714 = vadd.f32 %v1328, %v1618
        %v1715 = vadd.f32 %v1329, %v1619
        %v1716 = vadd.f32 %v1330, %v1620
        %v1717 = vadd.f32 %v1331, %v1621
        %v1718 = vadd.f32 %v1332, %v1622
        %v1719 = vadd.f32 %v1333, %v1623
        %v1720 = vadd.f32 %v1334, %v1624
        %v1721 = vadd.f32 %v1335, %v1625
        %v1722 = vadd.f32 %v1336, %v1626
        %v1723 = vadd.f32 %v1337, %v1627
        %v1724 = vadd.f32 %v1338, %v1628
        %v1725 = vadd.f32 %v1339, %v1629
        %v1726 = vadd.f32 %v1340, %v1630
        %v1727 = vadd.f32 %v1341, %v1631
        %v1728 = vadd.f32 %v1342, %v1632
        %v1729 = vadd.f32 %v1343, %v1633
        %v1730 = vadd.f32 %v1344, %v1634
        %v1731 = vadd.f32 %v1345, %v1635
        %v1732 = vadd.f32 %v1346, %v1636
        %v1733 = vadd.f32 %v1347, %v1637
        %v1734 = vadd.f32 %v1348, %v1638
        %v1735 = vadd.f32 %v1349, %v1639
        %v1736 = vadd.f32 %v1350, %v1640
        %v1737 = vadd.f32 %v1351, %v1641
        %v1738 = vadd.f32 %v1352, %v1642
        %v1739 = vadd.f32 %v1353, %v1643
        %v1740 = vadd.f32 %v1354, %v1644
        %v1741 = vadd.f32 %v1355, %v1645
        %v1742 = vadd.f32 %v1356, %v1646
        %v1743 = vadd.f32 %v1357, %v1647
        %v1744 = vadd.f32 %v1358, %v1648
        %v1745 = vadd.f32 %v1359, %v1649
        %v1746 = vadd.f32 %v1360, %v1650
        %v1747 = vadd.f32 %v1361, %v1651
        %v1748 = vadd.f32 %v1362, %v1652
        %v1749 = vadd.f32 %v1363, %v1653
        %v1750 = vadd.f32 %v1364, %v1654
        %v1751 = vadd.f32 %v1365, %v1655
        %v1752 = vadd.f32 %v1366, %v1656
        %v1753 = vadd.f32 %v1367, %v1657
        %v1754 = vadd.f32 %v1368, %v1658
        %v1755 = vadd.f32 %v1369, %v1659
        %v1756 = vmax.f32 %v1660, 0.0
        %v1757 = vmax.f32 %v1661, 0.0
        %v1758 = vmax.f32 %v1662, 0.0
        %v1759 = vmax.f32 %v1663, 0.0
        %v1760 = vmax.f32 %v1664, 0.0
        %v1761 = vmax.f32 %v1665, 0.0
        %v1762 = vmax.f32 %v1666, 0.0
        %v1763 = vmax.f32 %v1667, 0.0
        %v1764 = vmax.f32 %v1668, 0.0
        %v1765 = vmax.f32 %v1669, 0.0
        %v1766 = vmax.f32 %v1670, 0.0
        %v1767 = vmax.f32 %v1671, 0.0
        %v1768 = vmax.f32 %v1672, 0.0
        %v1769 = vmax.f32 %v1673, 0.0
        %v1770 = vmax.f32 %v1674, 0.0
        %v1771 = vmax.f32 %v1675, 0.0
        %v1772 = vmax.f32 %v1676, 0.0
        %v1773 = vmax.f32 %v1677, 0.0
        %v1774 = vmax.f32 %v1678, 0.0
        %v1775 = vmax.f32 %v1679, 0.0
        %v1776 = vmax.f32 %v1680, 0.0
        %v1777 = vmax.f32 %v1681, 0.0
        %v1778 = vmax.f32 %v1682, 0.0
        %v1779 = vmax.f32 %v1683, 0.0
        %v1780 = vmax.f32 %v1684, 0.0
        %v1781 = vmax.f32 %v1685, 0.0
        %v1782 = vmax.f32 %v1686, 0.0
        %v1783 = vmax.f32 %v1687, 0.0
        %v1784 = vmax.f32 %v1688, 0.0
        %v1785 = vmax.f32 %v1689, 0.0
        %v1786 = vmax.f32 %v1690, 0.0
        %v1787 = vmax.f32 %v1691, 0.0
        %v1788 = vmax.f32 %v1692, 0.0
        %v1789 = vmax.f32 %v1693, 0.0
        %v1790 = vmax.f32 %v1694, 0.0
        %v1791 = vmax.f32 %v1695, 0.0
        %v1792 = vmax.f32 %v1696, 0.0
        %v1793 = vmax.f32 %v1697, 0.0
        %v1794 = vmax.f32 %v1698, 0.0
        %v1795 = vmax.f32 %v1699, 0.0
        %v1796 = vmax.f32 %v1700, 0.0
        %v1797 = vmax.f32 %v1701, 0.0
        %v1798 = vmax.f32 %v1702, 0.0
        %v1799 = vmax.f32 %v1703, 0.0
        %v1800 = vmax.f32 %v1704, 0.0
        %v1801 = vmax.f32 %v1705, 0.0
        %v1802 = vmax.f32 %v1706, 0.0
        %v1803 = vmax.f32 %v1707, 0.0
        %v1804 = vmax.f32 %v1708, 0.0
        %v1805 = vmax.f32 %v1709, 0.0
        %v1806 = vmax.f32 %v1710, 0.0
        %v1807 = vmax.f32 %v1711, 0.0
        %v1808 = vmax.f32 %v1712, 0.0
        %v1809 = vmax.f32 %v1713, 0.0
        %v1810 = vmax.f32 %v1714, 0.0
        %v1811 = vmax.f32 %v1715, 0.0
        %v1812 = vmax.f32 %v1716, 0.0
        %v1813 = vmax.f32 %v1717, 0.0
        %v1814 = vmax.f32 %v1718, 0.0
        %v1815 = vmax.f32 %v1719, 0.0
        %v1816 = vmax.f32 %v1720, 0.0
        %v1817 = vmax.f32 %v1721, 0.0
        %v1818 = vmax.f32 %v1722, 0.0
        %v1819 = vmax.f32 %v1723, 0.0
        %v1820 = vmax.f32 %v1724, 0.0
        %v1821 = vmax.f32 %v1725, 0.0
        %v1822 = vmax.f32 %v1726, 0.0
        %v1823 = vmax.f32 %v1727, 0.0
        %v1824 = vmax.f32 %v1728, 0.0
        %v1825 = vmax.f32 %v1729, 0.0
        %v1826 = vmax.f32 %v1730, 0.0
        %v1827 = vmax.f32 %v1731, 0.0
        %v1828 = vmax.f32 %v1732, 0.0
        %v1829 = vmax.f32 %v1733, 0.0
        %v1830 = vmax.f32 %v1734, 0.0
        %v1831 = vmax.f32 %v1735, 0.0
        %v1832 = vmax.f32 %v1736, 0.0
        %v1833 = vmax.f32 %v1737, 0.0
        %v1834 = vmax.f32 %v1738, 0.0
        %v1835 = vmax.f32 %v1739, 0.0
        %v1836 = vmax.f32 %v1740, 0.0
        %v1837 = vmax.f32 %v1741, 0.0
        %v1838 = vmax.f32 %v1742, 0.0
        %v1839 = vmax.f32 %v1743, 0.0
        %v1840 = vmax.f32 %v1744, 0.0
        %v1841 = vmax.f32 %v1745, 0.0
        %v1842 = vmax.f32 %v1746, 0.0
        %v1843 = vmax.f32 %v1747, 0.0
        %v1844 = vmax.f32 %v1748, 0.0
        %v1845 = vmax.f32 %v1749, 0.0
        %v1846 = vmax.f32 %v1750, 0.0
        %v1847 = vmax.f32 %v1751, 0.0
        %v1848 = vmax.f32 %v1752, 0.0
        %v1849 = vmax.f32 %v1753, 0.0
        %v1850 = vmax.f32 %v1754, 0.0
        %v1851 = vmax.f32 %v1755, 0.0
        %v1852 = vld [vmem:[#allocation2] sm:$0x3f]
        %1853 = vadd.xlane.f32.xlu0 %v1756
        %v1854 = vpop.xlane.xlu0 %1853
        %1855 = vadd.xlane.f32.xlu0 %v1757
        %v1856 = vpop.xlane.xlu0 %1855
        %1857 = vadd.xlane.f32.xlu0 %v1758
        %v1858 = vpop.xlane.xlu0 %1857
        %1859 = vadd.xlane.f32.xlu0 %v1759
        %v1860 = vpop.xlane.xlu0 %1859
        %1861 = vadd.xlane.f32.xlu0 %v1760
        %v1862 = vpop.xlane.xlu0 %1861
        %1863 = vadd.xlane.f32.xlu0 %v1761
        %v1864 = vpop.xlane.xlu0 %1863
        %1865 = vadd.xlane.f32.xlu0 %v1762
        %v1866 = vpop.xlane.xlu0 %1865
        %1867 = vadd.xlane.f32.xlu0 %v1763
        %v1868 = vpop.xlane.xlu0 %1867
        %1869 = vadd.xlane.f32.xlu0 %v1764
        %v1870 = vpop.xlane.xlu0 %1869
        %1871 = vadd.xlane.f32.xlu0 %v1765
        %v1872 = vpop.xlane.xlu0 %1871
        %1873 = vadd.xlane.f32.xlu0 %v1766
        %v1874 = vpop.xlane.xlu0 %1873
        %1875 = vadd.xlane.f32.xlu0 %v1767
        %v1876 = vpop.xlane.xlu0 %1875
        %1877 = vadd.xlane.f32.xlu0 %v1768
        %v1878 = vpop.xlane.xlu0 %1877
        %1879 = vadd.xlane.f32.xlu0 %v1769
        %v1880 = vpop.xlane.xlu0 %1879
        %1881 = vadd.xlane.f32.xlu0 %v1770
        %v1882 = vpop.xlane.xlu0 %1881
        %1883 = vadd.xlane.f32.xlu0 %v1771
        %v1884 = vpop.xlane.xlu0 %1883
        %1885 = vadd.xlane.f32.xlu0 %v1772
        %v1886 = vpop.xlane.xlu0 %1885
        %1887 = vadd.xlane.f32.xlu0 %v1773
        %v1888 = vpop.xlane.xlu0 %1887
        %1889 = vadd.xlane.f32.xlu0 %v1774
        %v1890 = vpop.xlane.xlu0 %1889
        %1891 = vadd.xlane.f32.xlu0 %v1775
        %v1892 = vpop.xlane.xlu0 %1891
        %1893 = vadd.xlane.f32.xlu0 %v1776
        %v1894 = vpop.xlane.xlu0 %1893
        %1895 = vadd.xlane.f32.xlu0 %v1777
        %v1896 = vpop.xlane.xlu0 %1895
        %1897 = vadd.xlane.f32.xlu0 %v1778
        %v1898 = vpop.xlane.xlu0 %1897
        %1899 = vadd.xlane.f32.xlu0 %v1779
        %v1900 = vpop.xlane.xlu0 %1899
        %1901 = vadd.xlane.f32.xlu0 %v1780
        %v1902 = vpop.xlane.xlu0 %1901
        %1903 = vadd.xlane.f32.xlu0 %v1781
        %v1904 = vpop.xlane.xlu0 %1903
        %1905 = vadd.xlane.f32.xlu0 %v1782
        %v1906 = vpop.xlane.xlu0 %1905
        %1907 = vadd.xlane.f32.xlu0 %v1783
        %v1908 = vpop.xlane.xlu0 %1907
        %1909 = vadd.xlane.f32.xlu0 %v1784
        %v1910 = vpop.xlane.xlu0 %1909
        %1911 = vadd.xlane.f32.xlu0 %v1785
        %v1912 = vpop.xlane.xlu0 %1911
        %1913 = vadd.xlane.f32.xlu0 %v1786
        %v1914 = vpop.xlane.xlu0 %1913
        %1915 = vadd.xlane.f32.xlu0 %v1787
        %v1916 = vpop.xlane.xlu0 %1915
        %1917 = vadd.xlane.f32.xlu0 %v1788
        %v1918 = vpop.xlane.xlu0 %1917
        %1919 = vadd.xlane.f32.xlu0 %v1789
        %v1920 = vpop.xlane.xlu0 %1919
        %1921 = vadd.xlane.f32.xlu0 %v1790
        %v1922 = vpop.xlane.xlu0 %1921
        %1923 = vadd.xlane.f32.xlu0 %v1791
        %v1924 = vpop.xlane.xlu0 %1923
        %1925 = vadd.xlane.f32.xlu0 %v1792
        %v1926 = vpop.xlane.xlu0 %1925
        %1927 = vadd.xlane.f32.xlu0 %v1793
        %v1928 = vpop.xlane.xlu0 %1927
        %1929 = vadd.xlane.f32.xlu0 %v1794
        %v1930 = vpop.xlane.xlu0 %1929
        %1931 = vadd.xlane.f32.xlu0 %v1795
        %v1932 = vpop.xlane.xlu0 %1931
        %1933 = vadd.xlane.f32.xlu0 %v1796
        %v1934 = vpop.xlane.xlu0 %1933
        %1935 = vadd.xlane.f32.xlu0 %v1797
        %v1936 = vpop.xlane.xlu0 %1935
        %1937 = vadd.xlane.f32.xlu0 %v1798
        %v1938 = vpop.xlane.xlu0 %1937
        %1939 = vadd.xlane.f32.xlu0 %v1799
        %v1940 = vpop.xlane.xlu0 %1939
        %1941 = vadd.xlane.f32.xlu0 %v1800
        %v1942 = vpop.xlane.xlu0 %1941
        %1943 = vadd.xlane.f32.xlu0 %v1801
        %v1944 = vpop.xlane.xlu0 %1943
        %1945 = vadd.xlane.f32.xlu0 %v1802
        %v1946 = vpop.xlane.xlu0 %1945
        %1947 = vadd.xlane.f32.xlu0 %v1803
        %v1948 = vpop.xlane.xlu0 %1947
        %1949 = vadd.xlane.f32.xlu0 %v1804
        %v1950 = vpop.xlane.xlu0 %1949
        %1951 = vadd.xlane.f32.xlu0 %v1805
        %v1952 = vpop.xlane.xlu0 %1951
        %1953 = vadd.xlane.f32.xlu0 %v1806
        %v1954 = vpop.xlane.xlu0 %1953
        %1955 = vadd.xlane.f32.xlu0 %v1807
        %v1956 = vpop.xlane.xlu0 %1955
        %1957 = vadd.xlane.f32.xlu0 %v1808
        %v1958 = vpop.xlane.xlu0 %1957
        %1959 = vadd.xlane.f32.xlu0 %v1809
        %v1960 = vpop.xlane.xlu0 %1959
        %1961 = vadd.xlane.f32.xlu0 %v1810
        %v1962 = vpop.xlane.xlu0 %1961
        %1963 = vadd.xlane.f32.xlu0 %v1811
        %v1964 = vpop.xlane.xlu0 %1963
        %1965 = vadd.xlane.f32.xlu0 %v1812
        %v1966 = vpop.xlane.xlu0 %1965
        %1967 = vadd.xlane.f32.xlu0 %v1813
        %v1968 = vpop.xlane.xlu0 %1967
        %1969 = vadd.xlane.f32.xlu0 %v1814
        %v1970 = vpop.xlane.xlu0 %1969
        %1971 = vadd.xlane.f32.xlu0 %v1815
        %v1972 = vpop.xlane.xlu0 %1971
        %1973 = vadd.xlane.f32.xlu0 %v1816
        %v1974 = vpop.xlane.xlu0 %1973
        %1975 = vadd.xlane.f32.xlu0 %v1817
        %v1976 = vpop.xlane.xlu0 %1975
        %1977 = vadd.xlane.f32.xlu0 %v1818
        %v1978 = vpop.xlane.xlu0 %1977
        %1979 = vadd.xlane.f32.xlu0 %v1819
        %v1980 = vpop.xlane.xlu0 %1979
        %1981 = vadd.xlane.f32.xlu0 %v1820
        %v1982 = vpop.xlane.xlu0 %1981
        %1983 = vadd.xlane.f32.xlu0 %v1821
        %v1984 = vpop.xlane.xlu0 %1983
        %1985 = vadd.xlane.f32.xlu0 %v1822
        %v1986 = vpop.xlane.xlu0 %1985
        %1987 = vadd.xlane.f32.xlu0 %v1823
        %v1988 = vpop.xlane.xlu0 %1987
        %1989 = vadd.xlane.f32.xlu0 %v1824
        %v1990 = vpop.xlane.xlu0 %1989
        %1991 = vadd.xlane.f32.xlu0 %v1825
        %v1992 = vpop.xlane.xlu0 %1991
        %1993 = vadd.xlane.f32.xlu0 %v1826
        %v1994 = vpop.xlane.xlu0 %1993
        %1995 = vadd.xlane.f32.xlu0 %v1827
        %v1996 = vpop.xlane.xlu0 %1995
        %1997 = vadd.xlane.f32.xlu0 %v1828
        %v1998 = vpop.xlane.xlu0 %1997
        %1999 = vadd.xlane.f32.xlu0 %v1829
        %v2000 = vpop.xlane.xlu0 %1999
        %2001 = vadd.xlane.f32.xlu0 %v1830
        %v2002 = vpop.xlane.xlu0 %2001
        %2003 = vadd.xlane.f32.xlu0 %v1831
        %v2004 = vpop.xlane.xlu0 %2003
        %2005 = vadd.xlane.f32.xlu0 %v1832
        %v2006 = vpop.xlane.xlu0 %2005
        %2007 = vadd.xlane.f32.xlu0 %v1833
        %v2008 = vpop.xlane.xlu0 %2007
        %2009 = vadd.xlane.f32.xlu0 %v1834
        %v2010 = vpop.xlane.xlu0 %2009
        %2011 = vadd.xlane.f32.xlu0 %v1835
        %v2012 = vpop.xlane.xlu0 %2011
        %2013 = vadd.xlane.f32.xlu0 %v1836
        %v2014 = vpop.xlane.xlu0 %2013
        %2015 = vadd.xlane.f32.xlu0 %v1837
        %v2016 = vpop.xlane.xlu0 %2015
        %2017 = vadd.xlane.f32.xlu0 %v1838
        %v2018 = vpop.xlane.xlu0 %2017
        %2019 = vadd.xlane.f32.xlu0 %v1839
        %v2020 = vpop.xlane.xlu0 %2019
        %2021 = vadd.xlane.f32.xlu0 %v1840
        %v2022 = vpop.xlane.xlu0 %2021
        %2023 = vadd.xlane.f32.xlu0 %v1841
        %v2024 = vpop.xlane.xlu0 %2023
        %2025 = vadd.xlane.f32.xlu0 %v1842
        %v2026 = vpop.xlane.xlu0 %2025
        %2027 = vadd.xlane.f32.xlu0 %v1843
        %v2028 = vpop.xlane.xlu0 %2027
        %2029 = vadd.xlane.f32.xlu0 %v1844
        %v2030 = vpop.xlane.xlu0 %2029
        %2031 = vadd.xlane.f32.xlu0 %v1845
        %v2032 = vpop.xlane.xlu0 %2031
        %2033 = vadd.xlane.f32.xlu0 %v1846
        %v2034 = vpop.xlane.xlu0 %2033
        %2035 = vadd.xlane.f32.xlu0 %v1847
        %v2036 = vpop.xlane.xlu0 %2035
        %2037 = vadd.xlane.f32.xlu0 %v1848
        %v2038 = vpop.xlane.xlu0 %2037
        %2039 = vadd.xlane.f32.xlu0 %v1849
        %v2040 = vpop.xlane.xlu0 %2039
        %2041 = vadd.xlane.f32.xlu0 %v1850
        %v2042 = vpop.xlane.xlu0 %2041
        %2043 = vadd.xlane.f32.xlu0 %v1851
        %v2044 = vpop.xlane.xlu0 %2043
        %v2142 = vunpack.c.l.s4 269488144
        %v2143 = vunpack.c.0.s8 %v2142
        %v2144 = vperm.slane %v1854, %v2143
        %v2146 = vunpack.c.l.s4 842150450
        %v2147 = vunpack.c.0.s8 %v2146
        %v2148 = vperm.slane %v1854, %v2147
        %v2150 = vunpack.c.l.s4 1414812756
        %v2151 = vunpack.c.0.s8 %v2150
        %v2152 = vperm.slane %v1854, %v2151
        %v2154 = vunpack.c.l.s4 1987475062
        %v2155 = vunpack.c.0.s8 %v2154
        %v2156 = vperm.slane %v1854, %v2155
        %v2158 = vunpack.c.l.s4 269488144
        %v2159 = vunpack.c.0.s8 %v2158
        %v2160 = vperm.slane %v1856, %v2159
        %v2162 = vunpack.c.l.s4 842150450
        %v2163 = vunpack.c.0.s8 %v2162
        %v2164 = vperm.slane %v1856, %v2163
        %v2166 = vunpack.c.l.s4 1414812756
        %v2167 = vunpack.c.0.s8 %v2166
        %v2168 = vperm.slane %v1856, %v2167
        %v2170 = vunpack.c.l.s4 1987475062
        %v2171 = vunpack.c.0.s8 %v2170
        %v2172 = vperm.slane %v1856, %v2171
        %v2174 = vunpack.c.l.s4 269488144
        %v2175 = vunpack.c.0.s8 %v2174
        %v2176 = vperm.slane %v1858, %v2175
        %v2178 = vunpack.c.l.s4 842150450
        %v2179 = vunpack.c.0.s8 %v2178
        %v2180 = vperm.slane %v1858, %v2179
        %v2182 = vunpack.c.l.s4 1414812756
        %v2183 = vunpack.c.0.s8 %v2182
        %v2184 = vperm.slane %v1858, %v2183
        %v2186 = vunpack.c.l.s4 1987475062
        %v2187 = vunpack.c.0.s8 %v2186
        %v2188 = vperm.slane %v1858, %v2187
        %v2190 = vunpack.c.l.s4 269488144
        %v2191 = vunpack.c.0.s8 %v2190
        %v2192 = vperm.slane %v1860, %v2191
        %v2194 = vunpack.c.l.s4 842150450
        %v2195 = vunpack.c.0.s8 %v2194
        %v2196 = vperm.slane %v1860, %v2195
        %v2198 = vunpack.c.l.s4 1414812756
        %v2199 = vunpack.c.0.s8 %v2198
        %v2200 = vperm.slane %v1860, %v2199
        %v2202 = vunpack.c.l.s4 1987475062
        %v2203 = vunpack.c.0.s8 %v2202
        %v2204 = vperm.slane %v1860, %v2203
        %v2206 = vunpack.c.l.s4 269488144
        %v2207 = vunpack.c.0.s8 %v2206
        %v2208 = vperm.slane %v1862, %v2207
        %v2210 = vunpack.c.l.s4 842150450
        %v2211 = vunpack.c.0.s8 %v2210
        %v2212 = vperm.slane %v1862, %v2211
        %v2214 = vunpack.c.l.s4 1414812756
        %v2215 = vunpack.c.0.s8 %v2214
        %v2216 = vperm.slane %v1862, %v2215
        %v2218 = vunpack.c.l.s4 1987475062
        %v2219 = vunpack.c.0.s8 %v2218
        %v2220 = vperm.slane %v1862, %v2219
        %v2222 = vunpack.c.l.s4 269488144
        %v2223 = vunpack.c.0.s8 %v2222
        %v2224 = vperm.slane %v1864, %v2223
        %v2226 = vunpack.c.l.s4 842150450
        %v2227 = vunpack.c.0.s8 %v2226
        %v2228 = vperm.slane %v1864, %v2227
        %v2230 = vunpack.c.l.s4 1414812756
        %v2231 = vunpack.c.0.s8 %v2230
        %v2232 = vperm.slane %v1864, %v2231
        %v2234 = vunpack.c.l.s4 1987475062
        %v2235 = vunpack.c.0.s8 %v2234
        %v2236 = vperm.slane %v1864, %v2235
        %v2238 = vunpack.c.l.s4 269488144
        %v2239 = vunpack.c.0.s8 %v2238
        %v2240 = vperm.slane %v1866, %v2239
        %v2242 = vunpack.c.l.s4 842150450
        %v2243 = vunpack.c.0.s8 %v2242
        %v2244 = vperm.slane %v1866, %v2243
        %v2246 = vunpack.c.l.s4 1414812756
        %v2247 = vunpack.c.0.s8 %v2246
        %v2248 = vperm.slane %v1866, %v2247
        %v2250 = vunpack.c.l.s4 1987475062
        %v2251 = vunpack.c.0.s8 %v2250
        %v2252 = vperm.slane %v1866, %v2251
        %v2254 = vunpack.c.l.s4 269488144
        %v2255 = vunpack.c.0.s8 %v2254
        %v2256 = vperm.slane %v1868, %v2255
        %v2258 = vunpack.c.l.s4 842150450
        %v2259 = vunpack.c.0.s8 %v2258
        %v2260 = vperm.slane %v1868, %v2259
        %v2262 = vunpack.c.l.s4 1414812756
        %v2263 = vunpack.c.0.s8 %v2262
        %v2264 = vperm.slane %v1868, %v2263
        %v2266 = vunpack.c.l.s4 1987475062
        %v2267 = vunpack.c.0.s8 %v2266
        %v2268 = vperm.slane %v1868, %v2267
        %v2270 = vunpack.c.l.s4 269488144
        %v2271 = vunpack.c.0.s8 %v2270
        %v2272 = vperm.slane %v1870, %v2271
        %v2274 = vunpack.c.l.s4 842150450
        %v2275 = vunpack.c.0.s8 %v2274
        %v2276 = vperm.slane %v1870, %v2275
        %v2278 = vunpack.c.l.s4 1414812756
        %v2279 = vunpack.c.0.s8 %v2278
        %v2280 = vperm.slane %v1870, %v2279
        %v2282 = vunpack.c.l.s4 1987475062
        %v2283 = vunpack.c.0.s8 %v2282
        %v2284 = vperm.slane %v1870, %v2283
        %v2286 = vunpack.c.l.s4 269488144
        %v2287 = vunpack.c.0.s8 %v2286
        %v2288 = vperm.slane %v1872, %v2287
        %v2290 = vunpack.c.l.s4 842150450
        %v2291 = vunpack.c.0.s8 %v2290
        %v2292 = vperm.slane %v1872, %v2291
        %v2294 = vunpack.c.l.s4 1414812756
        %v2295 = vunpack.c.0.s8 %v2294
        %v2296 = vperm.slane %v1872, %v2295
        %v2298 = vunpack.c.l.s4 1987475062
        %v2299 = vunpack.c.0.s8 %v2298
        %v2300 = vperm.slane %v1872, %v2299
        %v2302 = vunpack.c.l.s4 269488144
        %v2303 = vunpack.c.0.s8 %v2302
        %v2304 = vperm.slane %v1874, %v2303
        %v2306 = vunpack.c.l.s4 842150450
        %v2307 = vunpack.c.0.s8 %v2306
        %v2308 = vperm.slane %v1874, %v2307
        %v2310 = vunpack.c.l.s4 1414812756
        %v2311 = vunpack.c.0.s8 %v2310
        %v2312 = vperm.slane %v1874, %v2311
        %v2314 = vunpack.c.l.s4 1987475062
        %v2315 = vunpack.c.0.s8 %v2314
        %v2316 = vperm.slane %v1874, %v2315
        %v2318 = vunpack.c.l.s4 269488144
        %v2319 = vunpack.c.0.s8 %v2318
        %v2320 = vperm.slane %v1876, %v2319
        %v2322 = vunpack.c.l.s4 842150450
        %v2323 = vunpack.c.0.s8 %v2322
        %v2324 = vperm.slane %v1876, %v2323
        %v2326 = vunpack.c.l.s4 1414812756
        %v2327 = vunpack.c.0.s8 %v2326
        %v2328 = vperm.slane %v1876, %v2327
        %v2330 = vunpack.c.l.s4 1987475062
        %v2331 = vunpack.c.0.s8 %v2330
        %v2332 = vperm.slane %v1876, %v2331
        %v2334 = vunpack.c.l.s4 269488144
        %v2335 = vunpack.c.0.s8 %v2334
        %v2336 = vperm.slane %v1878, %v2335
        %v2338 = vunpack.c.l.s4 842150450
        %v2339 = vunpack.c.0.s8 %v2338
        %v2340 = vperm.slane %v1878, %v2339
        %v2342 = vunpack.c.l.s4 1414812756
        %v2343 = vunpack.c.0.s8 %v2342
        %v2344 = vperm.slane %v1878, %v2343
        %v2346 = vunpack.c.l.s4 1987475062
        %v2347 = vunpack.c.0.s8 %v2346
        %v2348 = vperm.slane %v1878, %v2347
        %v2350 = vunpack.c.l.s4 269488144
        %v2351 = vunpack.c.0.s8 %v2350
        %v2352 = vperm.slane %v1880, %v2351
        %v2354 = vunpack.c.l.s4 842150450
        %v2355 = vunpack.c.0.s8 %v2354
        %v2356 = vperm.slane %v1880, %v2355
        %v2358 = vunpack.c.l.s4 1414812756
        %v2359 = vunpack.c.0.s8 %v2358
        %v2360 = vperm.slane %v1880, %v2359
        %v2362 = vunpack.c.l.s4 1987475062
        %v2363 = vunpack.c.0.s8 %v2362
        %v2364 = vperm.slane %v1880, %v2363
        %v2366 = vunpack.c.l.s4 269488144
        %v2367 = vunpack.c.0.s8 %v2366
        %v2368 = vperm.slane %v1882, %v2367
        %v2370 = vunpack.c.l.s4 842150450
        %v2371 = vunpack.c.0.s8 %v2370
        %v2372 = vperm.slane %v1882, %v2371
        %v2374 = vunpack.c.l.s4 1414812756
        %v2375 = vunpack.c.0.s8 %v2374
        %v2376 = vperm.slane %v1882, %v2375
        %v2378 = vunpack.c.l.s4 1987475062
        %v2379 = vunpack.c.0.s8 %v2378
        %v2380 = vperm.slane %v1882, %v2379
        %v2382 = vunpack.c.l.s4 269488144
        %v2383 = vunpack.c.0.s8 %v2382
        %v2384 = vperm.slane %v1884, %v2383
        %v2386 = vunpack.c.l.s4 842150450
        %v2387 = vunpack.c.0.s8 %v2386
        %v2388 = vperm.slane %v1884, %v2387
        %v2390 = vunpack.c.l.s4 1414812756
        %v2391 = vunpack.c.0.s8 %v2390
        %v2392 = vperm.slane %v1884, %v2391
        %v2394 = vunpack.c.l.s4 1987475062
        %v2395 = vunpack.c.0.s8 %v2394
        %v2396 = vperm.slane %v1884, %v2395
        %v2398 = vunpack.c.l.s4 269488144
        %v2399 = vunpack.c.0.s8 %v2398
        %v2400 = vperm.slane %v1886, %v2399
        %v2402 = vunpack.c.l.s4 842150450
        %v2403 = vunpack.c.0.s8 %v2402
        %v2404 = vperm.slane %v1886, %v2403
        %v2406 = vunpack.c.l.s4 1414812756
        %v2407 = vunpack.c.0.s8 %v2406
        %v2408 = vperm.slane %v1886, %v2407
        %v2410 = vunpack.c.l.s4 1987475062
        %v2411 = vunpack.c.0.s8 %v2410
        %v2412 = vperm.slane %v1886, %v2411
        %v2414 = vunpack.c.l.s4 269488144
        %v2415 = vunpack.c.0.s8 %v2414
        %v2416 = vperm.slane %v1888, %v2415
        %v2418 = vunpack.c.l.s4 842150450
        %v2419 = vunpack.c.0.s8 %v2418
        %v2420 = vperm.slane %v1888, %v2419
        %v2422 = vunpack.c.l.s4 1414812756
        %v2423 = vunpack.c.0.s8 %v2422
        %v2424 = vperm.slane %v1888, %v2423
        %v2426 = vunpack.c.l.s4 1987475062
        %v2427 = vunpack.c.0.s8 %v2426
        %v2428 = vperm.slane %v1888, %v2427
        %v2430 = vunpack.c.l.s4 269488144
        %v2431 = vunpack.c.0.s8 %v2430
        %v2432 = vperm.slane %v1890, %v2431
        %v2434 = vunpack.c.l.s4 842150450
        %v2435 = vunpack.c.0.s8 %v2434
        %v2436 = vperm.slane %v1890, %v2435
        %v2438 = vunpack.c.l.s4 1414812756
        %v2439 = vunpack.c.0.s8 %v2438
        %v2440 = vperm.slane %v1890, %v2439
        %v2442 = vunpack.c.l.s4 1987475062
        %v2443 = vunpack.c.0.s8 %v2442
        %v2444 = vperm.slane %v1890, %v2443
        %v2446 = vunpack.c.l.s4 269488144
        %v2447 = vunpack.c.0.s8 %v2446
        %v2448 = vperm.slane %v1892, %v2447
        %v2450 = vunpack.c.l.s4 842150450
        %v2451 = vunpack.c.0.s8 %v2450
        %v2452 = vperm.slane %v1892, %v2451
        %v2454 = vunpack.c.l.s4 1414812756
        %v2455 = vunpack.c.0.s8 %v2454
        %v2456 = vperm.slane %v1892, %v2455
        %v2458 = vunpack.c.l.s4 1987475062
        %v2459 = vunpack.c.0.s8 %v2458
        %v2460 = vperm.slane %v1892, %v2459
        %v2462 = vunpack.c.l.s4 269488144
        %v2463 = vunpack.c.0.s8 %v2462
        %v2464 = vperm.slane %v1894, %v2463
        %v2466 = vunpack.c.l.s4 842150450
        %v2467 = vunpack.c.0.s8 %v2466
        %v2468 = vperm.slane %v1894, %v2467
        %v2470 = vunpack.c.l.s4 1414812756
        %v2471 = vunpack.c.0.s8 %v2470
        %v2472 = vperm.slane %v1894, %v2471
        %v2474 = vunpack.c.l.s4 1987475062
        %v2475 = vunpack.c.0.s8 %v2474
        %v2476 = vperm.slane %v1894, %v2475
        %v2478 = vunpack.c.l.s4 269488144
        %v2479 = vunpack.c.0.s8 %v2478
        %v2480 = vperm.slane %v1896, %v2479
        %v2482 = vunpack.c.l.s4 842150450
        %v2483 = vunpack.c.0.s8 %v2482
        %v2484 = vperm.slane %v1896, %v2483
        %v2486 = vunpack.c.l.s4 1414812756
        %v2487 = vunpack.c.0.s8 %v2486
        %v2488 = vperm.slane %v1896, %v2487
        %v2490 = vunpack.c.l.s4 1987475062
        %v2491 = vunpack.c.0.s8 %v2490
        %v2492 = vperm.slane %v1896, %v2491
        %v2494 = vunpack.c.l.s4 269488144
        %v2495 = vunpack.c.0.s8 %v2494
        %v2496 = vperm.slane %v1898, %v2495
        %v2498 = vunpack.c.l.s4 842150450
        %v2499 = vunpack.c.0.s8 %v2498
        %v2500 = vperm.slane %v1898, %v2499
        %v2502 = vunpack.c.l.s4 1414812756
        %v2503 = vunpack.c.0.s8 %v2502
        %v2504 = vperm.slane %v1898, %v2503
        %v2506 = vunpack.c.l.s4 1987475062
        %v2507 = vunpack.c.0.s8 %v2506
        %v2508 = vperm.slane %v1898, %v2507
        %v2510 = vunpack.c.l.s4 269488144
        %v2511 = vunpack.c.0.s8 %v2510
        %v2512 = vperm.slane %v1900, %v2511
        %v2514 = vunpack.c.l.s4 842150450
        %v2515 = vunpack.c.0.s8 %v2514
        %v2516 = vperm.slane %v1900, %v2515
        %v2518 = vunpack.c.l.s4 1414812756
        %v2519 = vunpack.c.0.s8 %v2518
        %v2520 = vperm.slane %v1900, %v2519
        %v2522 = vunpack.c.l.s4 1987475062
        %v2523 = vunpack.c.0.s8 %v2522
        %v2524 = vperm.slane %v1900, %v2523
        %v2526 = vunpack.c.l.s4 269488144
        %v2527 = vunpack.c.0.s8 %v2526
        %v2528 = vperm.slane %v1902, %v2527
        %v2530 = vunpack.c.l.s4 842150450
        %v2531 = vunpack.c.0.s8 %v2530
        %v2532 = vperm.slane %v1902, %v2531
        %v2534 = vunpack.c.l.s4 1414812756
        %v2535 = vunpack.c.0.s8 %v2534
        %v2536 = vperm.slane %v1902, %v2535
        %v2538 = vunpack.c.l.s4 1987475062
        %v2539 = vunpack.c.0.s8 %v2538
        %v2540 = vperm.slane %v1902, %v2539
        %v2542 = vunpack.c.l.s4 269488144
        %v2543 = vunpack.c.0.s8 %v2542
        %v2544 = vperm.slane %v1904, %v2543
        %v2546 = vunpack.c.l.s4 842150450
        %v2547 = vunpack.c.0.s8 %v2546
        %v2548 = vperm.slane %v1904, %v2547
        %v2550 = vunpack.c.l.s4 1414812756
        %v2551 = vunpack.c.0.s8 %v2550
        %v2552 = vperm.slane %v1904, %v2551
        %v2554 = vunpack.c.l.s4 1987475062
        %v2555 = vunpack.c.0.s8 %v2554
        %v2556 = vperm.slane %v1904, %v2555
        %v2558 = vunpack.c.l.s4 269488144
        %v2559 = vunpack.c.0.s8 %v2558
        %v2560 = vperm.slane %v1906, %v2559
        %v2562 = vunpack.c.l.s4 842150450
        %v2563 = vunpack.c.0.s8 %v2562
        %v2564 = vperm.slane %v1906, %v2563
        %v2566 = vunpack.c.l.s4 1414812756
        %v2567 = vunpack.c.0.s8 %v2566
        %v2568 = vperm.slane %v1906, %v2567
        %v2570 = vunpack.c.l.s4 1987475062
        %v2571 = vunpack.c.0.s8 %v2570
        %v2572 = vperm.slane %v1906, %v2571
        %v2574 = vunpack.c.l.s4 269488144
        %v2575 = vunpack.c.0.s8 %v2574
        %v2576 = vperm.slane %v1908, %v2575
        %v2578 = vunpack.c.l.s4 842150450
        %v2579 = vunpack.c.0.s8 %v2578
        %v2580 = vperm.slane %v1908, %v2579
        %v2582 = vunpack.c.l.s4 1414812756
        %v2583 = vunpack.c.0.s8 %v2582
        %v2584 = vperm.slane %v1908, %v2583
        %v2586 = vunpack.c.l.s4 1987475062
        %v2587 = vunpack.c.0.s8 %v2586
        %v2588 = vperm.slane %v1908, %v2587
        %v2590 = vunpack.c.l.s4 269488144
        %v2591 = vunpack.c.0.s8 %v2590
        %v2592 = vperm.slane %v1910, %v2591
        %v2594 = vunpack.c.l.s4 842150450
        %v2595 = vunpack.c.0.s8 %v2594
        %v2596 = vperm.slane %v1910, %v2595
        %v2598 = vunpack.c.l.s4 1414812756
        %v2599 = vunpack.c.0.s8 %v2598
        %v2600 = vperm.slane %v1910, %v2599
        %v2602 = vunpack.c.l.s4 1987475062
        %v2603 = vunpack.c.0.s8 %v2602
        %v2604 = vperm.slane %v1910, %v2603
        %v2606 = vunpack.c.l.s4 269488144
        %v2607 = vunpack.c.0.s8 %v2606
        %v2608 = vperm.slane %v1912, %v2607
        %v2610 = vunpack.c.l.s4 842150450
        %v2611 = vunpack.c.0.s8 %v2610
        %v2612 = vperm.slane %v1912, %v2611
        %v2614 = vunpack.c.l.s4 1414812756
        %v2615 = vunpack.c.0.s8 %v2614
        %v2616 = vperm.slane %v1912, %v2615
        %v2618 = vunpack.c.l.s4 1987475062
        %v2619 = vunpack.c.0.s8 %v2618
        %v2620 = vperm.slane %v1912, %v2619
        %v2622 = vunpack.c.l.s4 269488144
        %v2623 = vunpack.c.0.s8 %v2622
        %v2624 = vperm.slane %v1914, %v2623
        %v2626 = vunpack.c.l.s4 842150450
        %v2627 = vunpack.c.0.s8 %v2626
        %v2628 = vperm.slane %v1914, %v2627
        %v2630 = vunpack.c.l.s4 1414812756
        %v2631 = vunpack.c.0.s8 %v2630
        %v2632 = vperm.slane %v1914, %v2631
        %v2634 = vunpack.c.l.s4 1987475062
        %v2635 = vunpack.c.0.s8 %v2634
        %v2636 = vperm.slane %v1914, %v2635
        %v2638 = vunpack.c.l.s4 269488144
        %v2639 = vunpack.c.0.s8 %v2638
        %v2640 = vperm.slane %v1916, %v2639
        %v2642 = vunpack.c.l.s4 842150450
        %v2643 = vunpack.c.0.s8 %v2642
        %v2644 = vperm.slane %v1916, %v2643
        %v2646 = vunpack.c.l.s4 1414812756
        %v2647 = vunpack.c.0.s8 %v2646
        %v2648 = vperm.slane %v1916, %v2647
        %v2650 = vunpack.c.l.s4 1987475062
        %v2651 = vunpack.c.0.s8 %v2650
        %v2652 = vperm.slane %v1916, %v2651
        %v2654 = vunpack.c.l.s4 269488144
        %v2655 = vunpack.c.0.s8 %v2654
        %v2656 = vperm.slane %v1918, %v2655
        %v2658 = vunpack.c.l.s4 842150450
        %v2659 = vunpack.c.0.s8 %v2658
        %v2660 = vperm.slane %v1918, %v2659
        %v2662 = vunpack.c.l.s4 1414812756
        %v2663 = vunpack.c.0.s8 %v2662
        %v2664 = vperm.slane %v1918, %v2663
        %v2666 = vunpack.c.l.s4 1987475062
        %v2667 = vunpack.c.0.s8 %v2666
        %v2668 = vperm.slane %v1918, %v2667
        %v2670 = vunpack.c.l.s4 269488144
        %v2671 = vunpack.c.0.s8 %v2670
        %v2672 = vperm.slane %v1920, %v2671
        %v2674 = vunpack.c.l.s4 842150450
        %v2675 = vunpack.c.0.s8 %v2674
        %v2676 = vperm.slane %v1920, %v2675
        %v2678 = vunpack.c.l.s4 1414812756
        %v2679 = vunpack.c.0.s8 %v2678
        %v2680 = vperm.slane %v1920, %v2679
        %v2682 = vunpack.c.l.s4 1987475062
        %v2683 = vunpack.c.0.s8 %v2682
        %v2684 = vperm.slane %v1920, %v2683
        %v2686 = vunpack.c.l.s4 269488144
        %v2687 = vunpack.c.0.s8 %v2686
        %v2688 = vperm.slane %v1922, %v2687
        %v2690 = vunpack.c.l.s4 842150450
        %v2691 = vunpack.c.0.s8 %v2690
        %v2692 = vperm.slane %v1922, %v2691
        %v2694 = vunpack.c.l.s4 1414812756
        %v2695 = vunpack.c.0.s8 %v2694
        %v2696 = vperm.slane %v1922, %v2695
        %v2698 = vunpack.c.l.s4 1987475062
        %v2699 = vunpack.c.0.s8 %v2698
        %v2700 = vperm.slane %v1922, %v2699
        %v2702 = vunpack.c.l.s4 269488144
        %v2703 = vunpack.c.0.s8 %v2702
        %v2704 = vperm.slane %v1924, %v2703
        %v2706 = vunpack.c.l.s4 842150450
        %v2707 = vunpack.c.0.s8 %v2706
        %v2708 = vperm.slane %v1924, %v2707
        %v2710 = vunpack.c.l.s4 1414812756
        %v2711 = vunpack.c.0.s8 %v2710
        %v2712 = vperm.slane %v1924, %v2711
        %v2714 = vunpack.c.l.s4 1987475062
        %v2715 = vunpack.c.0.s8 %v2714
        %v2716 = vperm.slane %v1924, %v2715
        %v2718 = vunpack.c.l.s4 269488144
        %v2719 = vunpack.c.0.s8 %v2718
        %v2720 = vperm.slane %v1926, %v2719
        %v2722 = vunpack.c.l.s4 842150450
        %v2723 = vunpack.c.0.s8 %v2722
        %v2724 = vperm.slane %v1926, %v2723
        %v2726 = vunpack.c.l.s4 1414812756
        %v2727 = vunpack.c.0.s8 %v2726
        %v2728 = vperm.slane %v1926, %v2727
        %v2730 = vunpack.c.l.s4 1987475062
        %v2731 = vunpack.c.0.s8 %v2730
        %v2732 = vperm.slane %v1926, %v2731
        %v2734 = vunpack.c.l.s4 269488144
        %v2735 = vunpack.c.0.s8 %v2734
        %v2736 = vperm.slane %v1928, %v2735
        %v2738 = vunpack.c.l.s4 842150450
        %v2739 = vunpack.c.0.s8 %v2738
        %v2740 = vperm.slane %v1928, %v2739
        %v2742 = vunpack.c.l.s4 1414812756
        %v2743 = vunpack.c.0.s8 %v2742
        %v2744 = vperm.slane %v1928, %v2743
        %v2746 = vunpack.c.l.s4 1987475062
        %v2747 = vunpack.c.0.s8 %v2746
        %v2748 = vperm.slane %v1928, %v2747
        %v2750 = vunpack.c.l.s4 269488144
        %v2751 = vunpack.c.0.s8 %v2750
        %v2752 = vperm.slane %v1930, %v2751
        %v2754 = vunpack.c.l.s4 842150450
        %v2755 = vunpack.c.0.s8 %v2754
        %v2756 = vperm.slane %v1930, %v2755
        %v2758 = vunpack.c.l.s4 1414812756
        %v2759 = vunpack.c.0.s8 %v2758
        %v2760 = vperm.slane %v1930, %v2759
        %v2762 = vunpack.c.l.s4 1987475062
        %v2763 = vunpack.c.0.s8 %v2762
        %v2764 = vperm.slane %v1930, %v2763
        %v2766 = vunpack.c.l.s4 269488144
        %v2767 = vunpack.c.0.s8 %v2766
        %v2768 = vperm.slane %v1932, %v2767
        %v2770 = vunpack.c.l.s4 842150450
        %v2771 = vunpack.c.0.s8 %v2770
        %v2772 = vperm.slane %v1932, %v2771
        %v2774 = vunpack.c.l.s4 1414812756
        %v2775 = vunpack.c.0.s8 %v2774
        %v2776 = vperm.slane %v1932, %v2775
        %v2778 = vunpack.c.l.s4 1987475062
        %v2779 = vunpack.c.0.s8 %v2778
        %v2780 = vperm.slane %v1932, %v2779
        %v2782 = vunpack.c.l.s4 269488144
        %v2783 = vunpack.c.0.s8 %v2782
        %v2784 = vperm.slane %v1934, %v2783
        %v2786 = vunpack.c.l.s4 842150450
        %v2787 = vunpack.c.0.s8 %v2786
        %v2788 = vperm.slane %v1934, %v2787
        %v2790 = vunpack.c.l.s4 1414812756
        %v2791 = vunpack.c.0.s8 %v2790
        %v2792 = vperm.slane %v1934, %v2791
        %v2794 = vunpack.c.l.s4 1987475062
        %v2795 = vunpack.c.0.s8 %v2794
        %v2796 = vperm.slane %v1934, %v2795
        %v2798 = vunpack.c.l.s4 269488144
        %v2799 = vunpack.c.0.s8 %v2798
        %v2800 = vperm.slane %v1936, %v2799
        %v2802 = vunpack.c.l.s4 842150450
        %v2803 = vunpack.c.0.s8 %v2802
        %v2804 = vperm.slane %v1936, %v2803
        %v2806 = vunpack.c.l.s4 1414812756
        %v2807 = vunpack.c.0.s8 %v2806
        %v2808 = vperm.slane %v1936, %v2807
        %v2810 = vunpack.c.l.s4 1987475062
        %v2811 = vunpack.c.0.s8 %v2810
        %v2812 = vperm.slane %v1936, %v2811
        %v2814 = vunpack.c.l.s4 269488144
        %v2815 = vunpack.c.0.s8 %v2814
        %v2816 = vperm.slane %v1938, %v2815
        %v2818 = vunpack.c.l.s4 842150450
        %v2819 = vunpack.c.0.s8 %v2818
        %v2820 = vperm.slane %v1938, %v2819
        %v2822 = vunpack.c.l.s4 1414812756
        %v2823 = vunpack.c.0.s8 %v2822
        %v2824 = vperm.slane %v1938, %v2823
        %v2826 = vunpack.c.l.s4 1987475062
        %v2827 = vunpack.c.0.s8 %v2826
        %v2828 = vperm.slane %v1938, %v2827
        %v2830 = vunpack.c.l.s4 269488144
        %v2831 = vunpack.c.0.s8 %v2830
        %v2832 = vperm.slane %v1940, %v2831
        %v2834 = vunpack.c.l.s4 842150450
        %v2835 = vunpack.c.0.s8 %v2834
        %v2836 = vperm.slane %v1940, %v2835
        %v2838 = vunpack.c.l.s4 1414812756
        %v2839 = vunpack.c.0.s8 %v2838
        %v2840 = vperm.slane %v1940, %v2839
        %v2842 = vunpack.c.l.s4 1987475062
        %v2843 = vunpack.c.0.s8 %v2842
        %v2844 = vperm.slane %v1940, %v2843
        %v2846 = vunpack.c.l.s4 269488144
        %v2847 = vunpack.c.0.s8 %v2846
        %v2848 = vperm.slane %v1942, %v2847
        %v2850 = vunpack.c.l.s4 842150450
        %v2851 = vunpack.c.0.s8 %v2850
        %v2852 = vperm.slane %v1942, %v2851
        %v2854 = vunpack.c.l.s4 1414812756
        %v2855 = vunpack.c.0.s8 %v2854
        %v2856 = vperm.slane %v1942, %v2855
        %v2858 = vunpack.c.l.s4 1987475062
        %v2859 = vunpack.c.0.s8 %v2858
        %v2860 = vperm.slane %v1942, %v2859
        %v2862 = vunpack.c.l.s4 269488144
        %v2863 = vunpack.c.0.s8 %v2862
        %v2864 = vperm.slane %v1944, %v2863
        %v2866 = vunpack.c.l.s4 842150450
        %v2867 = vunpack.c.0.s8 %v2866
        %v2868 = vperm.slane %v1944, %v2867
        %v2870 = vunpack.c.l.s4 1414812756
        %v2871 = vunpack.c.0.s8 %v2870
        %v2872 = vperm.slane %v1944, %v2871
        %v2874 = vunpack.c.l.s4 1987475062
        %v2875 = vunpack.c.0.s8 %v2874
        %v2876 = vperm.slane %v1944, %v2875
        %v2878 = vunpack.c.l.s4 269488144
        %v2879 = vunpack.c.0.s8 %v2878
        %v2880 = vperm.slane %v1946, %v2879
        %v2882 = vunpack.c.l.s4 842150450
        %v2883 = vunpack.c.0.s8 %v2882
        %v2884 = vperm.slane %v1946, %v2883
        %v2886 = vunpack.c.l.s4 1414812756
        %v2887 = vunpack.c.0.s8 %v2886
        %v2888 = vperm.slane %v1946, %v2887
        %v2890 = vunpack.c.l.s4 1987475062
        %v2891 = vunpack.c.0.s8 %v2890
        %v2892 = vperm.slane %v1946, %v2891
        %v2894 = vunpack.c.l.s4 269488144
        %v2895 = vunpack.c.0.s8 %v2894
        %v2896 = vperm.slane %v1948, %v2895
        %v2898 = vunpack.c.l.s4 842150450
        %v2899 = vunpack.c.0.s8 %v2898
        %v2900 = vperm.slane %v1948, %v2899
        %v2902 = vunpack.c.l.s4 1414812756
        %v2903 = vunpack.c.0.s8 %v2902
        %v2904 = vperm.slane %v1948, %v2903
        %v2906 = vunpack.c.l.s4 1987475062
        %v2907 = vunpack.c.0.s8 %v2906
        %v2908 = vperm.slane %v1948, %v2907
        %v2910 = vunpack.c.l.s4 269488144
        %v2911 = vunpack.c.0.s8 %v2910
        %v2912 = vperm.slane %v1950, %v2911
        %v2914 = vunpack.c.l.s4 842150450
        %v2915 = vunpack.c.0.s8 %v2914
        %v2916 = vperm.slane %v1950, %v2915
        %v2918 = vunpack.c.l.s4 1414812756
        %v2919 = vunpack.c.0.s8 %v2918
        %v2920 = vperm.slane %v1950, %v2919
        %v2922 = vunpack.c.l.s4 1987475062
        %v2923 = vunpack.c.0.s8 %v2922
        %v2924 = vperm.slane %v1950, %v2923
        %v2926 = vunpack.c.l.s4 269488144
        %v2927 = vunpack.c.0.s8 %v2926
        %v2928 = vperm.slane %v1952, %v2927
        %v2930 = vunpack.c.l.s4 842150450
        %v2931 = vunpack.c.0.s8 %v2930
        %v2932 = vperm.slane %v1952, %v2931
        %v2934 = vunpack.c.l.s4 1414812756
        %v2935 = vunpack.c.0.s8 %v2934
        %v2936 = vperm.slane %v1952, %v2935
        %v2938 = vunpack.c.l.s4 1987475062
        %v2939 = vunpack.c.0.s8 %v2938
        %v2940 = vperm.slane %v1952, %v2939
        %v2942 = vunpack.c.l.s4 269488144
        %v2943 = vunpack.c.0.s8 %v2942
        %v2944 = vperm.slane %v1954, %v2943
        %v2946 = vunpack.c.l.s4 842150450
        %v2947 = vunpack.c.0.s8 %v2946
        %v2948 = vperm.slane %v1954, %v2947
        %v2950 = vunpack.c.l.s4 1414812756
        %v2951 = vunpack.c.0.s8 %v2950
        %v2952 = vperm.slane %v1954, %v2951
        %v2954 = vunpack.c.l.s4 1987475062
        %v2955 = vunpack.c.0.s8 %v2954
        %v2956 = vperm.slane %v1954, %v2955
        %v2958 = vunpack.c.l.s4 269488144
        %v2959 = vunpack.c.0.s8 %v2958
        %v2960 = vperm.slane %v1956, %v2959
        %v2962 = vunpack.c.l.s4 842150450
        %v2963 = vunpack.c.0.s8 %v2962
        %v2964 = vperm.slane %v1956, %v2963
        %v2966 = vunpack.c.l.s4 1414812756
        %v2967 = vunpack.c.0.s8 %v2966
        %v2968 = vperm.slane %v1956, %v2967
        %v2970 = vunpack.c.l.s4 1987475062
        %v2971 = vunpack.c.0.s8 %v2970
        %v2972 = vperm.slane %v1956, %v2971
        %v2974 = vunpack.c.l.s4 269488144
        %v2975 = vunpack.c.0.s8 %v2974
        %v2976 = vperm.slane %v1958, %v2975
        %v2978 = vunpack.c.l.s4 842150450
        %v2979 = vunpack.c.0.s8 %v2978
        %v2980 = vperm.slane %v1958, %v2979
        %v2982 = vunpack.c.l.s4 1414812756
        %v2983 = vunpack.c.0.s8 %v2982
        %v2984 = vperm.slane %v1958, %v2983
        %v2986 = vunpack.c.l.s4 1987475062
        %v2987 = vunpack.c.0.s8 %v2986
        %v2988 = vperm.slane %v1958, %v2987
        %v2990 = vunpack.c.l.s4 269488144
        %v2991 = vunpack.c.0.s8 %v2990
        %v2992 = vperm.slane %v1960, %v2991
        %v2994 = vunpack.c.l.s4 842150450
        %v2995 = vunpack.c.0.s8 %v2994
        %v2996 = vperm.slane %v1960, %v2995
        %v2998 = vunpack.c.l.s4 1414812756
        %v2999 = vunpack.c.0.s8 %v2998
        %v3000 = vperm.slane %v1960, %v2999
        %v3002 = vunpack.c.l.s4 1987475062
        %v3003 = vunpack.c.0.s8 %v3002
        %v3004 = vperm.slane %v1960, %v3003
        %v3006 = vunpack.c.l.s4 269488144
        %v3007 = vunpack.c.0.s8 %v3006
        %v3008 = vperm.slane %v1962, %v3007
        %v3010 = vunpack.c.l.s4 842150450
        %v3011 = vunpack.c.0.s8 %v3010
        %v3012 = vperm.slane %v1962, %v3011
        %v3014 = vunpack.c.l.s4 1414812756
        %v3015 = vunpack.c.0.s8 %v3014
        %v3016 = vperm.slane %v1962, %v3015
        %v3018 = vunpack.c.l.s4 1987475062
        %v3019 = vunpack.c.0.s8 %v3018
        %v3020 = vperm.slane %v1962, %v3019
        %v3022 = vunpack.c.l.s4 269488144
        %v3023 = vunpack.c.0.s8 %v3022
        %v3024 = vperm.slane %v1964, %v3023
        %v3026 = vunpack.c.l.s4 842150450
        %v3027 = vunpack.c.0.s8 %v3026
        %v3028 = vperm.slane %v1964, %v3027
        %v3030 = vunpack.c.l.s4 1414812756
        %v3031 = vunpack.c.0.s8 %v3030
        %v3032 = vperm.slane %v1964, %v3031
        %v3034 = vunpack.c.l.s4 1987475062
        %v3035 = vunpack.c.0.s8 %v3034
        %v3036 = vperm.slane %v1964, %v3035
        %v3038 = vunpack.c.l.s4 269488144
        %v3039 = vunpack.c.0.s8 %v3038
        %v3040 = vperm.slane %v1966, %v3039
        %v3042 = vunpack.c.l.s4 842150450
        %v3043 = vunpack.c.0.s8 %v3042
        %v3044 = vperm.slane %v1966, %v3043
        %v3046 = vunpack.c.l.s4 1414812756
        %v3047 = vunpack.c.0.s8 %v3046
        %v3048 = vperm.slane %v1966, %v3047
        %v3050 = vunpack.c.l.s4 1987475062
        %v3051 = vunpack.c.0.s8 %v3050
        %v3052 = vperm.slane %v1966, %v3051
        %v3054 = vunpack.c.l.s4 269488144
        %v3055 = vunpack.c.0.s8 %v3054
        %v3056 = vperm.slane %v1968, %v3055
        %v3058 = vunpack.c.l.s4 842150450
        %v3059 = vunpack.c.0.s8 %v3058
        %v3060 = vperm.slane %v1968, %v3059
        %v3062 = vunpack.c.l.s4 1414812756
        %v3063 = vunpack.c.0.s8 %v3062
        %v3064 = vperm.slane %v1968, %v3063
        %v3066 = vunpack.c.l.s4 1987475062
        %v3067 = vunpack.c.0.s8 %v3066
        %v3068 = vperm.slane %v1968, %v3067
        %v3070 = vunpack.c.l.s4 269488144
        %v3071 = vunpack.c.0.s8 %v3070
        %v3072 = vperm.slane %v1970, %v3071
        %v3074 = vunpack.c.l.s4 842150450
        %v3075 = vunpack.c.0.s8 %v3074
        %v3076 = vperm.slane %v1970, %v3075
        %v3078 = vunpack.c.l.s4 1414812756
        %v3079 = vunpack.c.0.s8 %v3078
        %v3080 = vperm.slane %v1970, %v3079
        %v3082 = vunpack.c.l.s4 1987475062
        %v3083 = vunpack.c.0.s8 %v3082
        %v3084 = vperm.slane %v1970, %v3083
        %v3086 = vunpack.c.l.s4 269488144
        %v3087 = vunpack.c.0.s8 %v3086
        %v3088 = vperm.slane %v1972, %v3087
        %v3090 = vunpack.c.l.s4 842150450
        %v3091 = vunpack.c.0.s8 %v3090
        %v3092 = vperm.slane %v1972, %v3091
        %v3094 = vunpack.c.l.s4 1414812756
        %v3095 = vunpack.c.0.s8 %v3094
        %v3096 = vperm.slane %v1972, %v3095
        %v3098 = vunpack.c.l.s4 1987475062
        %v3099 = vunpack.c.0.s8 %v3098
        %v3100 = vperm.slane %v1972, %v3099
        %v3102 = vunpack.c.l.s4 269488144
        %v3103 = vunpack.c.0.s8 %v3102
        %v3104 = vperm.slane %v1974, %v3103
        %v3106 = vunpack.c.l.s4 842150450
        %v3107 = vunpack.c.0.s8 %v3106
        %v3108 = vperm.slane %v1974, %v3107
        %v3110 = vunpack.c.l.s4 1414812756
        %v3111 = vunpack.c.0.s8 %v3110
        %v3112 = vperm.slane %v1974, %v3111
        %v3114 = vunpack.c.l.s4 1987475062
        %v3115 = vunpack.c.0.s8 %v3114
        %v3116 = vperm.slane %v1974, %v3115
        %v3118 = vunpack.c.l.s4 269488144
        %v3119 = vunpack.c.0.s8 %v3118
        %v3120 = vperm.slane %v1976, %v3119
        %v3122 = vunpack.c.l.s4 842150450
        %v3123 = vunpack.c.0.s8 %v3122
        %v3124 = vperm.slane %v1976, %v3123
        %v3126 = vunpack.c.l.s4 1414812756
        %v3127 = vunpack.c.0.s8 %v3126
        %v3128 = vperm.slane %v1976, %v3127
        %v3130 = vunpack.c.l.s4 1987475062
        %v3131 = vunpack.c.0.s8 %v3130
        %v3132 = vperm.slane %v1976, %v3131
        %v3134 = vunpack.c.l.s4 269488144
        %v3135 = vunpack.c.0.s8 %v3134
        %v3136 = vperm.slane %v1978, %v3135
        %v3138 = vunpack.c.l.s4 842150450
        %v3139 = vunpack.c.0.s8 %v3138
        %v3140 = vperm.slane %v1978, %v3139
        %v3142 = vunpack.c.l.s4 1414812756
        %v3143 = vunpack.c.0.s8 %v3142
        %v3144 = vperm.slane %v1978, %v3143
        %v3146 = vunpack.c.l.s4 1987475062
        %v3147 = vunpack.c.0.s8 %v3146
        %v3148 = vperm.slane %v1978, %v3147
        %v3150 = vunpack.c.l.s4 269488144
        %v3151 = vunpack.c.0.s8 %v3150
        %v3152 = vperm.slane %v1980, %v3151
        %v3154 = vunpack.c.l.s4 842150450
        %v3155 = vunpack.c.0.s8 %v3154
        %v3156 = vperm.slane %v1980, %v3155
        %v3158 = vunpack.c.l.s4 1414812756
        %v3159 = vunpack.c.0.s8 %v3158
        %v3160 = vperm.slane %v1980, %v3159
        %v3162 = vunpack.c.l.s4 1987475062
        %v3163 = vunpack.c.0.s8 %v3162
        %v3164 = vperm.slane %v1980, %v3163
        %v3166 = vunpack.c.l.s4 269488144
        %v3167 = vunpack.c.0.s8 %v3166
        %v3168 = vperm.slane %v1982, %v3167
        %v3170 = vunpack.c.l.s4 842150450
        %v3171 = vunpack.c.0.s8 %v3170
        %v3172 = vperm.slane %v1982, %v3171
        %v3174 = vunpack.c.l.s4 1414812756
        %v3175 = vunpack.c.0.s8 %v3174
        %v3176 = vperm.slane %v1982, %v3175
        %v3178 = vunpack.c.l.s4 1987475062
        %v3179 = vunpack.c.0.s8 %v3178
        %v3180 = vperm.slane %v1982, %v3179
        %v3182 = vunpack.c.l.s4 269488144
        %v3183 = vunpack.c.0.s8 %v3182
        %v3184 = vperm.slane %v1984, %v3183
        %v3186 = vunpack.c.l.s4 842150450
        %v3187 = vunpack.c.0.s8 %v3186
        %v3188 = vperm.slane %v1984, %v3187
        %v3190 = vunpack.c.l.s4 1414812756
        %v3191 = vunpack.c.0.s8 %v3190
        %v3192 = vperm.slane %v1984, %v3191
        %v3194 = vunpack.c.l.s4 1987475062
        %v3195 = vunpack.c.0.s8 %v3194
        %v3196 = vperm.slane %v1984, %v3195
        %v3198 = vunpack.c.l.s4 269488144
        %v3199 = vunpack.c.0.s8 %v3198
        %v3200 = vperm.slane %v1986, %v3199
        %v3202 = vunpack.c.l.s4 842150450
        %v3203 = vunpack.c.0.s8 %v3202
        %v3204 = vperm.slane %v1986, %v3203
        %v3206 = vunpack.c.l.s4 1414812756
        %v3207 = vunpack.c.0.s8 %v3206
        %v3208 = vperm.slane %v1986, %v3207
        %v3210 = vunpack.c.l.s4 1987475062
        %v3211 = vunpack.c.0.s8 %v3210
        %v3212 = vperm.slane %v1986, %v3211
        %v3214 = vunpack.c.l.s4 269488144
        %v3215 = vunpack.c.0.s8 %v3214
        %v3216 = vperm.slane %v1988, %v3215
        %v3218 = vunpack.c.l.s4 842150450
        %v3219 = vunpack.c.0.s8 %v3218
        %v3220 = vperm.slane %v1988, %v3219
        %v3222 = vunpack.c.l.s4 1414812756
        %v3223 = vunpack.c.0.s8 %v3222
        %v3224 = vperm.slane %v1988, %v3223
        %v3226 = vunpack.c.l.s4 1987475062
        %v3227 = vunpack.c.0.s8 %v3226
        %v3228 = vperm.slane %v1988, %v3227
        %v3230 = vunpack.c.l.s4 269488144
        %v3231 = vunpack.c.0.s8 %v3230
        %v3232 = vperm.slane %v1990, %v3231
        %v3234 = vunpack.c.l.s4 842150450
        %v3235 = vunpack.c.0.s8 %v3234
        %v3236 = vperm.slane %v1990, %v3235
        %v3238 = vunpack.c.l.s4 1414812756
        %v3239 = vunpack.c.0.s8 %v3238
        %v3240 = vperm.slane %v1990, %v3239
        %v3242 = vunpack.c.l.s4 1987475062
        %v3243 = vunpack.c.0.s8 %v3242
        %v3244 = vperm.slane %v1990, %v3243
        %v3246 = vunpack.c.l.s4 269488144
        %v3247 = vunpack.c.0.s8 %v3246
        %v3248 = vperm.slane %v1992, %v3247
        %v3250 = vunpack.c.l.s4 842150450
        %v3251 = vunpack.c.0.s8 %v3250
        %v3252 = vperm.slane %v1992, %v3251
        %v3254 = vunpack.c.l.s4 1414812756
        %v3255 = vunpack.c.0.s8 %v3254
        %v3256 = vperm.slane %v1992, %v3255
        %v3258 = vunpack.c.l.s4 1987475062
        %v3259 = vunpack.c.0.s8 %v3258
        %v3260 = vperm.slane %v1992, %v3259
        %v3262 = vunpack.c.l.s4 269488144
        %v3263 = vunpack.c.0.s8 %v3262
        %v3264 = vperm.slane %v1994, %v3263
        %v3266 = vunpack.c.l.s4 842150450
        %v3267 = vunpack.c.0.s8 %v3266
        %v3268 = vperm.slane %v1994, %v3267
        %v3270 = vunpack.c.l.s4 1414812756
        %v3271 = vunpack.c.0.s8 %v3270
        %v3272 = vperm.slane %v1994, %v3271
        %v3274 = vunpack.c.l.s4 1987475062
        %v3275 = vunpack.c.0.s8 %v3274
        %v3276 = vperm.slane %v1994, %v3275
        %v3278 = vunpack.c.l.s4 269488144
        %v3279 = vunpack.c.0.s8 %v3278
        %v3280 = vperm.slane %v1996, %v3279
        %v3282 = vunpack.c.l.s4 842150450
        %v3283 = vunpack.c.0.s8 %v3282
        %v3284 = vperm.slane %v1996, %v3283
        %v3286 = vunpack.c.l.s4 1414812756
        %v3287 = vunpack.c.0.s8 %v3286
        %v3288 = vperm.slane %v1996, %v3287
        %v3290 = vunpack.c.l.s4 1987475062
        %v3291 = vunpack.c.0.s8 %v3290
        %v3292 = vperm.slane %v1996, %v3291
        %v3294 = vunpack.c.l.s4 269488144
        %v3295 = vunpack.c.0.s8 %v3294
        %v3296 = vperm.slane %v1998, %v3295
        %v3298 = vunpack.c.l.s4 842150450
        %v3299 = vunpack.c.0.s8 %v3298
        %v3300 = vperm.slane %v1998, %v3299
        %v3302 = vunpack.c.l.s4 1414812756
        %v3303 = vunpack.c.0.s8 %v3302
        %v3304 = vperm.slane %v1998, %v3303
        %v3306 = vunpack.c.l.s4 1987475062
        %v3307 = vunpack.c.0.s8 %v3306
        %v3308 = vperm.slane %v1998, %v3307
        %v3310 = vunpack.c.l.s4 269488144
        %v3311 = vunpack.c.0.s8 %v3310
        %v3312 = vperm.slane %v2000, %v3311
        %v3314 = vunpack.c.l.s4 842150450
        %v3315 = vunpack.c.0.s8 %v3314
        %v3316 = vperm.slane %v2000, %v3315
        %v3318 = vunpack.c.l.s4 1414812756
        %v3319 = vunpack.c.0.s8 %v3318
        %v3320 = vperm.slane %v2000, %v3319
        %v3322 = vunpack.c.l.s4 1987475062
        %v3323 = vunpack.c.0.s8 %v3322
        %v3324 = vperm.slane %v2000, %v3323
        %v3326 = vunpack.c.l.s4 269488144
        %v3327 = vunpack.c.0.s8 %v3326
        %v3328 = vperm.slane %v2002, %v3327
        %v3330 = vunpack.c.l.s4 842150450
        %v3331 = vunpack.c.0.s8 %v3330
        %v3332 = vperm.slane %v2002, %v3331
        %v3334 = vunpack.c.l.s4 1414812756
        %v3335 = vunpack.c.0.s8 %v3334
        %v3336 = vperm.slane %v2002, %v3335
        %v3338 = vunpack.c.l.s4 1987475062
        %v3339 = vunpack.c.0.s8 %v3338
        %v3340 = vperm.slane %v2002, %v3339
        %v3342 = vunpack.c.l.s4 269488144
        %v3343 = vunpack.c.0.s8 %v3342
        %v3344 = vperm.slane %v2004, %v3343
        %v3346 = vunpack.c.l.s4 842150450
        %v3347 = vunpack.c.0.s8 %v3346
        %v3348 = vperm.slane %v2004, %v3347
        %v3350 = vunpack.c.l.s4 1414812756
        %v3351 = vunpack.c.0.s8 %v3350
        %v3352 = vperm.slane %v2004, %v3351
        %v3354 = vunpack.c.l.s4 1987475062
        %v3355 = vunpack.c.0.s8 %v3354
        %v3356 = vperm.slane %v2004, %v3355
        %v3358 = vunpack.c.l.s4 269488144
        %v3359 = vunpack.c.0.s8 %v3358
        %v3360 = vperm.slane %v2006, %v3359
        %v3362 = vunpack.c.l.s4 842150450
        %v3363 = vunpack.c.0.s8 %v3362
        %v3364 = vperm.slane %v2006, %v3363
        %v3366 = vunpack.c.l.s4 1414812756
        %v3367 = vunpack.c.0.s8 %v3366
        %v3368 = vperm.slane %v2006, %v3367
        %v3370 = vunpack.c.l.s4 1987475062
        %v3371 = vunpack.c.0.s8 %v3370
        %v3372 = vperm.slane %v2006, %v3371
        %v3374 = vunpack.c.l.s4 269488144
        %v3375 = vunpack.c.0.s8 %v3374
        %v3376 = vperm.slane %v2008, %v3375
        %v3378 = vunpack.c.l.s4 842150450
        %v3379 = vunpack.c.0.s8 %v3378
        %v3380 = vperm.slane %v2008, %v3379
        %v3382 = vunpack.c.l.s4 1414812756
        %v3383 = vunpack.c.0.s8 %v3382
        %v3384 = vperm.slane %v2008, %v3383
        %v3386 = vunpack.c.l.s4 1987475062
        %v3387 = vunpack.c.0.s8 %v3386
        %v3388 = vperm.slane %v2008, %v3387
        %v3390 = vunpack.c.l.s4 269488144
        %v3391 = vunpack.c.0.s8 %v3390
        %v3392 = vperm.slane %v2010, %v3391
        %v3394 = vunpack.c.l.s4 842150450
        %v3395 = vunpack.c.0.s8 %v3394
        %v3396 = vperm.slane %v2010, %v3395
        %v3398 = vunpack.c.l.s4 1414812756
        %v3399 = vunpack.c.0.s8 %v3398
        %v3400 = vperm.slane %v2010, %v3399
        %v3402 = vunpack.c.l.s4 1987475062
        %v3403 = vunpack.c.0.s8 %v3402
        %v3404 = vperm.slane %v2010, %v3403
        %v3406 = vunpack.c.l.s4 269488144
        %v3407 = vunpack.c.0.s8 %v3406
        %v3408 = vperm.slane %v2012, %v3407
        %v3410 = vunpack.c.l.s4 842150450
        %v3411 = vunpack.c.0.s8 %v3410
        %v3412 = vperm.slane %v2012, %v3411
        %v3414 = vunpack.c.l.s4 1414812756
        %v3415 = vunpack.c.0.s8 %v3414
        %v3416 = vperm.slane %v2012, %v3415
        %v3418 = vunpack.c.l.s4 1987475062
        %v3419 = vunpack.c.0.s8 %v3418
        %v3420 = vperm.slane %v2012, %v3419
        %v3422 = vunpack.c.l.s4 269488144
        %v3423 = vunpack.c.0.s8 %v3422
        %v3424 = vperm.slane %v2014, %v3423
        %v3426 = vunpack.c.l.s4 842150450
        %v3427 = vunpack.c.0.s8 %v3426
        %v3428 = vperm.slane %v2014, %v3427
        %v3430 = vunpack.c.l.s4 1414812756
        %v3431 = vunpack.c.0.s8 %v3430
        %v3432 = vperm.slane %v2014, %v3431
        %v3434 = vunpack.c.l.s4 1987475062
        %v3435 = vunpack.c.0.s8 %v3434
        %v3436 = vperm.slane %v2014, %v3435
        %v3438 = vunpack.c.l.s4 269488144
        %v3439 = vunpack.c.0.s8 %v3438
        %v3440 = vperm.slane %v2016, %v3439
        %v3442 = vunpack.c.l.s4 842150450
        %v3443 = vunpack.c.0.s8 %v3442
        %v3444 = vperm.slane %v2016, %v3443
        %v3446 = vunpack.c.l.s4 1414812756
        %v3447 = vunpack.c.0.s8 %v3446
        %v3448 = vperm.slane %v2016, %v3447
        %v3450 = vunpack.c.l.s4 1987475062
        %v3451 = vunpack.c.0.s8 %v3450
        %v3452 = vperm.slane %v2016, %v3451
        %v3454 = vunpack.c.l.s4 269488144
        %v3455 = vunpack.c.0.s8 %v3454
        %v3456 = vperm.slane %v2018, %v3455
        %v3458 = vunpack.c.l.s4 842150450
        %v3459 = vunpack.c.0.s8 %v3458
        %v3460 = vperm.slane %v2018, %v3459
        %v3462 = vunpack.c.l.s4 1414812756
        %v3463 = vunpack.c.0.s8 %v3462
        %v3464 = vperm.slane %v2018, %v3463
        %v3466 = vunpack.c.l.s4 1987475062
        %v3467 = vunpack.c.0.s8 %v3466
        %v3468 = vperm.slane %v2018, %v3467
        %v3470 = vunpack.c.l.s4 269488144
        %v3471 = vunpack.c.0.s8 %v3470
        %v3472 = vperm.slane %v2020, %v3471
        %v3474 = vunpack.c.l.s4 842150450
        %v3475 = vunpack.c.0.s8 %v3474
        %v3476 = vperm.slane %v2020, %v3475
        %v3478 = vunpack.c.l.s4 1414812756
        %v3479 = vunpack.c.0.s8 %v3478
        %v3480 = vperm.slane %v2020, %v3479
        %v3482 = vunpack.c.l.s4 1987475062
        %v3483 = vunpack.c.0.s8 %v3482
        %v3484 = vperm.slane %v2020, %v3483
        %v3486 = vunpack.c.l.s4 269488144
        %v3487 = vunpack.c.0.s8 %v3486
        %v3488 = vperm.slane %v2022, %v3487
        %v3490 = vunpack.c.l.s4 842150450
        %v3491 = vunpack.c.0.s8 %v3490
        %v3492 = vperm.slane %v2022, %v3491
        %v3494 = vunpack.c.l.s4 1414812756
        %v3495 = vunpack.c.0.s8 %v3494
        %v3496 = vperm.slane %v2022, %v3495
        %v3498 = vunpack.c.l.s4 1987475062
        %v3499 = vunpack.c.0.s8 %v3498
        %v3500 = vperm.slane %v2022, %v3499
        %v3502 = vunpack.c.l.s4 269488144
        %v3503 = vunpack.c.0.s8 %v3502
        %v3504 = vperm.slane %v2024, %v3503
        %v3506 = vunpack.c.l.s4 842150450
        %v3507 = vunpack.c.0.s8 %v3506
        %v3508 = vperm.slane %v2024, %v3507
        %v3510 = vunpack.c.l.s4 1414812756
        %v3511 = vunpack.c.0.s8 %v3510
        %v3512 = vperm.slane %v2024, %v3511
        %v3514 = vunpack.c.l.s4 1987475062
        %v3515 = vunpack.c.0.s8 %v3514
        %v3516 = vperm.slane %v2024, %v3515
        %v3518 = vunpack.c.l.s4 269488144
        %v3519 = vunpack.c.0.s8 %v3518
        %v3520 = vperm.slane %v2026, %v3519
        %v3522 = vunpack.c.l.s4 842150450
        %v3523 = vunpack.c.0.s8 %v3522
        %v3524 = vperm.slane %v2026, %v3523
        %v3526 = vunpack.c.l.s4 1414812756
        %v3527 = vunpack.c.0.s8 %v3526
        %v3528 = vperm.slane %v2026, %v3527
        %v3530 = vunpack.c.l.s4 1987475062
        %v3531 = vunpack.c.0.s8 %v3530
        %v3532 = vperm.slane %v2026, %v3531
        %v3534 = vunpack.c.l.s4 269488144
        %v3535 = vunpack.c.0.s8 %v3534
        %v3536 = vperm.slane %v2028, %v3535
        %v3538 = vunpack.c.l.s4 842150450
        %v3539 = vunpack.c.0.s8 %v3538
        %v3540 = vperm.slane %v2028, %v3539
        %v3542 = vunpack.c.l.s4 1414812756
        %v3543 = vunpack.c.0.s8 %v3542
        %v3544 = vperm.slane %v2028, %v3543
        %v3546 = vunpack.c.l.s4 1987475062
        %v3547 = vunpack.c.0.s8 %v3546
        %v3548 = vperm.slane %v2028, %v3547
        %v3550 = vunpack.c.l.s4 269488144
        %v3551 = vunpack.c.0.s8 %v3550
        %v3552 = vperm.slane %v2030, %v3551
        %v3554 = vunpack.c.l.s4 842150450
        %v3555 = vunpack.c.0.s8 %v3554
        %v3556 = vperm.slane %v2030, %v3555
        %v3558 = vunpack.c.l.s4 1414812756
        %v3559 = vunpack.c.0.s8 %v3558
        %v3560 = vperm.slane %v2030, %v3559
        %v3562 = vunpack.c.l.s4 1987475062
        %v3563 = vunpack.c.0.s8 %v3562
        %v3564 = vperm.slane %v2030, %v3563
        %v3566 = vunpack.c.l.s4 269488144
        %v3567 = vunpack.c.0.s8 %v3566
        %v3568 = vperm.slane %v2032, %v3567
        %v3570 = vunpack.c.l.s4 842150450
        %v3571 = vunpack.c.0.s8 %v3570
        %v3572 = vperm.slane %v2032, %v3571
        %v3574 = vunpack.c.l.s4 1414812756
        %v3575 = vunpack.c.0.s8 %v3574
        %v3576 = vperm.slane %v2032, %v3575
        %v3578 = vunpack.c.l.s4 1987475062
        %v3579 = vunpack.c.0.s8 %v3578
        %v3580 = vperm.slane %v2032, %v3579
        %v3582 = vunpack.c.l.s4 269488144
        %v3583 = vunpack.c.0.s8 %v3582
        %v3584 = vperm.slane %v2034, %v3583
        %v3586 = vunpack.c.l.s4 842150450
        %v3587 = vunpack.c.0.s8 %v3586
        %v3588 = vperm.slane %v2034, %v3587
        %v3590 = vunpack.c.l.s4 1414812756
        %v3591 = vunpack.c.0.s8 %v3590
        %v3592 = vperm.slane %v2034, %v3591
        %v3594 = vunpack.c.l.s4 1987475062
        %v3595 = vunpack.c.0.s8 %v3594
        %v3596 = vperm.slane %v2034, %v3595
        %v3598 = vunpack.c.l.s4 269488144
        %v3599 = vunpack.c.0.s8 %v3598
        %v3600 = vperm.slane %v2036, %v3599
        %v3602 = vunpack.c.l.s4 842150450
        %v3603 = vunpack.c.0.s8 %v3602
        %v3604 = vperm.slane %v2036, %v3603
        %v3606 = vunpack.c.l.s4 1414812756
        %v3607 = vunpack.c.0.s8 %v3606
        %v3608 = vperm.slane %v2036, %v3607
        %v3610 = vunpack.c.l.s4 1987475062
        %v3611 = vunpack.c.0.s8 %v3610
        %v3612 = vperm.slane %v2036, %v3611
        %v3614 = vunpack.c.l.s4 269488144
        %v3615 = vunpack.c.0.s8 %v3614
        %v3616 = vperm.slane %v2038, %v3615
        %v3618 = vunpack.c.l.s4 842150450
        %v3619 = vunpack.c.0.s8 %v3618
        %v3620 = vperm.slane %v2038, %v3619
        %v3622 = vunpack.c.l.s4 1414812756
        %v3623 = vunpack.c.0.s8 %v3622
        %v3624 = vperm.slane %v2038, %v3623
        %v3626 = vunpack.c.l.s4 1987475062
        %v3627 = vunpack.c.0.s8 %v3626
        %v3628 = vperm.slane %v2038, %v3627
        %v3630 = vunpack.c.l.s4 269488144
        %v3631 = vunpack.c.0.s8 %v3630
        %v3632 = vperm.slane %v2040, %v3631
        %v3634 = vunpack.c.l.s4 842150450
        %v3635 = vunpack.c.0.s8 %v3634
        %v3636 = vperm.slane %v2040, %v3635
        %v3638 = vunpack.c.l.s4 1414812756
        %v3639 = vunpack.c.0.s8 %v3638
        %v3640 = vperm.slane %v2040, %v3639
        %v3642 = vunpack.c.l.s4 1987475062
        %v3643 = vunpack.c.0.s8 %v3642
        %v3644 = vperm.slane %v2040, %v3643
        %v3646 = vunpack.c.l.s4 269488144
        %v3647 = vunpack.c.0.s8 %v3646
        %v3648 = vperm.slane %v2042, %v3647
        %v3650 = vunpack.c.l.s4 842150450
        %v3651 = vunpack.c.0.s8 %v3650
        %v3652 = vperm.slane %v2042, %v3651
        %v3654 = vunpack.c.l.s4 1414812756
        %v3655 = vunpack.c.0.s8 %v3654
        %v3656 = vperm.slane %v2042, %v3655
        %v3658 = vunpack.c.l.s4 1987475062
        %v3659 = vunpack.c.0.s8 %v3658
        %v3660 = vperm.slane %v2042, %v3659
        %v3662 = vunpack.c.l.s4 269488144
        %v3663 = vunpack.c.0.s8 %v3662
        %v3664 = vperm.slane %v2044, %v3663
        %v3666 = vunpack.c.l.s4 842150450
        %v3667 = vunpack.c.0.s8 %v3666
        %v3668 = vperm.slane %v2044, %v3667
        %v3670 = vunpack.c.l.s4 1414812756
        %v3671 = vunpack.c.0.s8 %v3670
        %v3672 = vperm.slane %v2044, %v3671
        %v3674 = vunpack.c.l.s4 1987475062
        %v3675 = vunpack.c.0.s8 %v3674
        %v3676 = vperm.slane %v2044, %v3675
        %3677 = vst [vmem:[#allocation1] ss:$4 sm:$0xff] %v2144
        %s3678 = scalar_lea.vmem [#allocation1], 1
        %3679 = vst [vmem:[%s3678] ss:$4 sm:$0xff] %v2148
        %s3680 = scalar_lea.vmem [#allocation1], 2
        %3681 = vst [vmem:[%s3680] ss:$4 sm:$0xff] %v2152
        %s3682 = scalar_lea.vmem [#allocation1], 3
        %3683 = vst [vmem:[%s3682] ss:$4 sm:$0xff] %v2156
        %s3684 = scalar_lea.vmem [#allocation1], 32
        %3685 = vst [vmem:[%s3684] ss:$4 sm:$0xff] %v2160
        %s3686 = scalar_lea.vmem [#allocation1], 33
        %3687 = vst [vmem:[%s3686] ss:$4 sm:$0xff] %v2164
        %s3688 = scalar_lea.vmem [#allocation1], 34
        %3689 = vst [vmem:[%s3688] ss:$4 sm:$0xff] %v2168
        %s3690 = scalar_lea.vmem [#allocation1], 35
        %3691 = vst [vmem:[%s3690] ss:$4 sm:$0xff] %v2172
        %v3692 = vld.sshfl [vmem:[#allocation1] sm:$0xff pattern:$0x73625140]
        %v3693 = vld.sshfl [vmem:[#allocation1 + $0x20] sm:$0xff pattern:$0x73625140]
        %3694 = vst [vmem:[#allocation1] ss:$4 sm:$0xff] %v2176
        %3695 = vst [vmem:[%s3678] ss:$4 sm:$0xff] %v2180
        %3696 = vst [vmem:[%s3680] ss:$4 sm:$0xff] %v2184
        %3697 = vst [vmem:[%s3682] ss:$4 sm:$0xff] %v2188
        %3698 = vst [vmem:[%s3684] ss:$4 sm:$0xff] %v2192
        %3699 = vst [vmem:[%s3686] ss:$4 sm:$0xff] %v2196
        %3700 = vst [vmem:[%s3688] ss:$4 sm:$0xff] %v2200
        %3701 = vst [vmem:[%s3690] ss:$4 sm:$0xff] %v2204
        %v3702 = vld.sshfl [vmem:[#allocation1] sm:$0xff pattern:$0x73625140]
        %v3703 = vld.sshfl [vmem:[#allocation1 + $0x20] sm:$0xff pattern:$0x73625140]
        %3704 = vst [vmem:[#allocation1] ss:$4 sm:$0xff] %v2208
        %3705 = vst [vmem:[%s3678] ss:$4 sm:$0xff] %v2212
        %3706 = vst [vmem:[%s3680] ss:$4 sm:$0xff] %v2216
        %3707 = vst [vmem:[%s3682] ss:$4 sm:$0xff] %v2220
        %3708 = vst [vmem:[%s3684] ss:$4 sm:$0xff] %v2224
        %3709 = vst [vmem:[%s3686] ss:$4 sm:$0xff] %v2228
        %3710 = vst [vmem:[%s3688] ss:$4 sm:$0xff] %v2232
        %3711 = vst [vmem:[%s3690] ss:$4 sm:$0xff] %v2236
        %v3712 = vld.sshfl [vmem:[#allocation1] sm:$0xff pattern:$0x73625140]
        %v3713 = vld.sshfl [vmem:[#allocation1 + $0x20] sm:$0xff pattern:$0x73625140]
        %3714 = vst [vmem:[#allocation1] ss:$4 sm:$0xff] %v2240
        %3715 = vst [vmem:[%s3678] ss:$4 sm:$0xff] %v2244
        %3716 = vst [vmem:[%s3680] ss:$4 sm:$0xff] %v2248
        %3717 = vst [vmem:[%s3682] ss:$4 sm:$0xff] %v2252
        %3718 = vst [vmem:[%s3684] ss:$4 sm:$0xff] %v2256
        %3719 = vst [vmem:[%s3686] ss:$4 sm:$0xff] %v2260
        %3720 = vst [vmem:[%s3688] ss:$4 sm:$0xff] %v2264
        %3721 = vst [vmem:[%s3690] ss:$4 sm:$0xff] %v2268
        %v3722 = vld.sshfl [vmem:[#allocation1] sm:$0xff pattern:$0x73625140]
        %v3723 = vld.sshfl [vmem:[#allocation1 + $0x20] sm:$0xff pattern:$0x73625140]
        %3724 = vst [vmem:[#allocation1] ss:$4 sm:$0xff] %v2272
        %3725 = vst [vmem:[%s3678] ss:$4 sm:$0xff] %v2276
        %3726 = vst [vmem:[%s3680] ss:$4 sm:$0xff] %v2280
        %3727 = vst [vmem:[%s3682] ss:$4 sm:$0xff] %v2284
        %3728 = vst [vmem:[%s3684] ss:$4 sm:$0xff] %v2288
        %3729 = vst [vmem:[%s3686] ss:$4 sm:$0xff] %v2292
        %3730 = vst [vmem:[%s3688] ss:$4 sm:$0xff] %v2296
        %3731 = vst [vmem:[%s3690] ss:$4 sm:$0xff] %v2300
        %v3732 = vld.sshfl [vmem:[#allocation1] sm:$0xff pattern:$0x73625140]
        %v3733 = vld.sshfl [vmem:[#allocation1 + $0x20] sm:$0xff pattern:$0x73625140]
        %3734 = vst [vmem:[#allocation1] ss:$4 sm:$0xff] %v2304
        %3735 = vst [vmem:[%s3678] ss:$4 sm:$0xff] %v2308
        %3736 = vst [vmem:[%s3680] ss:$4 sm:$0xff] %v2312
        %3737 = vst [vmem:[%s3682] ss:$4 sm:$0xff] %v2316
        %3738 = vst [vmem:[%s3684] ss:$4 sm:$0xff] %v2320
        %3739 = vst [vmem:[%s3686] ss:$4 sm:$0xff] %v2324
        %3740 = vst [vmem:[%s3688] ss:$4 sm:$0xff] %v2328
        %3741 = vst [vmem:[%s3690] ss:$4 sm:$0xff] %v2332
        %v3742 = vld.sshfl [vmem:[#allocation1] sm:$0xff pattern:$0x73625140]
        %v3743 = vld.sshfl [vmem:[#allocation1 + $0x20] sm:$0xff pattern:$0x73625140]
        %3744 = vst [vmem:[#allocation1] ss:$4 sm:$0xff] %v2336
        %3745 = vst [vmem:[%s3678] ss:$4 sm:$0xff] %v2340
        %3746 = vst [vmem:[%s3680] ss:$4 sm:$0xff] %v2344
        %3747 = vst [vmem:[%s3682] ss:$4 sm:$0xff] %v2348
        %3748 = vst [vmem:[%s3684] ss:$4 sm:$0xff] %v2352
        %3749 = vst [vmem:[%s3686] ss:$4 sm:$0xff] %v2356
        %3750 = vst [vmem:[%s3688] ss:$4 sm:$0xff] %v2360
        %3751 = vst [vmem:[%s3690] ss:$4 sm:$0xff] %v2364
        %v3752 = vld.sshfl [vmem:[#allocation1] sm:$0xff pattern:$0x73625140]
        %v3753 = vld.sshfl [vmem:[#allocation1 + $0x20] sm:$0xff pattern:$0x73625140]
        %3754 = vst [vmem:[#allocation1] ss:$4 sm:$0xff] %v2368
        %3755 = vst [vmem:[%s3678] ss:$4 sm:$0xff] %v2372
        %3756 = vst [vmem:[%s3680] ss:$4 sm:$0xff] %v2376
        %3757 = vst [vmem:[%s3682] ss:$4 sm:$0xff] %v2380
        %3758 = vst [vmem:[%s3684] ss:$4 sm:$0xff] %v2384
        %3759 = vst [vmem:[%s3686] ss:$4 sm:$0xff] %v2388
        %3760 = vst [vmem:[%s3688] ss:$4 sm:$0xff] %v2392
        %3761 = vst [vmem:[%s3690] ss:$4 sm:$0xff] %v2396
        %v3762 = vld.sshfl [vmem:[#allocation1] sm:$0xff pattern:$0x73625140]
        %v3763 = vld.sshfl [vmem:[#allocation1 + $0x20] sm:$0xff pattern:$0x73625140]
        %3764 = vst [vmem:[#allocation1] ss:$4 sm:$0xff] %v2400
        %3765 = vst [vmem:[%s3678] ss:$4 sm:$0xff] %v2404
        %3766 = vst [vmem:[%s3680] ss:$4 sm:$0xff] %v2408
        %3767 = vst [vmem:[%s3682] ss:$4 sm:$0xff] %v2412
        %3768 = vst [vmem:[%s3684] ss:$4 sm:$0xff] %v2416
        %3769 = vst [vmem:[%s3686] ss:$4 sm:$0xff] %v2420
        %3770 = vst [vmem:[%s3688] ss:$4 sm:$0xff] %v2424
        %3771 = vst [vmem:[%s3690] ss:$4 sm:$0xff] %v2428
        %v3772 = vld.sshfl [vmem:[#allocation1] sm:$0xff pattern:$0x73625140]
        %v3773 = vld.sshfl [vmem:[#allocation1 + $0x20] sm:$0xff pattern:$0x73625140]
        %3774 = vst [vmem:[#allocation1] ss:$4 sm:$0xff] %v2432
        %3775 = vst [vmem:[%s3678] ss:$4 sm:$0xff] %v2436
        %3776 = vst [vmem:[%s3680] ss:$4 sm:$0xff] %v2440
        %3777 = vst [vmem:[%s3682] ss:$4 sm:$0xff] %v2444
        %3778 = vst [vmem:[%s3684] ss:$4 sm:$0xff] %v2448
        %3779 = vst [vmem:[%s3686] ss:$4 sm:$0xff] %v2452
        %3780 = vst [vmem:[%s3688] ss:$4 sm:$0xff] %v2456
        %3781 = vst [vmem:[%s3690] ss:$4 sm:$0xff] %v2460
        %v3782 = vld.sshfl [vmem:[#allocation1] sm:$0xff pattern:$0x73625140]
        %v3783 = vld.sshfl [vmem:[#allocation1 + $0x20] sm:$0xff pattern:$0x73625140]
        %3784 = vst [vmem:[#allocation1] ss:$4 sm:$0xff] %v2464
        %3785 = vst [vmem:[%s3678] ss:$4 sm:$0xff] %v2468
        %3786 = vst [vmem:[%s3680] ss:$4 sm:$0xff] %v2472
        %3787 = vst [vmem:[%s3682] ss:$4 sm:$0xff] %v2476
        %3788 = vst [vmem:[%s3684] ss:$4 sm:$0xff] %v2480
        %3789 = vst [vmem:[%s3686] ss:$4 sm:$0xff] %v2484
        %3790 = vst [vmem:[%s3688] ss:$4 sm:$0xff] %v2488
        %3791 = vst [vmem:[%s3690] ss:$4 sm:$0xff] %v2492
        %v3792 = vld.sshfl [vmem:[#allocation1] sm:$0xff pattern:$0x73625140]
        %v3793 = vld.sshfl [vmem:[#allocation1 + $0x20] sm:$0xff pattern:$0x73625140]
        %3794 = vst [vmem:[#allocation1] ss:$4 sm:$0xff] %v2496
        %3795 = vst [vmem:[%s3678] ss:$4 sm:$0xff] %v2500
        %3796 = vst [vmem:[%s3680] ss:$4 sm:$0xff] %v2504
        %3797 = vst [vmem:[%s3682] ss:$4 sm:$0xff] %v2508
        %3798 = vst [vmem:[%s3684] ss:$4 sm:$0xff] %v2512
        %3799 = vst [vmem:[%s3686] ss:$4 sm:$0xff] %v2516
        %3800 = vst [vmem:[%s3688] ss:$4 sm:$0xff] %v2520
        %3801 = vst [vmem:[%s3690] ss:$4 sm:$0xff] %v2524
        %v3802 = vld.sshfl [vmem:[#allocation1] sm:$0xff pattern:$0x73625140]
        %v3803 = vld.sshfl [vmem:[#allocation1 + $0x20] sm:$0xff pattern:$0x73625140]
        %3804 = vst [vmem:[#allocation1] ss:$4 sm:$0xff] %v2528
        %3805 = vst [vmem:[%s3678] ss:$4 sm:$0xff] %v2532
        %3806 = vst [vmem:[%s3680] ss:$4 sm:$0xff] %v2536
        %3807 = vst [vmem:[%s3682] ss:$4 sm:$0xff] %v2540
        %3808 = vst [vmem:[%s3684] ss:$4 sm:$0xff] %v2544
        %3809 = vst [vmem:[%s3686] ss:$4 sm:$0xff] %v2548
        %3810 = vst [vmem:[%s3688] ss:$4 sm:$0xff] %v2552
        %3811 = vst [vmem:[%s3690] ss:$4 sm:$0xff] %v2556
        %v3812 = vld.sshfl [vmem:[#allocation1] sm:$0xff pattern:$0x73625140]
        %v3813 = vld.sshfl [vmem:[#allocation1 + $0x20] sm:$0xff pattern:$0x73625140]
        %3814 = vst [vmem:[#allocation1] ss:$4 sm:$0xff] %v2560
        %3815 = vst [vmem:[%s3678] ss:$4 sm:$0xff] %v2564
        %3816 = vst [vmem:[%s3680] ss:$4 sm:$0xff] %v2568
        %3817 = vst [vmem:[%s3682] ss:$4 sm:$0xff] %v2572
        %3818 = vst [vmem:[%s3684] ss:$4 sm:$0xff] %v2576
        %3819 = vst [vmem:[%s3686] ss:$4 sm:$0xff] %v2580
        %3820 = vst [vmem:[%s3688] ss:$4 sm:$0xff] %v2584
        %3821 = vst [vmem:[%s3690] ss:$4 sm:$0xff] %v2588
        %v3822 = vld.sshfl [vmem:[#allocation1] sm:$0xff pattern:$0x73625140]
        %v3823 = vld.sshfl [vmem:[#allocation1 + $0x20] sm:$0xff pattern:$0x73625140]
        %3824 = vst [vmem:[#allocation1] ss:$4 sm:$0xff] %v2592
        %3825 = vst [vmem:[%s3678] ss:$4 sm:$0xff] %v2596
        %3826 = vst [vmem:[%s3680] ss:$4 sm:$0xff] %v2600
        %3827 = vst [vmem:[%s3682] ss:$4 sm:$0xff] %v2604
        %3828 = vst [vmem:[%s3684] ss:$4 sm:$0xff] %v2608
        %3829 = vst [vmem:[%s3686] ss:$4 sm:$0xff] %v2612
        %3830 = vst [vmem:[%s3688] ss:$4 sm:$0xff] %v2616
        %3831 = vst [vmem:[%s3690] ss:$4 sm:$0xff] %v2620
        %v3832 = vld.sshfl [vmem:[#allocation1] sm:$0xff pattern:$0x73625140]
        %v3833 = vld.sshfl [vmem:[#allocation1 + $0x20] sm:$0xff pattern:$0x73625140]
        %3834 = vst [vmem:[#allocation1] ss:$4 sm:$0xff] %v2624
        %3835 = vst [vmem:[%s3678] ss:$4 sm:$0xff] %v2628
        %3836 = vst [vmem:[%s3680] ss:$4 sm:$0xff] %v2632
        %3837 = vst [vmem:[%s3682] ss:$4 sm:$0xff] %v2636
        %3838 = vst [vmem:[%s3684] ss:$4 sm:$0xff] %v2640
        %3839 = vst [vmem:[%s3686] ss:$4 sm:$0xff] %v2644
        %3840 = vst [vmem:[%s3688] ss:$4 sm:$0xff] %v2648
        %3841 = vst [vmem:[%s3690] ss:$4 sm:$0xff] %v2652
        %v3842 = vld.sshfl [vmem:[#allocation1] sm:$0xff pattern:$0x73625140]
        %v3843 = vld.sshfl [vmem:[#allocation1 + $0x20] sm:$0xff pattern:$0x73625140]
        %3844 = vst [vmem:[#allocation1] ss:$4 sm:$0xff] %v2656
        %3845 = vst [vmem:[%s3678] ss:$4 sm:$0xff] %v2660
        %3846 = vst [vmem:[%s3680] ss:$4 sm:$0xff] %v2664
        %3847 = vst [vmem:[%s3682] ss:$4 sm:$0xff] %v2668
        %3848 = vst [vmem:[%s3684] ss:$4 sm:$0xff] %v2672
        %3849 = vst [vmem:[%s3686] ss:$4 sm:$0xff] %v2676
        %3850 = vst [vmem:[%s3688] ss:$4 sm:$0xff] %v2680
        %3851 = vst [vmem:[%s3690] ss:$4 sm:$0xff] %v2684
        %v3852 = vld.sshfl [vmem:[#allocation1] sm:$0xff pattern:$0x73625140]
        %v3853 = vld.sshfl [vmem:[#allocation1 + $0x20] sm:$0xff pattern:$0x73625140]
        %3854 = vst [vmem:[#allocation1] ss:$4 sm:$0xff] %v2688
        %3855 = vst [vmem:[%s3678] ss:$4 sm:$0xff] %v2692
        %3856 = vst [vmem:[%s3680] ss:$4 sm:$0xff] %v2696
        %3857 = vst [vmem:[%s3682] ss:$4 sm:$0xff] %v2700
        %3858 = vst [vmem:[%s3684] ss:$4 sm:$0xff] %v2704
        %3859 = vst [vmem:[%s3686] ss:$4 sm:$0xff] %v2708
        %3860 = vst [vmem:[%s3688] ss:$4 sm:$0xff] %v2712
        %3861 = vst [vmem:[%s3690] ss:$4 sm:$0xff] %v2716
        %v3862 = vld.sshfl [vmem:[#allocation1] sm:$0xff pattern:$0x73625140]
        %v3863 = vld.sshfl [vmem:[#allocation1 + $0x20] sm:$0xff pattern:$0x73625140]
        %3864 = vst [vmem:[#allocation1] ss:$4 sm:$0xff] %v2720
        %3865 = vst [vmem:[%s3678] ss:$4 sm:$0xff] %v2724
        %3866 = vst [vmem:[%s3680] ss:$4 sm:$0xff] %v2728
        %3867 = vst [vmem:[%s3682] ss:$4 sm:$0xff] %v2732
        %3868 = vst [vmem:[%s3684] ss:$4 sm:$0xff] %v2736
        %3869 = vst [vmem:[%s3686] ss:$4 sm:$0xff] %v2740
        %3870 = vst [vmem:[%s3688] ss:$4 sm:$0xff] %v2744
        %3871 = vst [vmem:[%s3690] ss:$4 sm:$0xff] %v2748
        %v3872 = vld.sshfl [vmem:[#allocation1] sm:$0xff pattern:$0x73625140]
        %v3873 = vld.sshfl [vmem:[#allocation1 + $0x20] sm:$0xff pattern:$0x73625140]
        %3874 = vst [vmem:[#allocation1] ss:$4 sm:$0xff] %v2752
        %3875 = vst [vmem:[%s3678] ss:$4 sm:$0xff] %v2756
        %3876 = vst [vmem:[%s3680] ss:$4 sm:$0xff] %v2760
        %3877 = vst [vmem:[%s3682] ss:$4 sm:$0xff] %v2764
        %3878 = vst [vmem:[%s3684] ss:$4 sm:$0xff] %v2768
        %3879 = vst [vmem:[%s3686] ss:$4 sm:$0xff] %v2772
        %3880 = vst [vmem:[%s3688] ss:$4 sm:$0xff] %v2776
        %3881 = vst [vmem:[%s3690] ss:$4 sm:$0xff] %v2780
        %v3882 = vld.sshfl [vmem:[#allocation1] sm:$0xff pattern:$0x73625140]
        %v3883 = vld.sshfl [vmem:[#allocation1 + $0x20] sm:$0xff pattern:$0x73625140]
        %3884 = vst [vmem:[#allocation1] ss:$4 sm:$0xff] %v2784
        %3885 = vst [vmem:[%s3678] ss:$4 sm:$0xff] %v2788
        %3886 = vst [vmem:[%s3680] ss:$4 sm:$0xff] %v2792
        %3887 = vst [vmem:[%s3682] ss:$4 sm:$0xff] %v2796
        %3888 = vst [vmem:[%s3684] ss:$4 sm:$0xff] %v2800
        %3889 = vst [vmem:[%s3686] ss:$4 sm:$0xff] %v2804
        %3890 = vst [vmem:[%s3688] ss:$4 sm:$0xff] %v2808
        %3891 = vst [vmem:[%s3690] ss:$4 sm:$0xff] %v2812
        %v3892 = vld.sshfl [vmem:[#allocation1] sm:$0xff pattern:$0x73625140]
        %v3893 = vld.sshfl [vmem:[#allocation1 + $0x20] sm:$0xff pattern:$0x73625140]
        %3894 = vst [vmem:[#allocation1] ss:$4 sm:$0xff] %v2816
        %3895 = vst [vmem:[%s3678] ss:$4 sm:$0xff] %v2820
        %3896 = vst [vmem:[%s3680] ss:$4 sm:$0xff] %v2824
        %3897 = vst [vmem:[%s3682] ss:$4 sm:$0xff] %v2828
        %3898 = vst [vmem:[%s3684] ss:$4 sm:$0xff] %v2832
        %3899 = vst [vmem:[%s3686] ss:$4 sm:$0xff] %v2836
        %3900 = vst [vmem:[%s3688] ss:$4 sm:$0xff] %v2840
        %3901 = vst [vmem:[%s3690] ss:$4 sm:$0xff] %v2844
        %v3902 = vld.sshfl [vmem:[#allocation1] sm:$0xff pattern:$0x73625140]
        %v3903 = vld.sshfl [vmem:[#allocation1 + $0x20] sm:$0xff pattern:$0x73625140]
        %3904 = vst [vmem:[#allocation1] ss:$4 sm:$0xff] %v2848
        %3905 = vst [vmem:[%s3678] ss:$4 sm:$0xff] %v2852
        %3906 = vst [vmem:[%s3680] ss:$4 sm:$0xff] %v2856
        %3907 = vst [vmem:[%s3682] ss:$4 sm:$0xff] %v2860
        %3908 = vst [vmem:[%s3684] ss:$4 sm:$0xff] %v2864
        %3909 = vst [vmem:[%s3686] ss:$4 sm:$0xff] %v2868
        %3910 = vst [vmem:[%s3688] ss:$4 sm:$0xff] %v2872
        %3911 = vst [vmem:[%s3690] ss:$4 sm:$0xff] %v2876
        %v3912 = vld.sshfl [vmem:[#allocation1] sm:$0xff pattern:$0x73625140]
        %v3913 = vld.sshfl [vmem:[#allocation1 + $0x20] sm:$0xff pattern:$0x73625140]
        %3914 = vst [vmem:[#allocation1] ss:$4 sm:$0xff] %v2880
        %3915 = vst [vmem:[%s3678] ss:$4 sm:$0xff] %v2884
        %3916 = vst [vmem:[%s3680] ss:$4 sm:$0xff] %v2888
        %3917 = vst [vmem:[%s3682] ss:$4 sm:$0xff] %v2892
        %3918 = vst [vmem:[%s3684] ss:$4 sm:$0xff] %v2896
        %3919 = vst [vmem:[%s3686] ss:$4 sm:$0xff] %v2900
        %3920 = vst [vmem:[%s3688] ss:$4 sm:$0xff] %v2904
        %3921 = vst [vmem:[%s3690] ss:$4 sm:$0xff] %v2908
        %v3922 = vld.sshfl [vmem:[#allocation1] sm:$0xff pattern:$0x73625140]
        %v3923 = vld.sshfl [vmem:[#allocation1 + $0x20] sm:$0xff pattern:$0x73625140]
        %3924 = vst [vmem:[#allocation1] ss:$4 sm:$0xff] %v2912
        %3925 = vst [vmem:[%s3678] ss:$4 sm:$0xff] %v2916
        %3926 = vst [vmem:[%s3680] ss:$4 sm:$0xff] %v2920
        %3927 = vst [vmem:[%s3682] ss:$4 sm:$0xff] %v2924
        %3928 = vst [vmem:[%s3684] ss:$4 sm:$0xff] %v2928
        %3929 = vst [vmem:[%s3686] ss:$4 sm:$0xff] %v2932
        %3930 = vst [vmem:[%s3688] ss:$4 sm:$0xff] %v2936
        %3931 = vst [vmem:[%s3690] ss:$4 sm:$0xff] %v2940
        %v3932 = vld.sshfl [vmem:[#allocation1] sm:$0xff pattern:$0x73625140]
        %v3933 = vld.sshfl [vmem:[#allocation1 + $0x20] sm:$0xff pattern:$0x73625140]
        %3934 = vst [vmem:[#allocation1] ss:$4 sm:$0xff] %v2944
        %3935 = vst [vmem:[%s3678] ss:$4 sm:$0xff] %v2948
        %3936 = vst [vmem:[%s3680] ss:$4 sm:$0xff] %v2952
        %3937 = vst [vmem:[%s3682] ss:$4 sm:$0xff] %v2956
        %3938 = vst [vmem:[%s3684] ss:$4 sm:$0xff] %v2960
        %3939 = vst [vmem:[%s3686] ss:$4 sm:$0xff] %v2964
        %3940 = vst [vmem:[%s3688] ss:$4 sm:$0xff] %v2968
        %3941 = vst [vmem:[%s3690] ss:$4 sm:$0xff] %v2972
        %v3942 = vld.sshfl [vmem:[#allocation1] sm:$0xff pattern:$0x73625140]
        %v3943 = vld.sshfl [vmem:[#allocation1 + $0x20] sm:$0xff pattern:$0x73625140]
        %3944 = vst [vmem:[#allocation1] ss:$4 sm:$0xff] %v2976
        %3945 = vst [vmem:[%s3678] ss:$4 sm:$0xff] %v2980
        %3946 = vst [vmem:[%s3680] ss:$4 sm:$0xff] %v2984
        %3947 = vst [vmem:[%s3682] ss:$4 sm:$0xff] %v2988
        %3948 = vst [vmem:[%s3684] ss:$4 sm:$0xff] %v2992
        %3949 = vst [vmem:[%s3686] ss:$4 sm:$0xff] %v2996
        %3950 = vst [vmem:[%s3688] ss:$4 sm:$0xff] %v3000
        %3951 = vst [vmem:[%s3690] ss:$4 sm:$0xff] %v3004
        %v3952 = vld.sshfl [vmem:[#allocation1] sm:$0xff pattern:$0x73625140]
        %v3953 = vld.sshfl [vmem:[#allocation1 + $0x20] sm:$0xff pattern:$0x73625140]
        %3954 = vst [vmem:[#allocation1] ss:$4 sm:$0xff] %v3008
        %3955 = vst [vmem:[%s3678] ss:$4 sm:$0xff] %v3012
        %3956 = vst [vmem:[%s3680] ss:$4 sm:$0xff] %v3016
        %3957 = vst [vmem:[%s3682] ss:$4 sm:$0xff] %v3020
        %3958 = vst [vmem:[%s3684] ss:$4 sm:$0xff] %v3024
        %3959 = vst [vmem:[%s3686] ss:$4 sm:$0xff] %v3028
        %3960 = vst [vmem:[%s3688] ss:$4 sm:$0xff] %v3032
        %3961 = vst [vmem:[%s3690] ss:$4 sm:$0xff] %v3036
        %v3962 = vld.sshfl [vmem:[#allocation1] sm:$0xff pattern:$0x73625140]
        %v3963 = vld.sshfl [vmem:[#allocation1 + $0x20] sm:$0xff pattern:$0x73625140]
        %3964 = vst [vmem:[#allocation1] ss:$4 sm:$0xff] %v3040
        %3965 = vst [vmem:[%s3678] ss:$4 sm:$0xff] %v3044
        %3966 = vst [vmem:[%s3680] ss:$4 sm:$0xff] %v3048
        %3967 = vst [vmem:[%s3682] ss:$4 sm:$0xff] %v3052
        %3968 = vst [vmem:[%s3684] ss:$4 sm:$0xff] %v3056
        %3969 = vst [vmem:[%s3686] ss:$4 sm:$0xff] %v3060
        %3970 = vst [vmem:[%s3688] ss:$4 sm:$0xff] %v3064
        %3971 = vst [vmem:[%s3690] ss:$4 sm:$0xff] %v3068
        %v3972 = vld.sshfl [vmem:[#allocation1] sm:$0xff pattern:$0x73625140]
        %v3973 = vld.sshfl [vmem:[#allocation1 + $0x20] sm:$0xff pattern:$0x73625140]
        %3974 = vst [vmem:[#allocation1] ss:$4 sm:$0xff] %v3072
        %3975 = vst [vmem:[%s3678] ss:$4 sm:$0xff] %v3076
        %3976 = vst [vmem:[%s3680] ss:$4 sm:$0xff] %v3080
        %3977 = vst [vmem:[%s3682] ss:$4 sm:$0xff] %v3084
        %3978 = vst [vmem:[%s3684] ss:$4 sm:$0xff] %v3088
        %3979 = vst [vmem:[%s3686] ss:$4 sm:$0xff] %v3092
        %3980 = vst [vmem:[%s3688] ss:$4 sm:$0xff] %v3096
        %3981 = vst [vmem:[%s3690] ss:$4 sm:$0xff] %v3100
        %v3982 = vld.sshfl [vmem:[#allocation1] sm:$0xff pattern:$0x73625140]
        %v3983 = vld.sshfl [vmem:[#allocation1 + $0x20] sm:$0xff pattern:$0x73625140]
        %3984 = vst [vmem:[#allocation1] ss:$4 sm:$0xff] %v3104
        %3985 = vst [vmem:[%s3678] ss:$4 sm:$0xff] %v3108
        %3986 = vst [vmem:[%s3680] ss:$4 sm:$0xff] %v3112
        %3987 = vst [vmem:[%s3682] ss:$4 sm:$0xff] %v3116
        %3988 = vst [vmem:[%s3684] ss:$4 sm:$0xff] %v3120
        %3989 = vst [vmem:[%s3686] ss:$4 sm:$0xff] %v3124
        %3990 = vst [vmem:[%s3688] ss:$4 sm:$0xff] %v3128
        %3991 = vst [vmem:[%s3690] ss:$4 sm:$0xff] %v3132
        %v3992 = vld.sshfl [vmem:[#allocation1] sm:$0xff pattern:$0x73625140]
        %v3993 = vld.sshfl [vmem:[#allocation1 + $0x20] sm:$0xff pattern:$0x73625140]
        %3994 = vst [vmem:[#allocation1] ss:$4 sm:$0xff] %v3136
        %3995 = vst [vmem:[%s3678] ss:$4 sm:$0xff] %v3140
        %3996 = vst [vmem:[%s3680] ss:$4 sm:$0xff] %v3144
        %3997 = vst [vmem:[%s3682] ss:$4 sm:$0xff] %v3148
        %3998 = vst [vmem:[%s3684] ss:$4 sm:$0xff] %v3152
        %3999 = vst [vmem:[%s3686] ss:$4 sm:$0xff] %v3156
        %4000 = vst [vmem:[%s3688] ss:$4 sm:$0xff] %v3160
        %4001 = vst [vmem:[%s3690] ss:$4 sm:$0xff] %v3164
        %v4002 = vld.sshfl [vmem:[#allocation1] sm:$0xff pattern:$0x73625140]
        %v4003 = vld.sshfl [vmem:[#allocation1 + $0x20] sm:$0xff pattern:$0x73625140]
        %4004 = vst [vmem:[#allocation1] ss:$4 sm:$0xff] %v3168
        %4005 = vst [vmem:[%s3678] ss:$4 sm:$0xff] %v3172
        %4006 = vst [vmem:[%s3680] ss:$4 sm:$0xff] %v3176
        %4007 = vst [vmem:[%s3682] ss:$4 sm:$0xff] %v3180
        %4008 = vst [vmem:[%s3684] ss:$4 sm:$0xff] %v3184
        %4009 = vst [vmem:[%s3686] ss:$4 sm:$0xff] %v3188
        %4010 = vst [vmem:[%s3688] ss:$4 sm:$0xff] %v3192
        %4011 = vst [vmem:[%s3690] ss:$4 sm:$0xff] %v3196
        %v4012 = vld.sshfl [vmem:[#allocation1] sm:$0xff pattern:$0x73625140]
        %v4013 = vld.sshfl [vmem:[#allocation1 + $0x20] sm:$0xff pattern:$0x73625140]
        %4014 = vst [vmem:[#allocation1] ss:$4 sm:$0xff] %v3200
        %4015 = vst [vmem:[%s3678] ss:$4 sm:$0xff] %v3204
        %4016 = vst [vmem:[%s3680] ss:$4 sm:$0xff] %v3208
        %4017 = vst [vmem:[%s3682] ss:$4 sm:$0xff] %v3212
        %4018 = vst [vmem:[%s3684] ss:$4 sm:$0xff] %v3216
        %4019 = vst [vmem:[%s3686] ss:$4 sm:$0xff] %v3220
        %4020 = vst [vmem:[%s3688] ss:$4 sm:$0xff] %v3224
        %4021 = vst [vmem:[%s3690] ss:$4 sm:$0xff] %v3228
        %v4022 = vld.sshfl [vmem:[#allocation1] sm:$0xff pattern:$0x73625140]
        %v4023 = vld.sshfl [vmem:[#allocation1 + $0x20] sm:$0xff pattern:$0x73625140]
        %4024 = vst [vmem:[#allocation1] ss:$4 sm:$0xff] %v3232
        %4025 = vst [vmem:[%s3678] ss:$4 sm:$0xff] %v3236
        %4026 = vst [vmem:[%s3680] ss:$4 sm:$0xff] %v3240
        %4027 = vst [vmem:[%s3682] ss:$4 sm:$0xff] %v3244
        %4028 = vst [vmem:[%s3684] ss:$4 sm:$0xff] %v3248
        %4029 = vst [vmem:[%s3686] ss:$4 sm:$0xff] %v3252
        %4030 = vst [vmem:[%s3688] ss:$4 sm:$0xff] %v3256
        %4031 = vst [vmem:[%s3690] ss:$4 sm:$0xff] %v3260
        %v4032 = vld.sshfl [vmem:[#allocation1] sm:$0xff pattern:$0x73625140]
        %v4033 = vld.sshfl [vmem:[#allocation1 + $0x20] sm:$0xff pattern:$0x73625140]
        %4034 = vst [vmem:[#allocation1] ss:$4 sm:$0xff] %v3264
        %4035 = vst [vmem:[%s3678] ss:$4 sm:$0xff] %v3268
        %4036 = vst [vmem:[%s3680] ss:$4 sm:$0xff] %v3272
        %4037 = vst [vmem:[%s3682] ss:$4 sm:$0xff] %v3276
        %4038 = vst [vmem:[%s3684] ss:$4 sm:$0xff] %v3280
        %4039 = vst [vmem:[%s3686] ss:$4 sm:$0xff] %v3284
        %4040 = vst [vmem:[%s3688] ss:$4 sm:$0xff] %v3288
        %4041 = vst [vmem:[%s3690] ss:$4 sm:$0xff] %v3292
        %v4042 = vld.sshfl [vmem:[#allocation1] sm:$0xff pattern:$0x73625140]
        %v4043 = vld.sshfl [vmem:[#allocation1 + $0x20] sm:$0xff pattern:$0x73625140]
        %4044 = vst [vmem:[#allocation1] ss:$4 sm:$0xff] %v3296
        %4045 = vst [vmem:[%s3678] ss:$4 sm:$0xff] %v3300
        %4046 = vst [vmem:[%s3680] ss:$4 sm:$0xff] %v3304
        %4047 = vst [vmem:[%s3682] ss:$4 sm:$0xff] %v3308
        %4048 = vst [vmem:[%s3684] ss:$4 sm:$0xff] %v3312
        %4049 = vst [vmem:[%s3686] ss:$4 sm:$0xff] %v3316
        %4050 = vst [vmem:[%s3688] ss:$4 sm:$0xff] %v3320
        %4051 = vst [vmem:[%s3690] ss:$4 sm:$0xff] %v3324
        %v4052 = vld.sshfl [vmem:[#allocation1] sm:$0xff pattern:$0x73625140]
        %v4053 = vld.sshfl [vmem:[#allocation1 + $0x20] sm:$0xff pattern:$0x73625140]
        %4054 = vst [vmem:[#allocation1] ss:$4 sm:$0xff] %v3328
        %4055 = vst [vmem:[%s3678] ss:$4 sm:$0xff] %v3332
        %4056 = vst [vmem:[%s3680] ss:$4 sm:$0xff] %v3336
        %4057 = vst [vmem:[%s3682] ss:$4 sm:$0xff] %v3340
        %4058 = vst [vmem:[%s3684] ss:$4 sm:$0xff] %v3344
        %4059 = vst [vmem:[%s3686] ss:$4 sm:$0xff] %v3348
        %4060 = vst [vmem:[%s3688] ss:$4 sm:$0xff] %v3352
        %4061 = vst [vmem:[%s3690] ss:$4 sm:$0xff] %v3356
        %v4062 = vld.sshfl [vmem:[#allocation1] sm:$0xff pattern:$0x73625140]
        %v4063 = vld.sshfl [vmem:[#allocation1 + $0x20] sm:$0xff pattern:$0x73625140]
        %4064 = vst [vmem:[#allocation1] ss:$4 sm:$0xff] %v3360
        %4065 = vst [vmem:[%s3678] ss:$4 sm:$0xff] %v3364
        %4066 = vst [vmem:[%s3680] ss:$4 sm:$0xff] %v3368
        %4067 = vst [vmem:[%s3682] ss:$4 sm:$0xff] %v3372
        %4068 = vst [vmem:[%s3684] ss:$4 sm:$0xff] %v3376
        %4069 = vst [vmem:[%s3686] ss:$4 sm:$0xff] %v3380
        %4070 = vst [vmem:[%s3688] ss:$4 sm:$0xff] %v3384
        %4071 = vst [vmem:[%s3690] ss:$4 sm:$0xff] %v3388
        %v4072 = vld.sshfl [vmem:[#allocation1] sm:$0xff pattern:$0x73625140]
        %v4073 = vld.sshfl [vmem:[#allocation1 + $0x20] sm:$0xff pattern:$0x73625140]
        %4074 = vst [vmem:[#allocation1] ss:$4 sm:$0xff] %v3392
        %4075 = vst [vmem:[%s3678] ss:$4 sm:$0xff] %v3396
        %4076 = vst [vmem:[%s3680] ss:$4 sm:$0xff] %v3400
        %4077 = vst [vmem:[%s3682] ss:$4 sm:$0xff] %v3404
        %4078 = vst [vmem:[%s3684] ss:$4 sm:$0xff] %v3408
        %4079 = vst [vmem:[%s3686] ss:$4 sm:$0xff] %v3412
        %4080 = vst [vmem:[%s3688] ss:$4 sm:$0xff] %v3416
        %4081 = vst [vmem:[%s3690] ss:$4 sm:$0xff] %v3420
        %v4082 = vld.sshfl [vmem:[#allocation1] sm:$0xff pattern:$0x73625140]
        %v4083 = vld.sshfl [vmem:[#allocation1 + $0x20] sm:$0xff pattern:$0x73625140]
        %4084 = vst [vmem:[#allocation1] ss:$4 sm:$0xff] %v3424
        %4085 = vst [vmem:[%s3678] ss:$4 sm:$0xff] %v3428
        %4086 = vst [vmem:[%s3680] ss:$4 sm:$0xff] %v3432
        %4087 = vst [vmem:[%s3682] ss:$4 sm:$0xff] %v3436
        %4088 = vst [vmem:[%s3684] ss:$4 sm:$0xff] %v3440
        %4089 = vst [vmem:[%s3686] ss:$4 sm:$0xff] %v3444
        %4090 = vst [vmem:[%s3688] ss:$4 sm:$0xff] %v3448
        %4091 = vst [vmem:[%s3690] ss:$4 sm:$0xff] %v3452
        %v4092 = vld.sshfl [vmem:[#allocation1] sm:$0xff pattern:$0x73625140]
        %v4093 = vld.sshfl [vmem:[#allocation1 + $0x20] sm:$0xff pattern:$0x73625140]
        %4094 = vst [vmem:[#allocation1] ss:$4 sm:$0xff] %v3456
        %4095 = vst [vmem:[%s3678] ss:$4 sm:$0xff] %v3460
        %4096 = vst [vmem:[%s3680] ss:$4 sm:$0xff] %v3464
        %4097 = vst [vmem:[%s3682] ss:$4 sm:$0xff] %v3468
        %4098 = vst [vmem:[%s3684] ss:$4 sm:$0xff] %v3472
        %4099 = vst [vmem:[%s3686] ss:$4 sm:$0xff] %v3476
        %4100 = vst [vmem:[%s3688] ss:$4 sm:$0xff] %v3480
        %4101 = vst [vmem:[%s3690] ss:$4 sm:$0xff] %v3484
        %v4102 = vld.sshfl [vmem:[#allocation1] sm:$0xff pattern:$0x73625140]
        %v4103 = vld.sshfl [vmem:[#allocation1 + $0x20] sm:$0xff pattern:$0x73625140]
        %4104 = vst [vmem:[#allocation1] ss:$4 sm:$0xff] %v3488
        %4105 = vst [vmem:[%s3678] ss:$4 sm:$0xff] %v3492
        %4106 = vst [vmem:[%s3680] ss:$4 sm:$0xff] %v3496
        %4107 = vst [vmem:[%s3682] ss:$4 sm:$0xff] %v3500
        %4108 = vst [vmem:[%s3684] ss:$4 sm:$0xff] %v3504
        %4109 = vst [vmem:[%s3686] ss:$4 sm:$0xff] %v3508
        %4110 = vst [vmem:[%s3688] ss:$4 sm:$0xff] %v3512
        %4111 = vst [vmem:[%s3690] ss:$4 sm:$0xff] %v3516
        %v4112 = vld.sshfl [vmem:[#allocation1] sm:$0xff pattern:$0x73625140]
        %v4113 = vld.sshfl [vmem:[#allocation1 + $0x20] sm:$0xff pattern:$0x73625140]
        %4114 = vst [vmem:[#allocation1] ss:$4 sm:$0xff] %v3520
        %4115 = vst [vmem:[%s3678] ss:$4 sm:$0xff] %v3524
        %4116 = vst [vmem:[%s3680] ss:$4 sm:$0xff] %v3528
        %4117 = vst [vmem:[%s3682] ss:$4 sm:$0xff] %v3532
        %4118 = vst [vmem:[%s3684] ss:$4 sm:$0xff] %v3536
        %4119 = vst [vmem:[%s3686] ss:$4 sm:$0xff] %v3540
        %4120 = vst [vmem:[%s3688] ss:$4 sm:$0xff] %v3544
        %4121 = vst [vmem:[%s3690] ss:$4 sm:$0xff] %v3548
        %v4122 = vld.sshfl [vmem:[#allocation1] sm:$0xff pattern:$0x73625140]
        %v4123 = vld.sshfl [vmem:[#allocation1 + $0x20] sm:$0xff pattern:$0x73625140]
        %4124 = vst [vmem:[#allocation1] ss:$4 sm:$0xff] %v3552
        %4125 = vst [vmem:[%s3678] ss:$4 sm:$0xff] %v3556
        %4126 = vst [vmem:[%s3680] ss:$4 sm:$0xff] %v3560
        %4127 = vst [vmem:[%s3682] ss:$4 sm:$0xff] %v3564
        %4128 = vst [vmem:[%s3684] ss:$4 sm:$0xff] %v3568
        %4129 = vst [vmem:[%s3686] ss:$4 sm:$0xff] %v3572
        %4130 = vst [vmem:[%s3688] ss:$4 sm:$0xff] %v3576
        %4131 = vst [vmem:[%s3690] ss:$4 sm:$0xff] %v3580
        %v4132 = vld.sshfl [vmem:[#allocation1] sm:$0xff pattern:$0x73625140]
        %v4133 = vld.sshfl [vmem:[#allocation1 + $0x20] sm:$0xff pattern:$0x73625140]
        %4134 = vst [vmem:[#allocation1] ss:$4 sm:$0xff] %v3584
        %4135 = vst [vmem:[%s3678] ss:$4 sm:$0xff] %v3588
        %4136 = vst [vmem:[%s3680] ss:$4 sm:$0xff] %v3592
        %4137 = vst [vmem:[%s3682] ss:$4 sm:$0xff] %v3596
        %4138 = vst [vmem:[%s3684] ss:$4 sm:$0xff] %v3600
        %4139 = vst [vmem:[%s3686] ss:$4 sm:$0xff] %v3604
        %4140 = vst [vmem:[%s3688] ss:$4 sm:$0xff] %v3608
        %4141 = vst [vmem:[%s3690] ss:$4 sm:$0xff] %v3612
        %v4142 = vld.sshfl [vmem:[#allocation1] sm:$0xff pattern:$0x73625140]
        %v4143 = vld.sshfl [vmem:[#allocation1 + $0x20] sm:$0xff pattern:$0x73625140]
        %4144 = vst [vmem:[#allocation1] ss:$4 sm:$0xff] %v3616
        %4145 = vst [vmem:[%s3678] ss:$4 sm:$0xff] %v3620
        %4146 = vst [vmem:[%s3680] ss:$4 sm:$0xff] %v3624
        %4147 = vst [vmem:[%s3682] ss:$4 sm:$0xff] %v3628
        %4148 = vst [vmem:[%s3684] ss:$4 sm:$0xff] %v3632
        %4149 = vst [vmem:[%s3686] ss:$4 sm:$0xff] %v3636
        %4150 = vst [vmem:[%s3688] ss:$4 sm:$0xff] %v3640
        %4151 = vst [vmem:[%s3690] ss:$4 sm:$0xff] %v3644
        %v4152 = vld.sshfl [vmem:[#allocation1] sm:$0xff pattern:$0x73625140]
        %v4153 = vld.sshfl [vmem:[#allocation1 + $0x20] sm:$0xff pattern:$0x73625140]
        %4154 = vst [vmem:[#allocation1] ss:$4 sm:$0xff] %v3648
        %4155 = vst [vmem:[%s3678] ss:$4 sm:$0xff] %v3652
        %4156 = vst [vmem:[%s3680] ss:$4 sm:$0xff] %v3656
        %4157 = vst [vmem:[%s3682] ss:$4 sm:$0xff] %v3660
        %4158 = vst [vmem:[%s3684] ss:$4 sm:$0xff] %v3664
        %4159 = vst [vmem:[%s3686] ss:$4 sm:$0xff] %v3668
        %4160 = vst [vmem:[%s3688] ss:$4 sm:$0xff] %v3672
        %4161 = vst [vmem:[%s3690] ss:$4 sm:$0xff] %v3676
        %v4162 = vld.sshfl [vmem:[#allocation1] sm:$0xff pattern:$0x73625140]
        %v4163 = vld.sshfl [vmem:[#allocation1 + $0x20] sm:$0xff pattern:$0x73625140]
        %4164 = vset.pattern.permute.xlu0 0
        %4165 = vperm.xlu0 %4164, %v3692
        %v4166 = vpop.permute.xlu0 %4165
        %4167 = vset.pattern.permute.xlu0 0
        %4168 = vperm.xlu0 %4167, %v3693
        %v4169 = vpop.permute.xlu0 %4168
        %4170 = vset.pattern.permute.xlu0 0
        %4171 = vperm.xlu0 %4170, %v3702
        %v4172 = vpop.permute.xlu0 %4171
        %4173 = vset.pattern.permute.xlu0 0
        %4174 = vperm.xlu0 %4173, %v3703
        %v4175 = vpop.permute.xlu0 %4174
        %4176 = vset.pattern.permute.xlu0 0
        %4177 = vperm.xlu0 %4176, %v3712
        %v4178 = vpop.permute.xlu0 %4177
        %4179 = vset.pattern.permute.xlu0 0
        %4180 = vperm.xlu0 %4179, %v3713
        %v4181 = vpop.permute.xlu0 %4180
        %4182 = vset.pattern.permute.xlu0 0
        %4183 = vperm.xlu0 %4182, %v3722
        %v4184 = vpop.permute.xlu0 %4183
        %4185 = vset.pattern.permute.xlu0 0
        %4186 = vperm.xlu0 %4185, %v3723
        %v4187 = vpop.permute.xlu0 %4186
        %4188 = vset.pattern.permute.xlu0 0
        %4189 = vperm.xlu0 %4188, %v3732
        %v4190 = vpop.permute.xlu0 %4189
        %4191 = vset.pattern.permute.xlu0 0
        %4192 = vperm.xlu0 %4191, %v3733
        %v4193 = vpop.permute.xlu0 %4192
        %4194 = vset.pattern.permute.xlu0 0
        %4195 = vperm.xlu0 %4194, %v3742
        %v4196 = vpop.permute.xlu0 %4195
        %4197 = vset.pattern.permute.xlu0 0
        %4198 = vperm.xlu0 %4197, %v3743
        %v4199 = vpop.permute.xlu0 %4198
        %4200 = vset.pattern.permute.xlu0 0
        %4201 = vperm.xlu0 %4200, %v3752
        %v4202 = vpop.permute.xlu0 %4201
        %4203 = vset.pattern.permute.xlu0 0
        %4204 = vperm.xlu0 %4203, %v3753
        %v4205 = vpop.permute.xlu0 %4204
        %4206 = vset.pattern.permute.xlu0 0
        %4207 = vperm.xlu0 %4206, %v3762
        %v4208 = vpop.permute.xlu0 %4207
        %4209 = vset.pattern.permute.xlu0 0
        %4210 = vperm.xlu0 %4209, %v3763
        %v4211 = vpop.permute.xlu0 %4210
        %4212 = vset.pattern.permute.xlu0 0
        %4213 = vperm.xlu0 %4212, %v3772
        %v4214 = vpop.permute.xlu0 %4213
        %4215 = vset.pattern.permute.xlu0 0
        %4216 = vperm.xlu0 %4215, %v3773
        %v4217 = vpop.permute.xlu0 %4216
        %4218 = vset.pattern.permute.xlu0 0
        %4219 = vperm.xlu0 %4218, %v3782
        %v4220 = vpop.permute.xlu0 %4219
        %4221 = vset.pattern.permute.xlu0 0
        %4222 = vperm.xlu0 %4221, %v3783
        %v4223 = vpop.permute.xlu0 %4222
        %4224 = vset.pattern.permute.xlu0 0
        %4225 = vperm.xlu0 %4224, %v3792
        %v4226 = vpop.permute.xlu0 %4225
        %4227 = vset.pattern.permute.xlu0 0
        %4228 = vperm.xlu0 %4227, %v3793
        %v4229 = vpop.permute.xlu0 %4228
        %4230 = vset.pattern.permute.xlu0 0
        %4231 = vperm.xlu0 %4230, %v3802
        %v4232 = vpop.permute.xlu0 %4231
        %4233 = vset.pattern.permute.xlu0 0
        %4234 = vperm.xlu0 %4233, %v3803
        %v4235 = vpop.permute.xlu0 %4234
        %4236 = vset.pattern.permute.xlu0 0
        %4237 = vperm.xlu0 %4236, %v3812
        %v4238 = vpop.permute.xlu0 %4237
        %4239 = vset.pattern.permute.xlu0 0
        %4240 = vperm.xlu0 %4239, %v3813
        %v4241 = vpop.permute.xlu0 %4240
        %4242 = vset.pattern.permute.xlu0 0
        %4243 = vperm.xlu0 %4242, %v3822
        %v4244 = vpop.permute.xlu0 %4243
        %4245 = vset.pattern.permute.xlu0 0
        %4246 = vperm.xlu0 %4245, %v3823
        %v4247 = vpop.permute.xlu0 %4246
        %4248 = vset.pattern.permute.xlu0 0
        %4249 = vperm.xlu0 %4248, %v3832
        %v4250 = vpop.permute.xlu0 %4249
        %4251 = vset.pattern.permute.xlu0 0
        %4252 = vperm.xlu0 %4251, %v3833
        %v4253 = vpop.permute.xlu0 %4252
        %4254 = vset.pattern.permute.xlu0 0
        %4255 = vperm.xlu0 %4254, %v3842
        %v4256 = vpop.permute.xlu0 %4255
        %4257 = vset.pattern.permute.xlu0 0
        %4258 = vperm.xlu0 %4257, %v3843
        %v4259 = vpop.permute.xlu0 %4258
        %4260 = vset.pattern.permute.xlu0 0
        %4261 = vperm.xlu0 %4260, %v3852
        %v4262 = vpop.permute.xlu0 %4261
        %4263 = vset.pattern.permute.xlu0 0
        %4264 = vperm.xlu0 %4263, %v3853
        %v4265 = vpop.permute.xlu0 %4264
        %4266 = vset.pattern.permute.xlu0 0
        %4267 = vperm.xlu0 %4266, %v3862
        %v4268 = vpop.permute.xlu0 %4267
        %4269 = vset.pattern.permute.xlu0 0
        %4270 = vperm.xlu0 %4269, %v3863
        %v4271 = vpop.permute.xlu0 %4270
        %4272 = vset.pattern.permute.xlu0 0
        %4273 = vperm.xlu0 %4272, %v3872
        %v4274 = vpop.permute.xlu0 %4273
        %4275 = vset.pattern.permute.xlu0 0
        %4276 = vperm.xlu0 %4275, %v3873
        %v4277 = vpop.permute.xlu0 %4276
        %4278 = vset.pattern.permute.xlu0 0
        %4279 = vperm.xlu0 %4278, %v3882
        %v4280 = vpop.permute.xlu0 %4279
        %4281 = vset.pattern.permute.xlu0 0
        %4282 = vperm.xlu0 %4281, %v3883
        %v4283 = vpop.permute.xlu0 %4282
        %4284 = vset.pattern.permute.xlu0 0
        %4285 = vperm.xlu0 %4284, %v3892
        %v4286 = vpop.permute.xlu0 %4285
        %4287 = vset.pattern.permute.xlu0 0
        %4288 = vperm.xlu0 %4287, %v3893
        %v4289 = vpop.permute.xlu0 %4288
        %4290 = vset.pattern.permute.xlu0 0
        %4291 = vperm.xlu0 %4290, %v3902
        %v4292 = vpop.permute.xlu0 %4291
        %4293 = vset.pattern.permute.xlu0 0
        %4294 = vperm.xlu0 %4293, %v3903
        %v4295 = vpop.permute.xlu0 %4294
        %4296 = vset.pattern.permute.xlu0 0
        %4297 = vperm.xlu0 %4296, %v3912
        %v4298 = vpop.permute.xlu0 %4297
        %4299 = vset.pattern.permute.xlu0 0
        %4300 = vperm.xlu0 %4299, %v3913
        %v4301 = vpop.permute.xlu0 %4300
        %4302 = vset.pattern.permute.xlu0 0
        %4303 = vperm.xlu0 %4302, %v3922
        %v4304 = vpop.permute.xlu0 %4303
        %4305 = vset.pattern.permute.xlu0 0
        %4306 = vperm.xlu0 %4305, %v3923
        %v4307 = vpop.permute.xlu0 %4306
        %4308 = vset.pattern.permute.xlu0 0
        %4309 = vperm.xlu0 %4308, %v3932
        %v4310 = vpop.permute.xlu0 %4309
        %4311 = vset.pattern.permute.xlu0 0
        %4312 = vperm.xlu0 %4311, %v3933
        %v4313 = vpop.permute.xlu0 %4312
        %4314 = vset.pattern.permute.xlu0 0
        %4315 = vperm.xlu0 %4314, %v3942
        %v4316 = vpop.permute.xlu0 %4315
        %4317 = vset.pattern.permute.xlu0 0
        %4318 = vperm.xlu0 %4317, %v3943
        %v4319 = vpop.permute.xlu0 %4318
        %4320 = vset.pattern.permute.xlu0 0
        %4321 = vperm.xlu0 %4320, %v3952
        %v4322 = vpop.permute.xlu0 %4321
        %4323 = vset.pattern.permute.xlu0 0
        %4324 = vperm.xlu0 %4323, %v3953
        %v4325 = vpop.permute.xlu0 %4324
        %4326 = vset.pattern.permute.xlu0 0
        %4327 = vperm.xlu0 %4326, %v3962
        %v4328 = vpop.permute.xlu0 %4327
        %4329 = vset.pattern.permute.xlu0 0
        %4330 = vperm.xlu0 %4329, %v3963
        %v4331 = vpop.permute.xlu0 %4330
        %4332 = vset.pattern.permute.xlu0 0
        %4333 = vperm.xlu0 %4332, %v3972
        %v4334 = vpop.permute.xlu0 %4333
        %4335 = vset.pattern.permute.xlu0 0
        %4336 = vperm.xlu0 %4335, %v3973
        %v4337 = vpop.permute.xlu0 %4336
        %4338 = vset.pattern.permute.xlu0 0
        %4339 = vperm.xlu0 %4338, %v3982
        %v4340 = vpop.permute.xlu0 %4339
        %4341 = vset.pattern.permute.xlu0 0
        %4342 = vperm.xlu0 %4341, %v3983
        %v4343 = vpop.permute.xlu0 %4342
        %4344 = vset.pattern.permute.xlu0 0
        %4345 = vperm.xlu0 %4344, %v3992
        %v4346 = vpop.permute.xlu0 %4345
        %4347 = vset.pattern.permute.xlu0 0
        %4348 = vperm.xlu0 %4347, %v3993
        %v4349 = vpop.permute.xlu0 %4348
        %4350 = vset.pattern.permute.xlu0 0
        %4351 = vperm.xlu0 %4350, %v4002
        %v4352 = vpop.permute.xlu0 %4351
        %4353 = vset.pattern.permute.xlu0 0
        %4354 = vperm.xlu0 %4353, %v4003
        %v4355 = vpop.permute.xlu0 %4354
        %4356 = vset.pattern.permute.xlu0 0
        %4357 = vperm.xlu0 %4356, %v4012
        %v4358 = vpop.permute.xlu0 %4357
        %4359 = vset.pattern.permute.xlu0 0
        %4360 = vperm.xlu0 %4359, %v4013
        %v4361 = vpop.permute.xlu0 %4360
        %4362 = vset.pattern.permute.xlu0 0
        %4363 = vperm.xlu0 %4362, %v4022
        %v4364 = vpop.permute.xlu0 %4363
        %4365 = vset.pattern.permute.xlu0 0
        %4366 = vperm.xlu0 %4365, %v4023
        %v4367 = vpop.permute.xlu0 %4366
        %4368 = vset.pattern.permute.xlu0 0
        %4369 = vperm.xlu0 %4368, %v4032
        %v4370 = vpop.permute.xlu0 %4369
        %4371 = vset.pattern.permute.xlu0 0
        %4372 = vperm.xlu0 %4371, %v4033
        %v4373 = vpop.permute.xlu0 %4372
        %4374 = vset.pattern.permute.xlu0 0
        %4375 = vperm.xlu0 %4374, %v4042
        %v4376 = vpop.permute.xlu0 %4375
        %4377 = vset.pattern.permute.xlu0 0
        %4378 = vperm.xlu0 %4377, %v4043
        %v4379 = vpop.permute.xlu0 %4378
        %4380 = vset.pattern.permute.xlu0 0
        %4381 = vperm.xlu0 %4380, %v4052
        %v4382 = vpop.permute.xlu0 %4381
        %4383 = vset.pattern.permute.xlu0 0
        %4384 = vperm.xlu0 %4383, %v4053
        %v4385 = vpop.permute.xlu0 %4384
        %4386 = vset.pattern.permute.xlu0 0
        %4387 = vperm.xlu0 %4386, %v4062
        %v4388 = vpop.permute.xlu0 %4387
        %4389 = vset.pattern.permute.xlu0 0
        %4390 = vperm.xlu0 %4389, %v4063
        %v4391 = vpop.permute.xlu0 %4390
        %4392 = vset.pattern.permute.xlu0 0
        %4393 = vperm.xlu0 %4392, %v4072
        %v4394 = vpop.permute.xlu0 %4393
        %4395 = vset.pattern.permute.xlu0 0
        %4396 = vperm.xlu0 %4395, %v4073
        %v4397 = vpop.permute.xlu0 %4396
        %4398 = vset.pattern.permute.xlu0 0
        %4399 = vperm.xlu0 %4398, %v4082
        %v4400 = vpop.permute.xlu0 %4399
        %4401 = vset.pattern.permute.xlu0 0
        %4402 = vperm.xlu0 %4401, %v4083
        %v4403 = vpop.permute.xlu0 %4402
        %4404 = vset.pattern.permute.xlu0 0
        %4405 = vperm.xlu0 %4404, %v4092
        %v4406 = vpop.permute.xlu0 %4405
        %4407 = vset.pattern.permute.xlu0 0
        %4408 = vperm.xlu0 %4407, %v4093
        %v4409 = vpop.permute.xlu0 %4408
        %4410 = vset.pattern.permute.xlu0 0
        %4411 = vperm.xlu0 %4410, %v4102
        %v4412 = vpop.permute.xlu0 %4411
        %4413 = vset.pattern.permute.xlu0 0
        %4414 = vperm.xlu0 %4413, %v4103
        %v4415 = vpop.permute.xlu0 %4414
        %4416 = vset.pattern.permute.xlu0 0
        %4417 = vperm.xlu0 %4416, %v4112
        %v4418 = vpop.permute.xlu0 %4417
        %4419 = vset.pattern.permute.xlu0 0
        %4420 = vperm.xlu0 %4419, %v4113
        %v4421 = vpop.permute.xlu0 %4420
        %4422 = vset.pattern.permute.xlu0 0
        %4423 = vperm.xlu0 %4422, %v4122
        %v4424 = vpop.permute.xlu0 %4423
        %4425 = vset.pattern.permute.xlu0 0
        %4426 = vperm.xlu0 %4425, %v4123
        %v4427 = vpop.permute.xlu0 %4426
        %4428 = vset.pattern.permute.xlu0 0
        %4429 = vperm.xlu0 %4428, %v4132
        %v4430 = vpop.permute.xlu0 %4429
        %4431 = vset.pattern.permute.xlu0 0
        %4432 = vperm.xlu0 %4431, %v4133
        %v4433 = vpop.permute.xlu0 %4432
        %4434 = vset.pattern.permute.xlu0 0
        %4435 = vperm.xlu0 %4434, %v4142
        %v4436 = vpop.permute.xlu0 %4435
        %4437 = vset.pattern.permute.xlu0 0
        %4438 = vperm.xlu0 %4437, %v4143
        %v4439 = vpop.permute.xlu0 %4438
        %4440 = vset.pattern.permute.xlu0 0
        %4441 = vperm.xlu0 %4440, %v4152
        %v4442 = vpop.permute.xlu0 %4441
        %4443 = vset.pattern.permute.xlu0 0
        %4444 = vperm.xlu0 %4443, %v4153
        %v4445 = vpop.permute.xlu0 %4444
        %4446 = vset.pattern.permute.xlu0 0
        %4447 = vperm.xlu0 %4446, %v4162
        %v4448 = vpop.permute.xlu0 %4447
        %4449 = vset.pattern.permute.xlu0 0
        %4450 = vperm.xlu0 %4449, %v4163
        %v4451 = vpop.permute.xlu0 %4450
        %v4452 = vlaneseq
        %v4453 = vand.u32 %v4452, 127
        %v4454 = vperm.slane %v4166, %v4453
        %v4455 = vadd.s32 %v4453, 4294967288
        %v4456 = vperm.slane %v4169, %v4455
        %vm4457 = vcmask 130112
        %v4458 = vsel %vm4457, %v4456, %v4454
        %v4459 = vadd.s32 %v4453, 4294967280
        %v4460 = vperm.slane %v4172, %v4459
        %vm4461 = vcmask 195712
        %v4462 = vsel %vm4461, %v4460, %v4458
        %v4463 = vadd.s32 %v4453, 4294967272
        %v4464 = vperm.slane %v4175, %v4463
        %vm4465 = vcmask 261312
        %v4466 = vsel %vm4465, %v4464, %v4462
        %v4467 = vadd.s32 %v4453, 4294967264
        %v4468 = vperm.slane %v4178, %v4467
        %vm4469 = vcmask 326912
        %v4470 = vsel %vm4469, %v4468, %v4466
        %v4471 = vadd.s32 %v4453, 4294967256
        %v4472 = vperm.slane %v4181, %v4471
        %vm4473 = vcmask 392512
        %v4474 = vsel %vm4473, %v4472, %v4470
        %v4475 = vadd.s32 %v4453, 4294967248
        %v4476 = vperm.slane %v4184, %v4475
        %vm4477 = vcmask 458112
        %v4478 = vsel %vm4477, %v4476, %v4474
        %v4479 = vadd.s32 %v4453, 4294967240
        %v4480 = vperm.slane %v4187, %v4479
        %vm4481 = vcmask 523712
        %v4482 = vsel %vm4481, %v4480, %v4478
        %v4483 = vadd.s32 %v4453, 4294967232
        %v4484 = vperm.slane %v4190, %v4483
        %vm4485 = vcmask 589312
        %v4486 = vsel %vm4485, %v4484, %v4482
        %v4487 = vadd.s32 %v4453, 4294967224
        %v4488 = vperm.slane %v4193, %v4487
        %vm4489 = vcmask 654912
        %v4490 = vsel %vm4489, %v4488, %v4486
        %v4491 = vadd.s32 %v4453, 4294967216
        %v4492 = vperm.slane %v4196, %v4491
        %vm4493 = vcmask 720512
        %v4494 = vsel %vm4493, %v4492, %v4490
        %v4495 = vadd.s32 %v4453, 4294967208
        %v4496 = vperm.slane %v4199, %v4495
        %vm4497 = vcmask 786112
        %v4498 = vsel %vm4497, %v4496, %v4494
        %v4499 = vadd.s32 %v4453, 4294967200
        %v4500 = vperm.slane %v4202, %v4499
        %vm4501 = vcmask 851712
        %v4502 = vsel %vm4501, %v4500, %v4498
        %v4503 = vadd.s32 %v4453, 4294967192
        %v4504 = vperm.slane %v4205, %v4503
        %vm4505 = vcmask 917312
        %v4506 = vsel %vm4505, %v4504, %v4502
        %v4507 = vadd.s32 %v4453, 4294967184
        %v4508 = vperm.slane %v4208, %v4507
        %vm4509 = vcmask 982912
        %v4510 = vsel %vm4509, %v4508, %v4506
        %v4511 = vadd.s32 %v4453, 4294967176
        %v4512 = vperm.slane %v4211, %v4511
        %vm4513 = vcmask 1048512
        %v4514 = vsel %vm4513, %v4512, %v4510
        %v4515 = vperm.slane %v4214, %v4453
        %v4516 = vperm.slane %v4217, %v4455
        %v4517 = vsel %vm4457, %v4516, %v4515
        %v4518 = vperm.slane %v4220, %v4459
        %v4519 = vsel %vm4461, %v4518, %v4517
        %v4520 = vperm.slane %v4223, %v4463
        %v4521 = vsel %vm4465, %v4520, %v4519
        %v4522 = vperm.slane %v4226, %v4467
        %v4523 = vsel %vm4469, %v4522, %v4521
        %v4524 = vperm.slane %v4229, %v4471
        %v4525 = vsel %vm4473, %v4524, %v4523
        %v4526 = vperm.slane %v4232, %v4475
        %v4527 = vsel %vm4477, %v4526, %v4525
        %v4528 = vperm.slane %v4235, %v4479
        %v4529 = vsel %vm4481, %v4528, %v4527
        %v4530 = vperm.slane %v4238, %v4483
        %v4531 = vsel %vm4485, %v4530, %v4529
        %v4532 = vperm.slane %v4241, %v4487
        %v4533 = vsel %vm4489, %v4532, %v4531
        %v4534 = vperm.slane %v4244, %v4491
        %v4535 = vsel %vm4493, %v4534, %v4533
        %v4536 = vperm.slane %v4247, %v4495
        %v4537 = vsel %vm4497, %v4536, %v4535
        %v4538 = vperm.slane %v4250, %v4499
        %v4539 = vsel %vm4501, %v4538, %v4537
        %v4540 = vperm.slane %v4253, %v4503
        %v4541 = vsel %vm4505, %v4540, %v4539
        %v4542 = vperm.slane %v4256, %v4507
        %v4543 = vsel %vm4509, %v4542, %v4541
        %v4544 = vperm.slane %v4259, %v4511
        %v4545 = vsel %vm4513, %v4544, %v4543
        %v4546 = vperm.slane %v4262, %v4453
        %v4547 = vperm.slane %v4265, %v4455
        %v4548 = vsel %vm4457, %v4547, %v4546
        %v4549 = vperm.slane %v4268, %v4459
        %v4550 = vsel %vm4461, %v4549, %v4548
        %v4551 = vperm.slane %v4271, %v4463
        %v4552 = vsel %vm4465, %v4551, %v4550
        %v4553 = vperm.slane %v4274, %v4467
        %v4554 = vsel %vm4469, %v4553, %v4552
        %v4555 = vperm.slane %v4277, %v4471
        %v4556 = vsel %vm4473, %v4555, %v4554
        %v4557 = vperm.slane %v4280, %v4475
        %v4558 = vsel %vm4477, %v4557, %v4556
        %v4559 = vperm.slane %v4283, %v4479
        %v4560 = vsel %vm4481, %v4559, %v4558
        %v4561 = vperm.slane %v4286, %v4483
        %v4562 = vsel %vm4485, %v4561, %v4560
        %v4563 = vperm.slane %v4289, %v4487
        %v4564 = vsel %vm4489, %v4563, %v4562
        %v4565 = vperm.slane %v4292, %v4491
        %v4566 = vsel %vm4493, %v4565, %v4564
        %v4567 = vperm.slane %v4295, %v4495
        %v4568 = vsel %vm4497, %v4567, %v4566
        %v4569 = vperm.slane %v4298, %v4499
        %v4570 = vsel %vm4501, %v4569, %v4568
        %v4571 = vperm.slane %v4301, %v4503
        %v4572 = vsel %vm4505, %v4571, %v4570
        %v4573 = vperm.slane %v4304, %v4507
        %v4574 = vsel %vm4509, %v4573, %v4572
        %v4575 = vperm.slane %v4307, %v4511
        %v4576 = vsel %vm4513, %v4575, %v4574
        %v4577 = vperm.slane %v4310, %v4453
        %v4578 = vperm.slane %v4313, %v4455
        %v4579 = vsel %vm4457, %v4578, %v4577
        %v4580 = vperm.slane %v4316, %v4459
        %v4581 = vsel %vm4461, %v4580, %v4579
        %v4582 = vperm.slane %v4319, %v4463
        %v4583 = vsel %vm4465, %v4582, %v4581
        %v4584 = vperm.slane %v4322, %v4467
        %v4585 = vsel %vm4469, %v4584, %v4583
        %v4586 = vperm.slane %v4325, %v4471
        %v4587 = vsel %vm4473, %v4586, %v4585
        %v4588 = vperm.slane %v4328, %v4475
        %v4589 = vsel %vm4477, %v4588, %v4587
        %v4590 = vperm.slane %v4331, %v4479
        %v4591 = vsel %vm4481, %v4590, %v4589
        %v4592 = vperm.slane %v4334, %v4483
        %v4593 = vsel %vm4485, %v4592, %v4591
        %v4594 = vperm.slane %v4337, %v4487
        %v4595 = vsel %vm4489, %v4594, %v4593
        %v4596 = vperm.slane %v4340, %v4491
        %v4597 = vsel %vm4493, %v4596, %v4595
        %v4598 = vperm.slane %v4343, %v4495
        %v4599 = vsel %vm4497, %v4598, %v4597
        %v4600 = vperm.slane %v4346, %v4499
        %v4601 = vsel %vm4501, %v4600, %v4599
        %v4602 = vperm.slane %v4349, %v4503
        %v4603 = vsel %vm4505, %v4602, %v4601
        %v4604 = vperm.slane %v4352, %v4507
        %v4605 = vsel %vm4509, %v4604, %v4603
        %v4606 = vperm.slane %v4355, %v4511
        %v4607 = vsel %vm4513, %v4606, %v4605
        %v4608 = vperm.slane %v4358, %v4453
        %v4609 = vperm.slane %v4361, %v4455
        %v4610 = vsel %vm4457, %v4609, %v4608
        %v4611 = vperm.slane %v4364, %v4459
        %v4612 = vsel %vm4461, %v4611, %v4610
        %v4613 = vperm.slane %v4367, %v4463
        %v4614 = vsel %vm4465, %v4613, %v4612
        %v4615 = vperm.slane %v4370, %v4467
        %v4616 = vsel %vm4469, %v4615, %v4614
        %v4617 = vperm.slane %v4373, %v4471
        %v4618 = vsel %vm4473, %v4617, %v4616
        %v4619 = vperm.slane %v4376, %v4475
        %v4620 = vsel %vm4477, %v4619, %v4618
        %v4621 = vperm.slane %v4379, %v4479
        %v4622 = vsel %vm4481, %v4621, %v4620
        %v4623 = vperm.slane %v4382, %v4483
        %v4624 = vsel %vm4485, %v4623, %v4622
        %v4625 = vperm.slane %v4385, %v4487
        %v4626 = vsel %vm4489, %v4625, %v4624
        %v4627 = vperm.slane %v4388, %v4491
        %v4628 = vsel %vm4493, %v4627, %v4626
        %v4629 = vperm.slane %v4391, %v4495
        %v4630 = vsel %vm4497, %v4629, %v4628
        %v4631 = vperm.slane %v4394, %v4499
        %v4632 = vsel %vm4501, %v4631, %v4630
        %v4633 = vperm.slane %v4397, %v4503
        %v4634 = vsel %vm4505, %v4633, %v4632
        %v4635 = vperm.slane %v4400, %v4507
        %v4636 = vsel %vm4509, %v4635, %v4634
        %v4637 = vperm.slane %v4403, %v4511
        %v4638 = vsel %vm4513, %v4637, %v4636
        %v4639 = vperm.slane %v4406, %v4453
        %v4640 = vperm.slane %v4409, %v4455
        %v4641 = vsel %vm4457, %v4640, %v4639
        %v4642 = vperm.slane %v4412, %v4459
        %v4643 = vsel %vm4461, %v4642, %v4641
        %v4644 = vperm.slane %v4415, %v4463
        %v4645 = vsel %vm4465, %v4644, %v4643
        %v4646 = vperm.slane %v4418, %v4467
        %v4647 = vsel %vm4469, %v4646, %v4645
        %v4648 = vperm.slane %v4421, %v4471
        %v4649 = vsel %vm4473, %v4648, %v4647
        %v4650 = vperm.slane %v4424, %v4475
        %v4651 = vsel %vm4477, %v4650, %v4649
        %v4652 = vperm.slane %v4427, %v4479
        %v4653 = vsel %vm4481, %v4652, %v4651
        %v4654 = vperm.slane %v4430, %v4483
        %v4655 = vsel %vm4485, %v4654, %v4653
        %v4656 = vperm.slane %v4433, %v4487
        %v4657 = vsel %vm4489, %v4656, %v4655
        %v4658 = vperm.slane %v4436, %v4491
        %v4659 = vsel %vm4493, %v4658, %v4657
        %v4660 = vperm.slane %v4439, %v4495
        %v4661 = vsel %vm4497, %v4660, %v4659
        %v4662 = vperm.slane %v4442, %v4499
        %v4663 = vsel %vm4501, %v4662, %v4661
        %v4664 = vperm.slane %v4445, %v4503
        %v4665 = vsel %vm4505, %v4664, %v4663
        %v4666 = vperm.slane %v4448, %v4507
        %v4667 = vsel %vm4509, %v4666, %v4665
        %v4668 = vperm.slane %v4451, %v4511
        %v4669 = vsel %vm4513, %v4668, %v4667
        %vm4670 = vcmask 1041409
        %v4671 = vsel %vm4670, %v4607, %v4514
        %v4672 = vsel %vm4670, %v4638, %v4545
        %v4673 = vsel %vm4670, %v4669, %v4576
        %v4674 = vrot.slane %v4672, 6
        %v4675 = vrot.slane %v4673, 4
        %vm4676 = vcmask 1041408
        %v4677 = vsel %vm4676, %v4671, %v4674
        %vm4678 = vcmask 1043456
        %v4679 = vsel %vm4678, %v4677, %v4675
        %v4681 = vadd.f32 %v1852, %v4679
        %4682 = vst [vmem:[#allocation2] sm:$0x3f] %v4681
        %p4683 = scmp.eq.s32.totalorder %s19, 1
        // Predicated region
        $region45: #{tpu_custom_call.1} parent=35 // pred_check
          %p4684 = pneg %p4683
        $region46: #{tpu_custom_call.1} parent=35 // pred_check_branch
          %4686 = sbr.rel (%p4684) target = $region48
        $region47: #{tpu_custom_call.1} parent=35 // pred_region
          %v4687 = vld [vmem:[#allocation2] sm:$0x3f]
          %v4688 = vmul.f32 %v4687, 0.00390625
          %v4689 = vld [vmem:[%s2] sm:$0xff]
          %v4690 = vld [vmem:[%s2 + $0x8] sm:$0xff]
          %v4691 = vld [vmem:[%s2 + $0x10] sm:$0xff]
          %v4692 = vld [vmem:[%s2 + $0x18] sm:$0xff]
          %v4693 = vld [vmem:[%s2 + $0x20] sm:$0xff]
          %v4694 = vld [vmem:[%s2 + $0x28] sm:$0xff]
          %v4695 = vld [vmem:[%s2 + $0x30] sm:$0xff]
          %v4696 = vld [vmem:[%s2 + $0x38] sm:$0xff]
          %v4697 = vld [vmem:[%s2 + $0x40] sm:$0xff]
          %v4698 = vld [vmem:[%s2 + $0x48] sm:$0xff]
          %v4699 = vld [vmem:[%s2 + $0x50] sm:$0xff]
          %v4700 = vld [vmem:[%s2 + $0x58] sm:$0xff]
          %v4701 = vld [vmem:[%s2 + $0x60] sm:$0xff]
          %v4702 = vld [vmem:[%s2 + $0x68] sm:$0xff]
          %v4703 = vld [vmem:[%s2 + $0x70] sm:$0xff]
          %v4704 = vld [vmem:[%s2 + $0x78] sm:$0xff]
          %v4705 = vld [vmem:[%s2 + $0x80] sm:$0xff]
          %v4706 = vld [vmem:[%s2 + $0x88] sm:$0xff]
          %v4707 = vld [vmem:[%s2 + $0x90] sm:$0xff]
          %v4708 = vld [vmem:[%s2 + $0x98] sm:$0xff]
          %v4709 = vld [vmem:[%s2 + $0xa0] sm:$0xff]
          %v4710 = vld [vmem:[%s2 + $0xa8] sm:$0xff]
          %v4711 = vld [vmem:[%s2 + $0xb0] sm:$0xff]
          %v4712 = vld [vmem:[%s2 + $0xb8] sm:$0xff]
          %v4713 = vld [vmem:[%s2 + $0xc0] sm:$0xff]
          %v4714 = vld [vmem:[%s2 + $0xc8] sm:$0xff]
          %v4715 = vld [vmem:[%s2 + $0xd0] sm:$0xff]
          %v4716 = vld [vmem:[%s2 + $0xd8] sm:$0xff]
          %v4717 = vld [vmem:[%s2 + $0xe0] sm:$0xff]
          %v4718 = vld [vmem:[%s2 + $0xe8] sm:$0xff]
          %v4719 = vld [vmem:[%s2 + $0xf0] sm:$0xff]
          %v4720 = vld [vmem:[%s2 + $0xf8] sm:$0xff]
          %v4721 = vld [vmem:[%s2 + $0x100] sm:$0xff]
          %v4722 = vld [vmem:[%s2 + $0x108] sm:$0xff]
          %v4723 = vld [vmem:[%s2 + $0x110] sm:$0xff]
          %v4724 = vld [vmem:[%s2 + $0x118] sm:$0xff]
          %v4725 = vld [vmem:[%s2 + $0x120] sm:$0xff]
          %v4726 = vld [vmem:[%s2 + $0x128] sm:$0xff]
          %v4727 = vld [vmem:[%s2 + $0x130] sm:$0xff]
          %v4728 = vld [vmem:[%s2 + $0x138] sm:$0xff]
          %v4729 = vld [vmem:[%s2 + $0x140] sm:$0xff]
          %v4730 = vld [vmem:[%s2 + $0x148] sm:$0xff]
          %v4731 = vld [vmem:[%s2 + $0x150] sm:$0xff]
          %v4732 = vld [vmem:[%s2 + $0x158] sm:$0xff]
          %v4733 = vld [vmem:[%s2 + $0x160] sm:$0xff]
          %v4734 = vld [vmem:[%s2 + $0x168] sm:$0xff]
          %v4735 = vld [vmem:[%s2 + $0x170] sm:$0xff]
          %v4736 = vld [vmem:[%s2 + $0x178] sm:$0xff]
          %v4737 = vld [vmem:[%s3] sm:$0x1]
          %v4739 = vperm.slane %v4737, 0
          %4742 = vst [vmem:[#allocation1] ss:$4 sm:$0xff] %v4688
          %v4743 = vld.sshfl [vmem:[#allocation1] sm:$0xff pattern:$0x73625140]
          %v4744 = vld.sshfl [vmem:[#allocation1 + $0x8] sm:$0xff pattern:$0x73625140]
          %v4745 = vld.sshfl [vmem:[#allocation1 + $0x10] sm:$0xff pattern:$0x73625140]
          %4749 = vmatpush.msra.mxu0 %v4704
          %4750 = vmatpush.msra.mxu0 %v4703
          %4751 = vmatpush.msra.mxu0 %v4702
          %4752 = vmatpush.msra.mxu0 %v4701
          %4753 = vmatpush.msra.mxu0 %v4700
          %4754 = vmatpush.msra.mxu0 %v4699
          %4755 = vmatpush.msra.mxu0 %v4698
          %4756 = vmatpush.msra.mxu0 %v4697
          %4757 = vmatpush.msra.mxu0 %v4696
          %4758 = vmatpush.msra.mxu0 %v4695
          %4759 = vmatpush.msra.mxu0 %v4694
          %4760 = vmatpush.msra.mxu0 %v4693
          %4761 = vmatpush.msra.mxu0 %v4692
          %4762 = vmatpush.msra.mxu0 %v4691
          %4763 = vmatpush.msra.mxu0 %v4690
          %4764 = vmatpush.msra.mxu0 %v4689
          %4765 = vmatmul.f32.gmra.mxu0 %v4743
          %v4766 = vpop.f32.mrf.mxu0
          %v4767 = vadd.f32 %v4739, %v4766
          %4768 = vdwg.mxu0
          %4769 = vmatpush.msra.mxu0 %v4720
          %4770 = vmatpush.msra.mxu0 %v4719
          %4771 = vmatpush.msra.mxu0 %v4718
          %4772 = vmatpush.msra.mxu0 %v4717
          %4773 = vmatpush.msra.mxu0 %v4716
          %4774 = vmatpush.msra.mxu0 %v4715
          %4775 = vmatpush.msra.mxu0 %v4714
          %4776 = vmatpush.msra.mxu0 %v4713
          %4777 = vmatpush.msra.mxu0 %v4712
          %4778 = vmatpush.msra.mxu0 %v4711
          %4779 = vmatpush.msra.mxu0 %v4710
          %4780 = vmatpush.msra.mxu0 %v4709
          %4781 = vmatpush.msra.mxu0 %v4708
          %4782 = vmatpush.msra.mxu0 %v4707
          %4783 = vmatpush.msra.mxu0 %v4706
          %4784 = vmatpush.msra.mxu0 %v4705
          %4785 = vmatmul.f32.gmra.mxu0 %v4744
          %v4786 = vpop.f32.mrf.mxu0
          %v4787 = vadd.f32 %v4767, %v4786
          %4788 = vdwg.mxu0
          %4789 = vmatpush.msra.mxu0 %v4736
          %4790 = vmatpush.msra.mxu0 %v4735
          %4791 = vmatpush.msra.mxu0 %v4734
          %4792 = vmatpush.msra.mxu0 %v4733
          %4793 = vmatpush.msra.mxu0 %v4732
          %4794 = vmatpush.msra.mxu0 %v4731
          %4795 = vmatpush.msra.mxu0 %v4730
          %4796 = vmatpush.msra.mxu0 %v4729
          %4797 = vmatpush.msra.mxu0 %v4728
          %4798 = vmatpush.msra.mxu0 %v4727
          %4799 = vmatpush.msra.mxu0 %v4726
          %4800 = vmatpush.msra.mxu0 %v4725
          %4801 = vmatpush.msra.mxu0 %v4724
          %4802 = vmatpush.msra.mxu0 %v4723
          %4803 = vmatpush.msra.mxu0 %v4722
          %4804 = vmatpush.msra.mxu0 %v4721
          %4805 = vmatmul.f32.gmra.mxu0 %v4745
          %v4806 = vpop.f32.mrf.mxu0
          %v4807 = vadd.f32 %v4787, %v4806
          %4808 = vdwg.mxu0
          %4809 = vst [vmem:[#allocation6] sm:$0x3] %v4807
        $region48: #{tpu_custom_call.1} parent=35 // pred_fallthru
          _
        // Predicated region
        $region49: #{tpu_custom_call.1} parent=35 // pred_check
          %p4810 = pneg %p121
        $region50: #{tpu_custom_call.1} parent=35 // pred_check_branch
          %4812 = sbr.rel (%p4810) target = $region52
        $region51: #{tpu_custom_call.1} parent=35 // pred_region
          %4814 = vsyncadd [#allocation5], 0
          %s4816 = sshll.u32 [#allocation6], 4
          %s4817 = int_to_ptr.vmem [resolvable:$true] %s4816
          %s4818 = sshll.u32 %s4, 4
          %s4819 = int_to_ptr.hbm [resolvable:$true] %s4818
          %4821 = dma.vmem_to_hbm [thread:$0]  %s4817, 32, %s4819, [#allocation5]
        $region52: #{tpu_custom_call.1} parent=35 // pred_fallthru
          _
        // Predicated region
        $region53: #{tpu_custom_call.1} parent=35 // pred_check
          %p4822 = pneg %p121
        $region54: #{tpu_custom_call.1} parent=35 // pred_check_branch
          %4824 = sbr.rel (%p4822) target = $region56
        $region55: #{tpu_custom_call.1} parent=35 // pred_region
          %4826 = dma.done [#allocation5], 32
        $region56: #{tpu_custom_call.1} parent=35 // pred_fallthru
          _
      $region36: #{tpu_custom_call.1} parent=5 // pred_fallthru
        _
      %p4827 = scmp.le.s32.totalorder 2, %s14
      // Predicated region
      $region57: #{tpu_custom_call.1} parent=5 // pred_check
        %p4828 = pneg %p4827
      $region58: #{tpu_custom_call.1} parent=5 // pred_check_branch
        %4830 = sbr.rel (%p4828) target = $region60
      $region59: #{tpu_custom_call.1} parent=5 // pred_region
        %s4831 = ssub.s32 %s14, 2
      $region60: #{tpu_custom_call.1} parent=5 // pred_fallthru
        _
    $region6: #{tpu_custom_call.1} parent=1 // loop_footer
      %s18 = sadd.s32 1, %s14
    $region7: #{tpu_custom_call.1} parent=1 // loop_footer_branch
      %13 = sbr.rel target = $region3
    $region8: #{tpu_custom_call.1} parent=1 // loop_exit
      _
    %4832 = vsyncpa [#allocation4], 1
    %s4833 = scalar_lea.sflag [#allocation4], 1
    %4834 = vsyncpa %s4833, 1
    %4835 = vsyncpa [#allocation5], 1
    %s4836 = scalar_lea.sflag [#allocation5], 1
    %4837 = vsyncpa %s4836, 1

</llo_original>
